<compile_context>
chip_gen: v7x
topology: tpu7x:2x2x1
jax: 0.10.0
libtpu: 0.0.40
codegen_flags: <defaults>
</compile_context>

<pallas_src>
import functools
import math

import jax
import jax.numpy as jnp
from jax.experimental import pallas as pl
from jax.experimental.pallas import tpu as pltpu


def _round_up(a, m):
    return -(-a // m) * m


def _pick_block(rows, bytes_per_row, cap_rows, budget):
    """Sublane-aligned row block: multiple of 8, VMEM-budgeted, and (when there
    are enough rows) at least 2 blocks so v7x megacore has work to split."""
    r8 = _round_up(max(rows, 1), 8)
    blk = (budget // max(bytes_per_row, 1)) // 8 * 8
    blk = max(8, min(cap_rows, blk))
    if r8 >= 16:
        blk = min(blk, _round_up(-(-r8 // 2), 8))
    blk = min(blk, r8)
    nblk = -(-r8 // blk)
    return blk, nblk, nblk * blk


# ----------------------------------------------------------------------------
# Kernel 1: fused linear1 + activation + input-gate projection + GRU recurrence
# ----------------------------------------------------------------------------

def _traj_gru_kernel(x_ref, w1_ref, b1_ref, wih_ref, bih_ref, whh_ref, bhh_ref,
                     o_ref, gx_ref, *, act, leak, E, T, Bb):
    F = x_ref.shape[-1]
    # One MXU pass over all T*Bb rows of this batch block:
    # (T*Bb,F)@(F,TH) -> activation -> (T*Bb,TH)@(TH,3E).  hist_enc / gx never
    # leave VMEM.  Bb % 8 == 0 so the leading-dim collapse is layout-preserving.
    x = x_ref[...].reshape(T * Bb, F)
    e = jnp.dot(x, w1_ref[...], preferred_element_type=jnp.float32) + b1_ref[...]
    if act == "elu":                                    # ELU(alpha=1)
        e = jnp.where(e > 0, e, jnp.exp(jnp.minimum(e, 0.0)) - 1.0)
    else:                                               # LeakyReLU
        e = jnp.where(e > 0, e, leak * e)
    gx_ref[...] = (jnp.dot(e, wih_ref[...], preferred_element_type=jnp.float32)
                   + bih_ref[...])                      # (T*Bb, 3E)

    whh = whh_ref[...]                                  # (E, 3E), resident in VMEM
    bhh = bhh_ref[...]                                  # (1, 3E)

    # Sequential recurrence in-kernel: h is a fori_loop carry (vregs),
    # PyTorch gate order [r, z, n], h0 = 0.
    def step(t, h):
        row = pl.multiple_of(t * Bb, Bb)                # Bb % 8 == 0 -> aligned slab
        gxt = gx_ref[pl.ds(row, Bb), :]                 # (Bb, 3E)
        gh = jnp.dot(h, whh, preferred_element_type=jnp.float32) + bhh
        r = jax.nn.sigmoid(gxt[:, 0:E] + gh[:, 0:E])
        z = jax.nn.sigmoid(gxt[:, E:2 * E] + gh[:, E:2 * E])
        n = jnp.tanh(gxt[:, 2 * E:3 * E] + r * gh[:, 2 * E:3 * E])
        h_new = (1.0 - z) * n + z * h
        o_ref[t] = h_new                                # aligned (Bb, E) store
        return h_new

    jax.lax.fori_loop(0, T, step, jnp.zeros((Bb, E), jnp.float32),
                      unroll=(T <= 32))


def traj_encode(x, p, act, leak, E):
    """x: (T, Bc, F) time-major -> all GRU hidden states (T, Bc, E) with h0 = 0."""
    T, Bc, F = x.shape
    TH = p["w1"].shape[1]
    # rows-of-batch budget: x + out + gx scratch + activation intermediate.
    bytes_per_row = T * (F + 8 * E) * 4
    Bb, nbb, Bc_pad = _pick_block(Bc, bytes_per_row, cap_rows=256, budget=4 << 20)
    if Bc_pad != Bc:
        x = jnp.pad(x, ((0, 0), (0, Bc_pad - Bc), (0, 0)))

    out = pl.pallas_call(
        functools.partial(_traj_gru_kernel, act=act, leak=leak, E=E, T=T, Bb=Bb),
        out_shape=jax.ShapeDtypeStruct((T, Bc_pad, E), jnp.float32),
        grid=(nbb,),
        in_specs=[
            pl.BlockSpec((T, Bb, F), lambda i: (0, i, 0)),
            pl.BlockSpec((F, TH), lambda i: (0, 0)),
            pl.BlockSpec((1, TH), lambda i: (0, 0)),
            pl.BlockSpec((TH, 3 * E), lambda i: (0, 0)),
            pl.BlockSpec((1, 3 * E), lambda i: (0, 0)),
            pl.BlockSpec((E, 3 * E), lambda i: (0, 0)),
            pl.BlockSpec((1, 3 * E), lambda i: (0, 0)),
        ],
        out_specs=pl.BlockSpec((T, Bb, E), lambda i: (0, i, 0)),
        scratch_shapes=[pltpu.VMEM((T * Bb, 3 * E), jnp.float32)],
        compiler_params=pltpu.CompilerParams(
            dimension_semantics=("parallel",),
            vmem_limit_bytes=64 * 1024 * 1024),
    )(x, p["w1"], p["b1"], p["w_ih"], p["b_ih"], p["w_hh"], p["b_hh"])
    return out[:, :Bc, :]


# ----------------------------------------------------------------------------
# Kernel 2: fused Q / K|V projections + head-vectorized attention + GLU + AddNorm
# ----------------------------------------------------------------------------

def _attn_glu_kernel(hh_ref, soc_ref, wq_ref, bq_ref, wkv_ref, bkv_ref, blk_ref,
                     wglu_ref, bglu_ref, g_ref, beta_ref, o_ref,
                     *, HA, E, G, scale):
    R = hh_ref.shape[0]                                 # rows in this block (% 8 == 0)

    hh = hh_ref[...]                                    # (R, E)
    q = jnp.dot(hh, wq_ref[...], preferred_element_type=jnp.float32) + bq_ref[...]
    # soc block is cell-major (G, R, E); leading-dim collapse is layout-preserving.
    soc = soc_ref[...].reshape(G * R, E)
    kv = (jnp.dot(soc, wkv_ref[...], preferred_element_type=jnp.float32)
          + bkv_ref[...])                               # (G*R, 2*HA), K | V fused
    blkm = blk_ref[...]                                 # (HA, HA) block-diag ones

    # Pass 1: per-cell scores at full HA lane width.  The block-diagonal ones
    # matmul does the within-head sum over att_out lanes AND broadcasts it back
    # across the head's lanes, so every softmax tensor is a dense-sublane (R, HA)
    # tile (no 2-lane (R, G, n_head) chain, no per-step iota, no K=2 matmul).
    s_list = []
    for g in range(G):                                  # G is a small static constant
        k_g = kv[g * R:(g + 1) * R, :HA]
        s_list.append(jnp.dot(q * k_g, blkm,
                              preferred_element_type=jnp.float32) * scale)
    m = s_list[0]
    for g in range(1, G):
        m = jnp.maximum(m, s_list[g])                   # per-head max over cells

    # Pass 2: exp-accumulate denominator and weighted values over cells.
    denom = jnp.zeros((R, HA), jnp.float32)
    ctx = jnp.zeros((R, HA), jnp.float32)
    for g in range(G):
        p_g = jnp.exp(s_list[g] - m)
        denom = denom + p_g
        ctx = ctx + p_g * kv[g * R:(g + 1) * R, HA:]
    ctx = ctx * pl.reciprocal(denom, approx=False)      # (R, HA), head-concat layout

    # GLU (act|gate weights concatenated -> one matmul) + Add & LayerNorm (eps 1e-5).
    # TODO(synk): training-mode GLU dropout is not reproduced (inference semantics).
    glu = (jnp.dot(ctx, wglu_ref[...], preferred_element_type=jnp.float32)
           + bglu_ref[...])                             # (R, 2E)
    x = hh + glu[:, :E] * jax.nn.sigmoid(glu[:, E:])
    mu = jnp.mean(x, axis=-1, keepdims=True)
    xc = x - mu
    var = jnp.mean(xc * xc, axis=-1, keepdims=True)
    o_ref[...] = xc * jax.lax.rsqrt(var + 1e-5) * g_ref[...] + beta_ref[...]


def attn_glu_norm(hist_hidden, soc_g, p, n_head, att_out, E):
    """hist_hidden: (Ts, B, E); soc_g: (G, Ts*B, E) cell-major -> (Ts, B, E)."""
    Ts, B, _ = hist_hidden.shape
    G = soc_g.shape[0]
    HA = n_head * att_out
    R = Ts * B
    hh2 = hist_hidden.reshape(R, E)

    # Per-row VMEM: soc rows + kv + score list + hh/out; budget keeps the block
    # (double-buffered soc included) well under v7x's 64 MiB VMEM.
    bytes_per_row = (G * (E + 3 * HA) + 4 * E) * 4
    rb, nb, R_pad = _pick_block(R, bytes_per_row, cap_rows=512, budget=4 << 20)
    if R_pad != R:
        hh2 = jnp.pad(hh2, ((0, R_pad - R), (0, 0)))
        soc_g = jnp.pad(soc_g, ((0, 0), (0, R_pad - R), (0, 0)))

    # Precomputed block-diagonal ones (HA, HA): passed in once, not rebuilt from
    # iota every grid step.
    blk = (jnp.arange(HA)[:, None] // att_out
           == jnp.arange(HA)[None, :] // att_out).astype(jnp.float32)

    out = pl.pallas_call(
        functools.partial(_attn_glu_kernel, HA=HA, E=E, G=G,
                          scale=1.0 / math.sqrt(E)),
        out_shape=jax.ShapeDtypeStruct((R_pad, E), jnp.float32),
        grid=(nb,),
        in_specs=[
            pl.BlockSpec((rb, E), lambda i: (i, 0)),
            pl.BlockSpec((G, rb, E), lambda i: (0, i, 0)),
            pl.BlockSpec((E, HA), lambda i: (0, 0)),
            pl.BlockSpec((1, HA), lambda i: (0, 0)),
            pl.BlockSpec((E, 2 * HA), lambda i: (0, 0)),
            pl.BlockSpec((1, 2 * HA), lambda i: (0, 0)),
            pl.BlockSpec((HA, HA), lambda i: (0, 0)),
            pl.BlockSpec((HA, 2 * E), lambda i: (0, 0)),
            pl.BlockSpec((1, 2 * E), lambda i: (0, 0)),
            pl.BlockSpec((1, E), lambda i: (0, 0)),
            pl.BlockSpec((1, E), lambda i: (0, 0)),
        ],
        out_specs=pl.BlockSpec((rb, E), lambda i: (i, 0)),
        compiler_params=pltpu.CompilerParams(
            dimension_semantics=("parallel",),
            vmem_limit_bytes=64 * 1024 * 1024),
    )(hh2, soc_g, p["wq"], p["bq"], p["wkv"], p["bkv"], blk,
      p["w_glu"], p["b_glu"], p["ln_g"], p["ln_b"])
    return out[:R].reshape(Ts, B, E)


# ----------------------------------------------------------------------------
# Parameters (deterministic, PyTorch-default-style uniform init)
# ----------------------------------------------------------------------------

def _uniform(key, shape, fan_in):
    lim = 1.0 / math.sqrt(fan_in)
    return jax.random.uniform(key, shape, jnp.float32, -lim, lim)


def init_params(key, cfg):
    E = cfg["lstm_encoder_size"]; H = cfg["n_head"]; A = cfg["att_out"]
    TH = cfg["traj_linear_hidden"]; FL = cfg["f_length"]
    Ts = cfg["in_length_stu"]
    HA = H * A
    ks = jax.random.split(key, 20)
    p = {}
    p["w1"] = _uniform(ks[0], (FL, TH), FL)
    p["b1"] = _uniform(ks[1], (1, TH), FL)
    # GRU weights stored transposed (in, 3E); PyTorch gate order [r, z, n].
    p["w_ih"] = _uniform(ks[2], (TH, 3 * E), E)
    p["b_ih"] = _uniform(ks[3], (1, 3 * E), E)
    p["w_hh"] = _uniform(ks[4], (E, 3 * E), E)
    p["b_hh"] = _uniform(ks[5], (1, 3 * E), E)
    # q separate; k|v concatenated for one fused matmul.
    p["wq"] = _uniform(ks[6], (E, HA), E)
    p["bq"] = _uniform(ks[7], (1, HA), E)
    wk = _uniform(ks[8], (E, HA), E); bk = _uniform(ks[9], (1, HA), E)
    wv = _uniform(ks[10], (E, HA), E); bv = _uniform(ks[11], (1, HA), E)
    p["wkv"] = jnp.concatenate([wk, wv], axis=1)
    p["bkv"] = jnp.concatenate([bk, bv], axis=1)
    # GLU activation|gated layers concatenated.
    wa = _uniform(ks[12], (HA, E), HA); ba = _uniform(ks[13], (1, E), HA)
    wg = _uniform(ks[14], (HA, E), HA); bg = _uniform(ks[15], (1, E), HA)
    p["w_glu"] = jnp.concatenate([wa, wg], axis=1)
    p["b_glu"] = jnp.concatenate([ba, bg], axis=1)
    p["ln_g"] = jnp.ones((1, E), jnp.float32)
    p["ln_b"] = jnp.zeros((1, E), jnp.float32)
    # exchange: nn.Linear(self.in_length, self.in_length_stu), both == in_length_stu.
    # Stored transposed: w_ex[t, s] = W[s, t].
    p["w_ex"] = _uniform(ks[16], (Ts, Ts), Ts)
    p["b_ex"] = _uniform(ks[17], (1, Ts), Ts)
    # NOTE: self.fc is defined in __init__ but never used in forward -> omitted.
    return p


# ----------------------------------------------------------------------------
# Forward pass (mirrors GDEncoder_stu.forward)
# ----------------------------------------------------------------------------

def gd_encoder_stu_forward(p, cfg, hist, nbrs, mask, va, nbrsva, lane,
                           nbrslane, cls, nbrscls):
    E = cfg["lstm_encoder_size"]; H = cfg["n_head"]; A = cfg["att_out"]
    FL = cfg["f_length"]
    act = "elu" if cfg["use_elu"] else "leaky"
    leak = cfg["relu"]

    if FL == 5:
        hist = jnp.concatenate([hist, cls, va], axis=-1)
        nbrs = jnp.concatenate([nbrs, nbrscls, nbrsva], axis=-1)
    elif FL == 6:
        hist = jnp.concatenate([hist, cls, va, lane], axis=-1)
        nbrs = jnp.concatenate([nbrs, nbrscls, nbrsva, nbrslane], axis=-1)

    T, B, _ = hist.shape
    N = nbrs.shape[1]

    # Fused hist+nbrs trajectory encoding: both streams share T, weights and
    # h0 = 0, so one pallas_call over the concatenated batch loads the weights
    # once and roughly doubles the rows per MXU/EUP pass.
    if nbrs.shape[0] == T:
        enc = traj_encode(jnp.concatenate([hist, nbrs], axis=1), p, act, leak, E)
        hist_hidden, nbrs_hidden = enc[:, :B, :], enc[:, B:B + N, :]
    else:
        hist_hidden = traj_encode(hist, p, act, leak, E)
        nbrs_hidden = traj_encode(nbrs, p, act, leak, E)

    # masked_scatter_ emulation at cell granularity: a row-level int32
    # cell -> neighbor-row table (B*G entries) instead of an element-wise
    # cumsum/gather over T*B*G*E.  Assumes (as the module's data pipeline does)
    # that the mask is an occupancy grid replicated along the encoder dim and
    # occupied cells appear in row-major neighbor order.
    Bm = mask.shape[0]
    G = mask.shape[1] * mask.shape[2]
    occ = mask.reshape(Bm, G, mask.shape[3])[:, :, 0]                  # (B, G) bool
    nbr_idx = jnp.clip(jnp.cumsum(occ.reshape(-1).astype(jnp.int32)) - 1,
                       0, N - 1)                                       # (B*G,)
    gathered = jnp.take(nbrs_hidden, nbr_idx, axis=1)                  # (T, B*G, E)
    soc_enc = jnp.where(occ.reshape(1, Bm * G, 1), gathered, 0.0)
    soc_enc = soc_enc.reshape(T, Bm, G, E)

    # exchange: tiny Linear over the time axis -- left to XLA (a Pallas launch
    # would cost more than the compute); emitted directly in the cell-major
    # (G, Ts*B, E) layout kernel 2 consumes.
    soc_g = (jnp.einsum("tbge,ts->gsbe", soc_enc, p["w_ex"])
             + p["b_ex"][0][None, :, None, None])                      # (G, Ts, B, E)
    Ts = soc_g.shape[1]
    soc_g = soc_g.reshape(G, Ts * Bm, E)

    # Fused q/kv projections + attention + GLU + Add & LayerNorm.
    out_tbe = attn_glu_norm(hist_hidden, soc_g, p, H, A, E)            # (Ts, B, E)
    return jnp.transpose(out_tbe, (1, 0, 2))                           # (B, Ts, E)


# ----------------------------------------------------------------------------
# Demo
# ----------------------------------------------------------------------------

if __name__ == "__main__":
    cfg = dict(device=None, lstm_encoder_size=32, n_head=2, att_out=16,
               in_length=16, in_length_stu=8, out_length=8, f_length=5,
               relu=0.1, traj_linear_hidden=16, use_maneuvers=False,
               use_elu=True, use_spatial=False, dropout=0.1)

    B, N, G1, G2 = 2, 4, 3, 2
    E = cfg["lstm_encoder_size"]
    Ts = cfg["in_length_stu"]   # forward uses self.in_length == in_length_stu

    key = jax.random.PRNGKey(0)
    ks = jax.random.split(key, 10)
    hist = jax.random.normal(ks[0], (Ts, B, 2), jnp.float32)
    va = jax.random.normal(ks[1], (Ts, B, 2), jnp.float32)
    cls = jax.random.normal(ks[2], (Ts, B, 1), jnp.float32)
    lane = jax.random.normal(ks[3], (Ts, B, 1), jnp.float32)
    nbrs = jax.random.normal(ks[4], (Ts, N, 2), jnp.float32)
    nbrsva = jax.random.normal(ks[5], (Ts, N, 2), jnp.float32)
    nbrscls = jax.random.normal(ks[6], (Ts, N, 1), jnp.float32)
    nbrslane = jax.random.normal(ks[7], (Ts, N, 1), jnp.float32)

    # Social mask: N occupied grid cells (full along encoder dim); row-major
    # order of occupied cells corresponds to neighbor order.
    occ = jnp.zeros((B, G1 * G2), dtype=bool)
    occ = occ.at[0, 0].set(True).at[0, 3].set(True).at[1, 1].set(True).at[1, 4].set(True)
    mask = jnp.broadcast_to(occ[:, :, None], (B, G1 * G2, E)).reshape(B, G1, G2, E)

    params = init_params(ks[8], cfg)

    fwd = jax.jit(lambda prm, *args: gd_encoder_stu_forward(prm, cfg, *args))
    out = fwd(params, hist, nbrs, mask, va, nbrsva, lane, nbrslane, cls, nbrscls)
    out = jax.block_until_ready(out)

    assert out.shape == (B, Ts, E) and out.dtype == jnp.float32
    assert bool(jnp.all(jnp.isfinite(out)))
    print("KERNEL_OK")
</pallas_src>

<mosaic_0001>
module attributes {stable_mosaic.version = 11 : i64} {
  func.func @_traj_gru_kernel(%arg0: i32, %arg1: memref<8x8x5xf32, #tpu.memory_space<vmem>>, %arg2: memref<5x16xf32, #tpu.memory_space<vmem>>, %arg3: memref<1x16xf32, #tpu.memory_space<vmem>>, %arg4: memref<16x96xf32, #tpu.memory_space<vmem>>, %arg5: memref<1x96xf32, #tpu.memory_space<vmem>>, %arg6: memref<32x96xf32, #tpu.memory_space<vmem>>, %arg7: memref<1x96xf32, #tpu.memory_space<vmem>>, %arg8: memref<8x8x32xf32, #tpu.memory_space<vmem>>, %arg9: memref<64x96xf32, #tpu.memory_space<vmem>>) attributes {dimension_semantics = [#tpu.dimension_semantics<parallel>], iteration_bounds = array<i64: 1>, scalar_prefetch = 0 : i64, scratch_operands = 1 : i64, tpu.core_type = #tpu.core_type<tc>, window_params = [{transform_indices = @transform_0, window_bounds = array<i64: 8, 8, 5>}, {pipeline_mode = #tpu.pipeline_mode<synchronous>, transform_indices = @transform_1, window_bounds = array<i64: 5, 16>}, {pipeline_mode = #tpu.pipeline_mode<synchronous>, transform_indices = @transform_2, window_bounds = array<i64: 1, 16>}, {pipeline_mode = #tpu.pipeline_mode<synchronous>, transform_indices = @transform_3, window_bounds = array<i64: 16, 96>}, {pipeline_mode = #tpu.pipeline_mode<synchronous>, transform_indices = @transform_4, window_bounds = array<i64: 1, 96>}, {pipeline_mode = #tpu.pipeline_mode<synchronous>, transform_indices = @transform_5, window_bounds = array<i64: 32, 96>}, {pipeline_mode = #tpu.pipeline_mode<synchronous>, transform_indices = @transform_6, window_bounds = array<i64: 1, 96>}, {transform_indices = @transform_7, window_bounds = array<i64: 8, 8, 32>}]} {
    %c0 = arith.constant 0 : index
    %c0_0 = arith.constant 0 : index
    %c0_1 = arith.constant 0 : index
    %0 = vector.load %arg1[%c0, %c0_0, %c0_1] : memref<8x8x5xf32, #tpu.memory_space<vmem>>, vector<8x8x5xf32>
    %1 = vector.shape_cast %0 : vector<8x8x5xf32> to vector<64x5xf32>
    %c0_2 = arith.constant 0 : index
    %c0_3 = arith.constant 0 : index
    %2 = vector.load %arg2[%c0_2, %c0_3] : memref<5x16xf32, #tpu.memory_space<vmem>>, vector<5x16xf32>
    %cst = arith.constant dense<0.000000e+00> : vector<64x16xf32>
    %3 = tpu.matmul %1, %2, %cst {dimension_numbers = #tpu.dot_dimension_numbers<[1], [0], [0], [1], [0, 0, 1, 1], [], []>} : vector<64x5xf32>, vector<5x16xf32>, vector<64x16xf32> -> vector<64x16xf32>
    %c0_4 = arith.constant 0 : index
    %c0_5 = arith.constant 0 : index
    %4 = vector.load %arg3[%c0_4, %c0_5] : memref<1x16xf32, #tpu.memory_space<vmem>>, vector<1x16xf32>
    %5 = vector.broadcast %4 : vector<1x16xf32> to vector<64x16xf32>
    %6 = arith.addf %3, %5 : vector<64x16xf32>
    %cst_6 = arith.constant 0.000000e+00 : f32
    %7 = vector.broadcast %cst_6 : f32 to vector<64x16xf32>
    %8 = arith.cmpf ogt, %6, %7 : vector<64x16xf32>
    %cst_7 = arith.constant 0.000000e+00 : f32
    %9 = vector.broadcast %cst_7 : f32 to vector<64x16xf32>
    %10 = arith.minimumf %6, %9 : vector<64x16xf32>
    %11 = math.exp %10 : vector<64x16xf32>
    %cst_8 = arith.constant 1.000000e+00 : f32
    %12 = vector.broadcast %cst_8 : f32 to vector<64x16xf32>
    %13 = arith.subf %11, %12 : vector<64x16xf32>
    %14 = arith.select %8, %6, %13 : vector<64x16xi1>, vector<64x16xf32>
    %c0_9 = arith.constant 0 : index
    %c0_10 = arith.constant 0 : index
    %15 = vector.load %arg4[%c0_9, %c0_10] : memref<16x96xf32, #tpu.memory_space<vmem>>, vector<16x96xf32>
    %cst_11 = arith.constant dense<0.000000e+00> : vector<64x96xf32>
    %16 = tpu.matmul %14, %15, %cst_11 {dimension_numbers = #tpu.dot_dimension_numbers<[1], [0], [0], [1], [0, 0, 1, 1], [], []>} : vector<64x16xf32>, vector<16x96xf32>, vector<64x96xf32> -> vector<64x96xf32>
    %c0_12 = arith.constant 0 : index
    %c0_13 = arith.constant 0 : index
    %17 = vector.load %arg5[%c0_12, %c0_13] : memref<1x96xf32, #tpu.memory_space<vmem>>, vector<1x96xf32>
    %18 = vector.broadcast %17 : vector<1x96xf32> to vector<64x96xf32>
    %19 = arith.addf %16, %18 : vector<64x96xf32>
    %c0_14 = arith.constant 0 : index
    %c0_15 = arith.constant 0 : index
    %20 = vector.load %arg9[%c0_14, %c0_15] : memref<64x96xf32, #tpu.memory_space<vmem>>, vector<64x96xf32>
    tpu.vector_store %arg9[%c0_14, %c0_15], %19 {strides = array<i32>} : memref<64x96xf32, #tpu.memory_space<vmem>>, vector<64x96xf32>,
    %c0_16 = arith.constant 0 : index
    %c0_17 = arith.constant 0 : index
    %21 = vector.load %arg6[%c0_16, %c0_17] : memref<32x96xf32, #tpu.memory_space<vmem>>, vector<32x96xf32>
    %c0_18 = arith.constant 0 : index
    %c0_19 = arith.constant 0 : index
    %22 = vector.load %arg7[%c0_18, %c0_19] : memref<1x96xf32, #tpu.memory_space<vmem>>, vector<1x96xf32>
    %cst_20 = arith.constant 0.000000e+00 : f32
    %23 = vector.broadcast %cst_20 : f32 to vector<8x32xf32>
    %c0_i32 = arith.constant 0 : i32
    %c8_i32 = arith.constant 8 : i32
    %24 = arith.muli %c0_i32, %c8_i32 : i32
    %25 = tpu.assume_multiple %24, 8 : i32
    %26 = arith.index_cast %25 : i32 to index
    %c0_21 = arith.constant 0 : index
    %27 = vector.load %arg9[%26, %c0_21] : memref<64x96xf32, #tpu.memory_space<vmem>>, vector<8x96xf32>
    %cst_22 = arith.constant dense<0.000000e+00> : vector<8x96xf32>
    %28 = tpu.matmul %23, %21, %cst_22 {dimension_numbers = #tpu.dot_dimension_numbers<[1], [0], [0], [1], [0, 0, 1, 1], [], []>} : vector<8x32xf32>, vector<32x96xf32>, vector<8x96xf32> -> vector<8x96xf32>
    %29 = vector.broadcast %22 : vector<1x96xf32> to vector<8x96xf32>
    %30 = arith.addf %28, %29 : vector<8x96xf32>
    %31 = vector.extract_strided_slice %27 {offsets = [0, 0], sizes = [8, 32], strides = [1, 1]} : vector<8x96xf32> to vector<8x32xf32>
    %32 = vector.extract_strided_slice %30 {offsets = [0, 0], sizes = [8, 32], strides = [1, 1]} : vector<8x96xf32> to vector<8x32xf32>
    %33 = arith.addf %31, %32 : vector<8x32xf32>
    %34 = arith.negf %33 : vector<8x32xf32>
    %35 = math.exp %34 : vector<8x32xf32>
    %cst_23 = arith.constant 1.000000e+00 : f32
    %36 = vector.broadcast %cst_23 : f32 to vector<8x32xf32>
    %37 = arith.addf %36, %35 : vector<8x32xf32>
    %38 = arith.divf %36, %37 : vector<8x32xf32>
    %39 = vector.extract_strided_slice %27 {offsets = [0, 32], sizes = [8, 32], strides = [1, 1]} : vector<8x96xf32> to vector<8x32xf32>
    %40 = vector.extract_strided_slice %30 {offsets = [0, 32], sizes = [8, 32], strides = [1, 1]} : vector<8x96xf32> to vector<8x32xf32>
    %41 = arith.addf %39, %40 : vector<8x32xf32>
    %42 = arith.negf %41 : vector<8x32xf32>
    %43 = math.exp %42 : vector<8x32xf32>
    %cst_24 = arith.constant 1.000000e+00 : f32
    %44 = vector.broadcast %cst_24 : f32 to vector<8x32xf32>
    %45 = arith.addf %44, %43 : vector<8x32xf32>
    %46 = arith.divf %44, %45 : vector<8x32xf32>
    %47 = vector.extract_strided_slice %27 {offsets = [0, 64], sizes = [8, 32], strides = [1, 1]} : vector<8x96xf32> to vector<8x32xf32>
    %48 = vector.extract_strided_slice %30 {offsets = [0, 64], sizes = [8, 32], strides = [1, 1]} : vector<8x96xf32> to vector<8x32xf32>
    %49 = arith.mulf %38, %48 : vector<8x32xf32>
    %50 = arith.addf %47, %49 : vector<8x32xf32>
    %51 = math.tanh %50 : vector<8x32xf32>
    %cst_25 = arith.constant 1.000000e+00 : f32
    %52 = vector.broadcast %cst_25 : f32 to vector<8x32xf32>
    %53 = arith.subf %52, %46 : vector<8x32xf32>
    %54 = arith.mulf %53, %51 : vector<8x32xf32>
    %55 = arith.mulf %46, %23 : vector<8x32xf32>
    %56 = arith.addf %54, %55 : vector<8x32xf32>
    %57 = arith.index_cast %c0_i32 : i32 to index
    %c0_26 = arith.constant 0 : index
    %c0_27 = arith.constant 0 : index
    %58 = vector.load %arg8[%57, %c0_26, %c0_27] : memref<8x8x32xf32, #tpu.memory_space<vmem>>, vector<1x8x32xf32>
    %59 = vector.shape_cast %58 : vector<1x8x32xf32> to vector<8x32xf32>
    %60 = vector.shape_cast %56 : vector<8x32xf32> to vector<1x8x32xf32>
    tpu.vector_store %arg8[%57, %c0_26, %c0_27], %60 {strides = array<i32>} : memref<8x8x32xf32, #tpu.memory_space<vmem>>, vector<1x8x32xf32>,
    %c1_i32 = arith.constant 1 : i32
    %c8_i32_28 = arith.constant 8 : i32
    %61 = arith.muli %c1_i32, %c8_i32_28 : i32
    %62 = tpu.assume_multiple %61, 8 : i32
    %63 = arith.index_cast %62 : i32 to index
    %c0_29 = arith.constant 0 : index
    %64 = vector.load %arg9[%63, %c0_29] : memref<64x96xf32, #tpu.memory_space<vmem>>, vector<8x96xf32>
    %cst_30 = arith.constant dense<0.000000e+00> : vector<8x96xf32>
    %65 = tpu.matmul %56, %21, %cst_30 {dimension_numbers = #tpu.dot_dimension_numbers<[1], [0], [0], [1], [0, 0, 1, 1], [], []>} : vector<8x32xf32>, vector<32x96xf32>, vector<8x96xf32> -> vector<8x96xf32>
    %66 = vector.broadcast %22 : vector<1x96xf32> to vector<8x96xf32>
    %67 = arith.addf %65, %66 : vector<8x96xf32>
    %68 = vector.extract_strided_slice %64 {offsets = [0, 0], sizes = [8, 32], strides = [1, 1]} : vector<8x96xf32> to vector<8x32xf32>
    %69 = vector.extract_strided_slice %67 {offsets = [0, 0], sizes = [8, 32], strides = [1, 1]} : vector<8x96xf32> to vector<8x32xf32>
    %70 = arith.addf %68, %69 : vector<8x32xf32>
    %71 = arith.negf %70 : vector<8x32xf32>
    %72 = math.exp %71 : vector<8x32xf32>
    %cst_31 = arith.constant 1.000000e+00 : f32
    %73 = vector.broadcast %cst_31 : f32 to vector<8x32xf32>
    %74 = arith.addf %73, %72 : vector<8x32xf32>
    %75 = arith.divf %73, %74 : vector<8x32xf32>
    %76 = vector.extract_strided_slice %64 {offsets = [0, 32], sizes = [8, 32], strides = [1, 1]} : vector<8x96xf32> to vector<8x32xf32>
    %77 = vector.extract_strided_slice %67 {offsets = [0, 32], sizes = [8, 32], strides = [1, 1]} : vector<8x96xf32> to vector<8x32xf32>
    %78 = arith.addf %76, %77 : vector<8x32xf32>
    %79 = arith.negf %78 : vector<8x32xf32>
    %80 = math.exp %79 : vector<8x32xf32>
    %cst_32 = arith.constant 1.000000e+00 : f32
    %81 = vector.broadcast %cst_32 : f32 to vector<8x32xf32>
    %82 = arith.addf %81, %80 : vector<8x32xf32>
    %83 = arith.divf %81, %82 : vector<8x32xf32>
    %84 = vector.extract_strided_slice %64 {offsets = [0, 64], sizes = [8, 32], strides = [1, 1]} : vector<8x96xf32> to vector<8x32xf32>
    %85 = vector.extract_strided_slice %67 {offsets = [0, 64], sizes = [8, 32], strides = [1, 1]} : vector<8x96xf32> to vector<8x32xf32>
    %86 = arith.mulf %75, %85 : vector<8x32xf32>
    %87 = arith.addf %84, %86 : vector<8x32xf32>
    %88 = math.tanh %87 : vector<8x32xf32>
    %cst_33 = arith.constant 1.000000e+00 : f32
    %89 = vector.broadcast %cst_33 : f32 to vector<8x32xf32>
    %90 = arith.subf %89, %83 : vector<8x32xf32>
    %91 = arith.mulf %90, %88 : vector<8x32xf32>
    %92 = arith.mulf %83, %56 : vector<8x32xf32>
    %93 = arith.addf %91, %92 : vector<8x32xf32>
    %94 = arith.index_cast %c1_i32 : i32 to index
    %c0_34 = arith.constant 0 : index
    %c0_35 = arith.constant 0 : index
    %95 = vector.load %arg8[%94, %c0_34, %c0_35] : memref<8x8x32xf32, #tpu.memory_space<vmem>>, vector<1x8x32xf32>
    %96 = vector.shape_cast %95 : vector<1x8x32xf32> to vector<8x32xf32>
    %97 = vector.shape_cast %93 : vector<8x32xf32> to vector<1x8x32xf32>
    tpu.vector_store %arg8[%94, %c0_34, %c0_35], %97 {strides = array<i32>} : memref<8x8x32xf32, #tpu.memory_space<vmem>>, vector<1x8x32xf32>,
    %c2_i32 = arith.constant 2 : i32
    %c8_i32_36 = arith.constant 8 : i32
    %98 = arith.muli %c2_i32, %c8_i32_36 : i32
    %99 = tpu.assume_multiple %98, 8 : i32
    %100 = arith.index_cast %99 : i32 to index
    %c0_37 = arith.constant 0 : index
    %101 = vector.load %arg9[%100, %c0_37] : memref<64x96xf32, #tpu.memory_space<vmem>>, vector<8x96xf32>
    %cst_38 = arith.constant dense<0.000000e+00> : vector<8x96xf32>
    %102 = tpu.matmul %93, %21, %cst_38 {dimension_numbers = #tpu.dot_dimension_numbers<[1], [0], [0], [1], [0, 0, 1, 1], [], []>} : vector<8x32xf32>, vector<32x96xf32>, vector<8x96xf32> -> vector<8x96xf32>
    %103 = vector.broadcast %22 : vector<1x96xf32> to vector<8x96xf32>
    %104 = arith.addf %102, %103 : vector<8x96xf32>
    %105 = vector.extract_strided_slice %101 {offsets = [0, 0], sizes = [8, 32], strides = [1, 1]} : vector<8x96xf32> to vector<8x32xf32>
    %106 = vector.extract_strided_slice %104 {offsets = [0, 0], sizes = [8, 32], strides = [1, 1]} : vector<8x96xf32> to vector<8x32xf32>
    %107 = arith.addf %105, %106 : vector<8x32xf32>
    %108 = arith.negf %107 : vector<8x32xf32>
    %109 = math.exp %108 : vector<8x32xf32>
    %cst_39 = arith.constant 1.000000e+00 : f32
    %110 = vector.broadcast %cst_39 : f32 to vector<8x32xf32>
    %111 = arith.addf %110, %109 : vector<8x32xf32>
    %112 = arith.divf %110, %111 : vector<8x32xf32>
    %113 = vector.extract_strided_slice %101 {offsets = [0, 32], sizes = [8, 32], strides = [1, 1]} : vector<8x96xf32> to vector<8x32xf32>
    %114 = vector.extract_strided_slice %104 {offsets = [0, 32], sizes = [8, 32], strides = [1, 1]} : vector<8x96xf32> to vector<8x32xf32>
    %115 = arith.addf %113, %114 : vector<8x32xf32>
    %116 = arith.negf %115 : vector<8x32xf32>
    %117 = math.exp %116 : vector<8x32xf32>
    %cst_40 = arith.constant 1.000000e+00 : f32
    %118 = vector.broadcast %cst_40 : f32 to vector<8x32xf32>
    %119 = arith.addf %118, %117 : vector<8x32xf32>
    %120 = arith.divf %118, %119 : vector<8x32xf32>
    %121 = vector.extract_strided_slice %101 {offsets = [0, 64], sizes = [8, 32], strides = [1, 1]} : vector<8x96xf32> to vector<8x32xf32>
    %122 = vector.extract_strided_slice %104 {offsets = [0, 64], sizes = [8, 32], strides = [1, 1]} : vector<8x96xf32> to vector<8x32xf32>
    %123 = arith.mulf %112, %122 : vector<8x32xf32>
    %124 = arith.addf %121, %123 : vector<8x32xf32>
    %125 = math.tanh %124 : vector<8x32xf32>
    %cst_41 = arith.constant 1.000000e+00 : f32
    %126 = vector.broadcast %cst_41 : f32 to vector<8x32xf32>
    %127 = arith.subf %126, %120 : vector<8x32xf32>
    %128 = arith.mulf %127, %125 : vector<8x32xf32>
    %129 = arith.mulf %120, %93 : vector<8x32xf32>
    %130 = arith.addf %128, %129 : vector<8x32xf32>
    %131 = arith.index_cast %c2_i32 : i32 to index
    %c0_42 = arith.constant 0 : index
    %c0_43 = arith.constant 0 : index
    %132 = vector.load %arg8[%131, %c0_42, %c0_43] : memref<8x8x32xf32, #tpu.memory_space<vmem>>, vector<1x8x32xf32>
    %133 = vector.shape_cast %132 : vector<1x8x32xf32> to vector<8x32xf32>
    %134 = vector.shape_cast %130 : vector<8x32xf32> to vector<1x8x32xf32>
    tpu.vector_store %arg8[%131, %c0_42, %c0_43], %134 {strides = array<i32>} : memref<8x8x32xf32, #tpu.memory_space<vmem>>, vector<1x8x32xf32>,
    %c3_i32 = arith.constant 3 : i32
    %c8_i32_44 = arith.constant 8 : i32
    %135 = arith.muli %c3_i32, %c8_i32_44 : i32
    %136 = tpu.assume_multiple %135, 8 : i32
    %137 = arith.index_cast %136 : i32 to index
    %c0_45 = arith.constant 0 : index
    %138 = vector.load %arg9[%137, %c0_45] : memref<64x96xf32, #tpu.memory_space<vmem>>, vector<8x96xf32>
    %cst_46 = arith.constant dense<0.000000e+00> : vector<8x96xf32>
    %139 = tpu.matmul %130, %21, %cst_46 {dimension_numbers = #tpu.dot_dimension_numbers<[1], [0], [0], [1], [0, 0, 1, 1], [], []>} : vector<8x32xf32>, vector<32x96xf32>, vector<8x96xf32> -> vector<8x96xf32>
    %140 = vector.broadcast %22 : vector<1x96xf32> to vector<8x96xf32>
    %141 = arith.addf %139, %140 : vector<8x96xf32>
    %142 = vector.extract_strided_slice %138 {offsets = [0, 0], sizes = [8, 32], strides = [1, 1]} : vector<8x96xf32> to vector<8x32xf32>
    %143 = vector.extract_strided_slice %141 {offsets = [0, 0], sizes = [8, 32], strides = [1, 1]} : vector<8x96xf32> to vector<8x32xf32>
    %144 = arith.addf %142, %143 : vector<8x32xf32>
    %145 = arith.negf %144 : vector<8x32xf32>
    %146 = math.exp %145 : vector<8x32xf32>
    %cst_47 = arith.constant 1.000000e+00 : f32
    %147 = vector.broadcast %cst_47 : f32 to vector<8x32xf32>
    %148 = arith.addf %147, %146 : vector<8x32xf32>
    %149 = arith.divf %147, %148 : vector<8x32xf32>
    %150 = vector.extract_strided_slice %138 {offsets = [0, 32], sizes = [8, 32], strides = [1, 1]} : vector<8x96xf32> to vector<8x32xf32>
    %151 = vector.extract_strided_slice %141 {offsets = [0, 32], sizes = [8, 32], strides = [1, 1]} : vector<8x96xf32> to vector<8x32xf32>
    %152 = arith.addf %150, %151 : vector<8x32xf32>
    %153 = arith.negf %152 : vector<8x32xf32>
    %154 = math.exp %153 : vector<8x32xf32>
    %cst_48 = arith.constant 1.000000e+00 : f32
    %155 = vector.broadcast %cst_48 : f32 to vector<8x32xf32>
    %156 = arith.addf %155, %154 : vector<8x32xf32>
    %157 = arith.divf %155, %156 : vector<8x32xf32>
    %158 = vector.extract_strided_slice %138 {offsets = [0, 64], sizes = [8, 32], strides = [1, 1]} : vector<8x96xf32> to vector<8x32xf32>
    %159 = vector.extract_strided_slice %141 {offsets = [0, 64], sizes = [8, 32], strides = [1, 1]} : vector<8x96xf32> to vector<8x32xf32>
    %160 = arith.mulf %149, %159 : vector<8x32xf32>
    %161 = arith.addf %158, %160 : vector<8x32xf32>
    %162 = math.tanh %161 : vector<8x32xf32>
    %cst_49 = arith.constant 1.000000e+00 : f32
    %163 = vector.broadcast %cst_49 : f32 to vector<8x32xf32>
    %164 = arith.subf %163, %157 : vector<8x32xf32>
    %165 = arith.mulf %164, %162 : vector<8x32xf32>
    %166 = arith.mulf %157, %130 : vector<8x32xf32>
    %167 = arith.addf %165, %166 : vector<8x32xf32>
    %168 = arith.index_cast %c3_i32 : i32 to index
    %c0_50 = arith.constant 0 : index
    %c0_51 = arith.constant 0 : index
    %169 = vector.load %arg8[%168, %c0_50, %c0_51] : memref<8x8x32xf32, #tpu.memory_space<vmem>>, vector<1x8x32xf32>
    %170 = vector.shape_cast %169 : vector<1x8x32xf32> to vector<8x32xf32>
    %171 = vector.shape_cast %167 : vector<8x32xf32> to vector<1x8x32xf32>
    tpu.vector_store %arg8[%168, %c0_50, %c0_51], %171 {strides = array<i32>} : memref<8x8x32xf32, #tpu.memory_space<vmem>>, vector<1x8x32xf32>,
    %c4_i32 = arith.constant 4 : i32
    %c8_i32_52 = arith.constant 8 : i32
    %172 = arith.muli %c4_i32, %c8_i32_52 : i32
    %173 = tpu.assume_multiple %172, 8 : i32
    %174 = arith.index_cast %173 : i32 to index
    %c0_53 = arith.constant 0 : index
    %175 = vector.load %arg9[%174, %c0_53] : memref<64x96xf32, #tpu.memory_space<vmem>>, vector<8x96xf32>
    %cst_54 = arith.constant dense<0.000000e+00> : vector<8x96xf32>
    %176 = tpu.matmul %167, %21, %cst_54 {dimension_numbers = #tpu.dot_dimension_numbers<[1], [0], [0], [1], [0, 0, 1, 1], [], []>} : vector<8x32xf32>, vector<32x96xf32>, vector<8x96xf32> -> vector<8x96xf32>
    %177 = vector.broadcast %22 : vector<1x96xf32> to vector<8x96xf32>
    %178 = arith.addf %176, %177 : vector<8x96xf32>
    %179 = vector.extract_strided_slice %175 {offsets = [0, 0], sizes = [8, 32], strides = [1, 1]} : vector<8x96xf32> to vector<8x32xf32>
    %180 = vector.extract_strided_slice %178 {offsets = [0, 0], sizes = [8, 32], strides = [1, 1]} : vector<8x96xf32> to vector<8x32xf32>
    %181 = arith.addf %179, %180 : vector<8x32xf32>
    %182 = arith.negf %181 : vector<8x32xf32>
    %183 = math.exp %182 : vector<8x32xf32>
    %cst_55 = arith.constant 1.000000e+00 : f32
    %184 = vector.broadcast %cst_55 : f32 to vector<8x32xf32>
    %185 = arith.addf %184, %183 : vector<8x32xf32>
    %186 = arith.divf %184, %185 : vector<8x32xf32>
    %187 = vector.extract_strided_slice %175 {offsets = [0, 32], sizes = [8, 32], strides = [1, 1]} : vector<8x96xf32> to vector<8x32xf32>
    %188 = vector.extract_strided_slice %178 {offsets = [0, 32], sizes = [8, 32], strides = [1, 1]} : vector<8x96xf32> to vector<8x32xf32>
    %189 = arith.addf %187, %188 : vector<8x32xf32>
    %190 = arith.negf %189 : vector<8x32xf32>
    %191 = math.exp %190 : vector<8x32xf32>
    %cst_56 = arith.constant 1.000000e+00 : f32
    %192 = vector.broadcast %cst_56 : f32 to vector<8x32xf32>
    %193 = arith.addf %192, %191 : vector<8x32xf32>
    %194 = arith.divf %192, %193 : vector<8x32xf32>
    %195 = vector.extract_strided_slice %175 {offsets = [0, 64], sizes = [8, 32], strides = [1, 1]} : vector<8x96xf32> to vector<8x32xf32>
    %196 = vector.extract_strided_slice %178 {offsets = [0, 64], sizes = [8, 32], strides = [1, 1]} : vector<8x96xf32> to vector<8x32xf32>
    %197 = arith.mulf %186, %196 : vector<8x32xf32>
    %198 = arith.addf %195, %197 : vector<8x32xf32>
    %199 = math.tanh %198 : vector<8x32xf32>
    %cst_57 = arith.constant 1.000000e+00 : f32
    %200 = vector.broadcast %cst_57 : f32 to vector<8x32xf32>
    %201 = arith.subf %200, %194 : vector<8x32xf32>
    %202 = arith.mulf %201, %199 : vector<8x32xf32>
    %203 = arith.mulf %194, %167 : vector<8x32xf32>
    %204 = arith.addf %202, %203 : vector<8x32xf32>
    %205 = arith.index_cast %c4_i32 : i32 to index
    %c0_58 = arith.constant 0 : index
    %c0_59 = arith.constant 0 : index
    %206 = vector.load %arg8[%205, %c0_58, %c0_59] : memref<8x8x32xf32, #tpu.memory_space<vmem>>, vector<1x8x32xf32>
    %207 = vector.shape_cast %206 : vector<1x8x32xf32> to vector<8x32xf32>
    %208 = vector.shape_cast %204 : vector<8x32xf32> to vector<1x8x32xf32>
    tpu.vector_store %arg8[%205, %c0_58, %c0_59], %208 {strides = array<i32>} : memref<8x8x32xf32, #tpu.memory_space<vmem>>, vector<1x8x32xf32>,
    %c5_i32 = arith.constant 5 : i32
    %c8_i32_60 = arith.constant 8 : i32
    %209 = arith.muli %c5_i32, %c8_i32_60 : i32
    %210 = tpu.assume_multiple %209, 8 : i32
    %211 = arith.index_cast %210 : i32 to index
    %c0_61 = arith.constant 0 : index
    %212 = vector.load %arg9[%211, %c0_61] : memref<64x96xf32, #tpu.memory_space<vmem>>, vector<8x96xf32>
    %cst_62 = arith.constant dense<0.000000e+00> : vector<8x96xf32>
    %213 = tpu.matmul %204, %21, %cst_62 {dimension_numbers = #tpu.dot_dimension_numbers<[1], [0], [0], [1], [0, 0, 1, 1], [], []>} : vector<8x32xf32>, vector<32x96xf32>, vector<8x96xf32> -> vector<8x96xf32>
    %214 = vector.broadcast %22 : vector<1x96xf32> to vector<8x96xf32>
    %215 = arith.addf %213, %214 : vector<8x96xf32>
    %216 = vector.extract_strided_slice %212 {offsets = [0, 0], sizes = [8, 32], strides = [1, 1]} : vector<8x96xf32> to vector<8x32xf32>
    %217 = vector.extract_strided_slice %215 {offsets = [0, 0], sizes = [8, 32], strides = [1, 1]} : vector<8x96xf32> to vector<8x32xf32>
    %218 = arith.addf %216, %217 : vector<8x32xf32>
    %219 = arith.negf %218 : vector<8x32xf32>
    %220 = math.exp %219 : vector<8x32xf32>
    %cst_63 = arith.constant 1.000000e+00 : f32
    %221 = vector.broadcast %cst_63 : f32 to vector<8x32xf32>
    %222 = arith.addf %221, %220 : vector<8x32xf32>
    %223 = arith.divf %221, %222 : vector<8x32xf32>
    %224 = vector.extract_strided_slice %212 {offsets = [0, 32], sizes = [8, 32], strides = [1, 1]} : vector<8x96xf32> to vector<8x32xf32>
    %225 = vector.extract_strided_slice %215 {offsets = [0, 32], sizes = [8, 32], strides = [1, 1]} : vector<8x96xf32> to vector<8x32xf32>
    %226 = arith.addf %224, %225 : vector<8x32xf32>
    %227 = arith.negf %226 : vector<8x32xf32>
    %228 = math.exp %227 : vector<8x32xf32>
    %cst_64 = arith.constant 1.000000e+00 : f32
    %229 = vector.broadcast %cst_64 : f32 to vector<8x32xf32>
    %230 = arith.addf %229, %228 : vector<8x32xf32>
    %231 = arith.divf %229, %230 : vector<8x32xf32>
    %232 = vector.extract_strided_slice %212 {offsets = [0, 64], sizes = [8, 32], strides = [1, 1]} : vector<8x96xf32> to vector<8x32xf32>
    %233 = vector.extract_strided_slice %215 {offsets = [0, 64], sizes = [8, 32], strides = [1, 1]} : vector<8x96xf32> to vector<8x32xf32>
    %234 = arith.mulf %223, %233 : vector<8x32xf32>
    %235 = arith.addf %232, %234 : vector<8x32xf32>
    %236 = math.tanh %235 : vector<8x32xf32>
    %cst_65 = arith.constant 1.000000e+00 : f32
    %237 = vector.broadcast %cst_65 : f32 to vector<8x32xf32>
    %238 = arith.subf %237, %231 : vector<8x32xf32>
    %239 = arith.mulf %238, %236 : vector<8x32xf32>
    %240 = arith.mulf %231, %204 : vector<8x32xf32>
    %241 = arith.addf %239, %240 : vector<8x32xf32>
    %242 = arith.index_cast %c5_i32 : i32 to index
    %c0_66 = arith.constant 0 : index
    %c0_67 = arith.constant 0 : index
    %243 = vector.load %arg8[%242, %c0_66, %c0_67] : memref<8x8x32xf32, #tpu.memory_space<vmem>>, vector<1x8x32xf32>
    %244 = vector.shape_cast %243 : vector<1x8x32xf32> to vector<8x32xf32>
    %245 = vector.shape_cast %241 : vector<8x32xf32> to vector<1x8x32xf32>
    tpu.vector_store %arg8[%242, %c0_66, %c0_67], %245 {strides = array<i32>} : memref<8x8x32xf32, #tpu.memory_space<vmem>>, vector<1x8x32xf32>,
    %c6_i32 = arith.constant 6 : i32
    %c8_i32_68 = arith.constant 8 : i32
    %246 = arith.muli %c6_i32, %c8_i32_68 : i32
    %247 = tpu.assume_multiple %246, 8 : i32
    %248 = arith.index_cast %247 : i32 to index
    %c0_69 = arith.constant 0 : index
    %249 = vector.load %arg9[%248, %c0_69] : memref<64x96xf32, #tpu.memory_space<vmem>>, vector<8x96xf32>
    %cst_70 = arith.constant dense<0.000000e+00> : vector<8x96xf32>
    %250 = tpu.matmul %241, %21, %cst_70 {dimension_numbers = #tpu.dot_dimension_numbers<[1], [0], [0], [1], [0, 0, 1, 1], [], []>} : vector<8x32xf32>, vector<32x96xf32>, vector<8x96xf32> -> vector<8x96xf32>
    %251 = vector.broadcast %22 : vector<1x96xf32> to vector<8x96xf32>
    %252 = arith.addf %250, %251 : vector<8x96xf32>
    %253 = vector.extract_strided_slice %249 {offsets = [0, 0], sizes = [8, 32], strides = [1, 1]} : vector<8x96xf32> to vector<8x32xf32>
    %254 = vector.extract_strided_slice %252 {offsets = [0, 0], sizes = [8, 32], strides = [1, 1]} : vector<8x96xf32> to vector<8x32xf32>
    %255 = arith.addf %253, %254 : vector<8x32xf32>
    %256 = arith.negf %255 : vector<8x32xf32>
    %257 = math.exp %256 : vector<8x32xf32>
    %cst_71 = arith.constant 1.000000e+00 : f32
    %258 = vector.broadcast %cst_71 : f32 to vector<8x32xf32>
    %259 = arith.addf %258, %257 : vector<8x32xf32>
    %260 = arith.divf %258, %259 : vector<8x32xf32>
    %261 = vector.extract_strided_slice %249 {offsets = [0, 32], sizes = [8, 32], strides = [1, 1]} : vector<8x96xf32> to vector<8x32xf32>
    %262 = vector.extract_strided_slice %252 {offsets = [0, 32], sizes = [8, 32], strides = [1, 1]} : vector<8x96xf32> to vector<8x32xf32>
    %263 = arith.addf %261, %262 : vector<8x32xf32>
    %264 = arith.negf %263 : vector<8x32xf32>
    %265 = math.exp %264 : vector<8x32xf32>
    %cst_72 = arith.constant 1.000000e+00 : f32
    %266 = vector.broadcast %cst_72 : f32 to vector<8x32xf32>
    %267 = arith.addf %266, %265 : vector<8x32xf32>
    %268 = arith.divf %266, %267 : vector<8x32xf32>
    %269 = vector.extract_strided_slice %249 {offsets = [0, 64], sizes = [8, 32], strides = [1, 1]} : vector<8x96xf32> to vector<8x32xf32>
    %270 = vector.extract_strided_slice %252 {offsets = [0, 64], sizes = [8, 32], strides = [1, 1]} : vector<8x96xf32> to vector<8x32xf32>
    %271 = arith.mulf %260, %270 : vector<8x32xf32>
    %272 = arith.addf %269, %271 : vector<8x32xf32>
    %273 = math.tanh %272 : vector<8x32xf32>
    %cst_73 = arith.constant 1.000000e+00 : f32
    %274 = vector.broadcast %cst_73 : f32 to vector<8x32xf32>
    %275 = arith.subf %274, %268 : vector<8x32xf32>
    %276 = arith.mulf %275, %273 : vector<8x32xf32>
    %277 = arith.mulf %268, %241 : vector<8x32xf32>
    %278 = arith.addf %276, %277 : vector<8x32xf32>
    %279 = arith.index_cast %c6_i32 : i32 to index
    %c0_74 = arith.constant 0 : index
    %c0_75 = arith.constant 0 : index
    %280 = vector.load %arg8[%279, %c0_74, %c0_75] : memref<8x8x32xf32, #tpu.memory_space<vmem>>, vector<1x8x32xf32>
    %281 = vector.shape_cast %280 : vector<1x8x32xf32> to vector<8x32xf32>
    %282 = vector.shape_cast %278 : vector<8x32xf32> to vector<1x8x32xf32>
    tpu.vector_store %arg8[%279, %c0_74, %c0_75], %282 {strides = array<i32>} : memref<8x8x32xf32, #tpu.memory_space<vmem>>, vector<1x8x32xf32>,
    %c7_i32 = arith.constant 7 : i32
    %c8_i32_76 = arith.constant 8 : i32
    %283 = arith.muli %c7_i32, %c8_i32_76 : i32
    %284 = tpu.assume_multiple %283, 8 : i32
    %285 = arith.index_cast %284 : i32 to index
    %c0_77 = arith.constant 0 : index
    %286 = vector.load %arg9[%285, %c0_77] : memref<64x96xf32, #tpu.memory_space<vmem>>, vector<8x96xf32>
    %cst_78 = arith.constant dense<0.000000e+00> : vector<8x96xf32>
    %287 = tpu.matmul %278, %21, %cst_78 {dimension_numbers = #tpu.dot_dimension_numbers<[1], [0], [0], [1], [0, 0, 1, 1], [], []>} : vector<8x32xf32>, vector<32x96xf32>, vector<8x96xf32> -> vector<8x96xf32>
    %288 = vector.broadcast %22 : vector<1x96xf32> to vector<8x96xf32>
    %289 = arith.addf %287, %288 : vector<8x96xf32>
    %290 = vector.extract_strided_slice %286 {offsets = [0, 0], sizes = [8, 32], strides = [1, 1]} : vector<8x96xf32> to vector<8x32xf32>
    %291 = vector.extract_strided_slice %289 {offsets = [0, 0], sizes = [8, 32], strides = [1, 1]} : vector<8x96xf32> to vector<8x32xf32>
    %292 = arith.addf %290, %291 : vector<8x32xf32>
    %293 = arith.negf %292 : vector<8x32xf32>
    %294 = math.exp %293 : vector<8x32xf32>
    %cst_79 = arith.constant 1.000000e+00 : f32
    %295 = vector.broadcast %cst_79 : f32 to vector<8x32xf32>
    %296 = arith.addf %295, %294 : vector<8x32xf32>
    %297 = arith.divf %295, %296 : vector<8x32xf32>
    %298 = vector.extract_strided_slice %286 {offsets = [0, 32], sizes = [8, 32], strides = [1, 1]} : vector<8x96xf32> to vector<8x32xf32>
    %299 = vector.extract_strided_slice %289 {offsets = [0, 32], sizes = [8, 32], strides = [1, 1]} : vector<8x96xf32> to vector<8x32xf32>
    %300 = arith.addf %298, %299 : vector<8x32xf32>
    %301 = arith.negf %300 : vector<8x32xf32>
    %302 = math.exp %301 : vector<8x32xf32>
    %cst_80 = arith.constant 1.000000e+00 : f32
    %303 = vector.broadcast %cst_80 : f32 to vector<8x32xf32>
    %304 = arith.addf %303, %302 : vector<8x32xf32>
    %305 = arith.divf %303, %304 : vector<8x32xf32>
    %306 = vector.extract_strided_slice %286 {offsets = [0, 64], sizes = [8, 32], strides = [1, 1]} : vector<8x96xf32> to vector<8x32xf32>
    %307 = vector.extract_strided_slice %289 {offsets = [0, 64], sizes = [8, 32], strides = [1, 1]} : vector<8x96xf32> to vector<8x32xf32>
    %308 = arith.mulf %297, %307 : vector<8x32xf32>
    %309 = arith.addf %306, %308 : vector<8x32xf32>
    %310 = math.tanh %309 : vector<8x32xf32>
    %cst_81 = arith.constant 1.000000e+00 : f32
    %311 = vector.broadcast %cst_81 : f32 to vector<8x32xf32>
    %312 = arith.subf %311, %305 : vector<8x32xf32>
    %313 = arith.mulf %312, %310 : vector<8x32xf32>
    %314 = arith.mulf %305, %278 : vector<8x32xf32>
    %315 = arith.addf %313, %314 : vector<8x32xf32>
    %316 = arith.index_cast %c7_i32 : i32 to index
    %c0_82 = arith.constant 0 : index
    %c0_83 = arith.constant 0 : index
    %317 = vector.load %arg8[%316, %c0_82, %c0_83] : memref<8x8x32xf32, #tpu.memory_space<vmem>>, vector<1x8x32xf32>
    %318 = vector.shape_cast %317 : vector<1x8x32xf32> to vector<8x32xf32>
    %319 = vector.shape_cast %315 : vector<8x32xf32> to vector<1x8x32xf32>
    tpu.vector_store %arg8[%316, %c0_82, %c0_83], %319 {strides = array<i32>} : memref<8x8x32xf32, #tpu.memory_space<vmem>>, vector<1x8x32xf32>,
    %c8_i32_84 = arith.constant 8 : i32
    return
  }
  func.func @transform_0(%arg0: i32) -> (i32, i32, i32) {
    %c0_i32 = arith.constant 0 : i32
    %c0_i32_0 = arith.constant 0 : i32
    %c0_i32_1 = arith.constant 0 : i32
    return %c0_i32, %arg0, %c0_i32_0 : i32, i32, i32
  }
  func.func @transform_1(%arg0: i32) -> (i32, i32) {
    %c0_i32 = arith.constant 0 : i32
    %c0_i32_0 = arith.constant 0 : i32
    %c0_i32_1 = arith.constant 0 : i32
    return %c0_i32, %c0_i32_0 : i32, i32
  }
  func.func @transform_2(%arg0: i32) -> (i32, i32) {
    %c0_i32 = arith.constant 0 : i32
    %c0_i32_0 = arith.constant 0 : i32
    %c0_i32_1 = arith.constant 0 : i32
    return %c0_i32, %c0_i32_0 : i32, i32
  }
  func.func @transform_3(%arg0: i32) -> (i32, i32) {
    %c0_i32 = arith.constant 0 : i32
    %c0_i32_0 = arith.constant 0 : i32
    %c0_i32_1 = arith.constant 0 : i32
    return %c0_i32, %c0_i32_0 : i32, i32
  }
  func.func @transform_4(%arg0: i32) -> (i32, i32) {
    %c0_i32 = arith.constant 0 : i32
    %c0_i32_0 = arith.constant 0 : i32
    %c0_i32_1 = arith.constant 0 : i32
    return %c0_i32, %c0_i32_0 : i32, i32
  }
  func.func @transform_5(%arg0: i32) -> (i32, i32) {
    %c0_i32 = arith.constant 0 : i32
    %c0_i32_0 = arith.constant 0 : i32
    %c0_i32_1 = arith.constant 0 : i32
    return %c0_i32, %c0_i32_0 : i32, i32
  }
  func.func @transform_6(%arg0: i32) -> (i32, i32) {
    %c0_i32 = arith.constant 0 : i32
    %c0_i32_0 = arith.constant 0 : i32
    %c0_i32_1 = arith.constant 0 : i32
    return %c0_i32, %c0_i32_0 : i32, i32
  }
  func.func @transform_7(%arg0: i32) -> (i32, i32, i32) {
    %c0_i32 = arith.constant 0 : i32
    %c0_i32_0 = arith.constant 0 : i32
    %c0_i32_1 = arith.constant 0 : i32
    return %c0_i32, %arg0, %c0_i32_0 : i32, i32, i32
  }
}

module attributes {stable_mosaic.version = 11 : i64} {
  func.func @_attn_glu_kernel(%arg0: i32, %arg1: memref<8x32xf32, #tpu.memory_space<vmem>>, %arg2: memref<6x8x32xf32, #tpu.memory_space<vmem>>, %arg3: memref<32x32xf32, #tpu.memory_space<vmem>>, %arg4: memref<1x32xf32, #tpu.memory_space<vmem>>, %arg5: memref<32x64xf32, #tpu.memory_space<vmem>>, %arg6: memref<1x64xf32, #tpu.memory_space<vmem>>, %arg7: memref<32x32xf32, #tpu.memory_space<vmem>>, %arg8: memref<32x64xf32, #tpu.memory_space<vmem>>, %arg9: memref<1x64xf32, #tpu.memory_space<vmem>>, %arg10: memref<1x32xf32, #tpu.memory_space<vmem>>, %arg11: memref<1x32xf32, #tpu.memory_space<vmem>>, %arg12: memref<8x32xf32, #tpu.memory_space<vmem>>) attributes {dimension_semantics = [#tpu.dimension_semantics<parallel>], iteration_bounds = array<i64: 2>, scalar_prefetch = 0 : i64, scratch_operands = 0 : i64, tpu.core_type = #tpu.core_type<tc>, window_params = [{transform_indices = @transform_0, window_bounds = array<i64: 8, 32>}, {transform_indices = @transform_1, window_bounds = array<i64: 6, 8, 32>}, {pipeline_mode = #tpu.pipeline_mode<synchronous>, transform_indices = @transform_2, window_bounds = array<i64: 32, 32>}, {pipeline_mode = #tpu.pipeline_mode<synchronous>, transform_indices = @transform_3, window_bounds = array<i64: 1, 32>}, {pipeline_mode = #tpu.pipeline_mode<synchronous>, transform_indices = @transform_4, window_bounds = array<i64: 32, 64>}, {pipeline_mode = #tpu.pipeline_mode<synchronous>, transform_indices = @transform_5, window_bounds = array<i64: 1, 64>}, {pipeline_mode = #tpu.pipeline_mode<synchronous>, transform_indices = @transform_6, window_bounds = array<i64: 32, 32>}, {pipeline_mode = #tpu.pipeline_mode<synchronous>, transform_indices = @transform_7, window_bounds = array<i64: 32, 64>}, {pipeline_mode = #tpu.pipeline_mode<synchronous>, transform_indices = @transform_8, window_bounds = array<i64: 1, 64>}, {pipeline_mode = #tpu.pipeline_mode<synchronous>, transform_indices = @transform_9, window_bounds = array<i64: 1, 32>}, {pipeline_mode = #tpu.pipeline_mode<synchronous>, transform_indices = @transform_10, window_bounds = array<i64: 1, 32>}, {transform_indices = @transform_11, window_bounds = array<i64: 8, 32>}]} {
    %c0 = arith.constant 0 : index
    %c0_0 = arith.constant 0 : index
    %0 = vector.load %arg1[%c0, %c0_0] : memref<8x32xf32, #tpu.memory_space<vmem>>, vector<8x32xf32>
    %c0_1 = arith.constant 0 : index
    %c0_2 = arith.constant 0 : index
    %1 = vector.load %arg3[%c0_1, %c0_2] : memref<32x32xf32, #tpu.memory_space<vmem>>, vector<32x32xf32>
    %cst = arith.constant dense<0.000000e+00> : vector<8x32xf32>
    %2 = tpu.matmul %0, %1, %cst {dimension_numbers = #tpu.dot_dimension_numbers<[1], [0], [0], [1], [0, 0, 1, 1], [], []>} : vector<8x32xf32>, vector<32x32xf32>, vector<8x32xf32> -> vector<8x32xf32>
    %c0_3 = arith.constant 0 : index
    %c0_4 = arith.constant 0 : index
    %3 = vector.load %arg4[%c0_3, %c0_4] : memref<1x32xf32, #tpu.memory_space<vmem>>, vector<1x32xf32>
    %4 = vector.broadcast %3 : vector<1x32xf32> to vector<8x32xf32>
    %5 = arith.addf %2, %4 : vector<8x32xf32>
    %c0_5 = arith.constant 0 : index
    %c0_6 = arith.constant 0 : index
    %c0_7 = arith.constant 0 : index
    %6 = vector.load %arg2[%c0_5, %c0_6, %c0_7] : memref<6x8x32xf32, #tpu.memory_space<vmem>>, vector<6x8x32xf32>
    %7 = vector.shape_cast %6 : vector<6x8x32xf32> to vector<48x32xf32>
    %c0_8 = arith.constant 0 : index
    %c0_9 = arith.constant 0 : index
    %8 = vector.load %arg5[%c0_8, %c0_9] : memref<32x64xf32, #tpu.memory_space<vmem>>, vector<32x64xf32>
    %cst_10 = arith.constant dense<0.000000e+00> : vector<48x64xf32>
    %9 = tpu.matmul %7, %8, %cst_10 {dimension_numbers = #tpu.dot_dimension_numbers<[1], [0], [0], [1], [0, 0, 1, 1], [], []>} : vector<48x32xf32>, vector<32x64xf32>, vector<48x64xf32> -> vector<48x64xf32>
    %c0_11 = arith.constant 0 : index
    %c0_12 = arith.constant 0 : index
    %10 = vector.load %arg6[%c0_11, %c0_12] : memref<1x64xf32, #tpu.memory_space<vmem>>, vector<1x64xf32>
    %11 = vector.broadcast %10 : vector<1x64xf32> to vector<48x64xf32>
    %12 = arith.addf %9, %11 : vector<48x64xf32>
    %c0_13 = arith.constant 0 : index
    %c0_14 = arith.constant 0 : index
    %13 = vector.load %arg7[%c0_13, %c0_14] : memref<32x32xf32, #tpu.memory_space<vmem>>, vector<32x32xf32>
    %14 = vector.extract_strided_slice %12 {offsets = [0, 0], sizes = [8, 32], strides = [1, 1]} : vector<48x64xf32> to vector<8x32xf32>
    %15 = arith.mulf %5, %14 : vector<8x32xf32>
    %cst_15 = arith.constant dense<0.000000e+00> : vector<8x32xf32>
    %16 = tpu.matmul %15, %13, %cst_15 {dimension_numbers = #tpu.dot_dimension_numbers<[1], [0], [0], [1], [0, 0, 1, 1], [], []>} : vector<8x32xf32>, vector<32x32xf32>, vector<8x32xf32> -> vector<8x32xf32>
    %cst_16 = arith.constant 0.176776692 : f32
    %17 = vector.broadcast %cst_16 : f32 to vector<8x32xf32>
    %18 = arith.mulf %16, %17 : vector<8x32xf32>
    %19 = vector.extract_strided_slice %12 {offsets = [8, 0], sizes = [8, 32], strides = [1, 1]} : vector<48x64xf32> to vector<8x32xf32>
    %20 = arith.mulf %5, %19 : vector<8x32xf32>
    %cst_17 = arith.constant dense<0.000000e+00> : vector<8x32xf32>
    %21 = tpu.matmul %20, %13, %cst_17 {dimension_numbers = #tpu.dot_dimension_numbers<[1], [0], [0], [1], [0, 0, 1, 1], [], []>} : vector<8x32xf32>, vector<32x32xf32>, vector<8x32xf32> -> vector<8x32xf32>
    %cst_18 = arith.constant 0.176776692 : f32
    %22 = vector.broadcast %cst_18 : f32 to vector<8x32xf32>
    %23 = arith.mulf %21, %22 : vector<8x32xf32>
    %24 = vector.extract_strided_slice %12 {offsets = [16, 0], sizes = [8, 32], strides = [1, 1]} : vector<48x64xf32> to vector<8x32xf32>
    %25 = arith.mulf %5, %24 : vector<8x32xf32>
    %cst_19 = arith.constant dense<0.000000e+00> : vector<8x32xf32>
    %26 = tpu.matmul %25, %13, %cst_19 {dimension_numbers = #tpu.dot_dimension_numbers<[1], [0], [0], [1], [0, 0, 1, 1], [], []>} : vector<8x32xf32>, vector<32x32xf32>, vector<8x32xf32> -> vector<8x32xf32>
    %cst_20 = arith.constant 0.176776692 : f32
    %27 = vector.broadcast %cst_20 : f32 to vector<8x32xf32>
    %28 = arith.mulf %26, %27 : vector<8x32xf32>
    %29 = vector.extract_strided_slice %12 {offsets = [24, 0], sizes = [8, 32], strides = [1, 1]} : vector<48x64xf32> to vector<8x32xf32>
    %30 = arith.mulf %5, %29 : vector<8x32xf32>
    %cst_21 = arith.constant dense<0.000000e+00> : vector<8x32xf32>
    %31 = tpu.matmul %30, %13, %cst_21 {dimension_numbers = #tpu.dot_dimension_numbers<[1], [0], [0], [1], [0, 0, 1, 1], [], []>} : vector<8x32xf32>, vector<32x32xf32>, vector<8x32xf32> -> vector<8x32xf32>
    %cst_22 = arith.constant 0.176776692 : f32
    %32 = vector.broadcast %cst_22 : f32 to vector<8x32xf32>
    %33 = arith.mulf %31, %32 : vector<8x32xf32>
    %34 = vector.extract_strided_slice %12 {offsets = [32, 0], sizes = [8, 32], strides = [1, 1]} : vector<48x64xf32> to vector<8x32xf32>
    %35 = arith.mulf %5, %34 : vector<8x32xf32>
    %cst_23 = arith.constant dense<0.000000e+00> : vector<8x32xf32>
    %36 = tpu.matmul %35, %13, %cst_23 {dimension_numbers = #tpu.dot_dimension_numbers<[1], [0], [0], [1], [0, 0, 1, 1], [], []>} : vector<8x32xf32>, vector<32x32xf32>, vector<8x32xf32> -> vector<8x32xf32>
    %cst_24 = arith.constant 0.176776692 : f32
    %37 = vector.broadcast %cst_24 : f32 to vector<8x32xf32>
    %38 = arith.mulf %36, %37 : vector<8x32xf32>
    %39 = vector.extract_strided_slice %12 {offsets = [40, 0], sizes = [8, 32], strides = [1, 1]} : vector<48x64xf32> to vector<8x32xf32>
    %40 = arith.mulf %5, %39 : vector<8x32xf32>
    %cst_25 = arith.constant dense<0.000000e+00> : vector<8x32xf32>
    %41 = tpu.matmul %40, %13, %cst_25 {dimension_numbers = #tpu.dot_dimension_numbers<[1], [0], [0], [1], [0, 0, 1, 1], [], []>} : vector<8x32xf32>, vector<32x32xf32>, vector<8x32xf32> -> vector<8x32xf32>
    %cst_26 = arith.constant 0.176776692 : f32
    %42 = vector.broadcast %cst_26 : f32 to vector<8x32xf32>
    %43 = arith.mulf %41, %42 : vector<8x32xf32>
    %44 = arith.maximumf %18, %23 : vector<8x32xf32>
    %45 = arith.maximumf %44, %28 : vector<8x32xf32>
    %46 = arith.maximumf %45, %33 : vector<8x32xf32>
    %47 = arith.maximumf %46, %38 : vector<8x32xf32>
    %48 = arith.maximumf %47, %43 : vector<8x32xf32>
    %cst_27 = arith.constant 0.000000e+00 : f32
    %49 = vector.broadcast %cst_27 : f32 to vector<8x32xf32>
    %cst_28 = arith.constant 0.000000e+00 : f32
    %50 = vector.broadcast %cst_28 : f32 to vector<8x32xf32>
    %51 = arith.subf %18, %48 : vector<8x32xf32>
    %52 = math.exp %51 : vector<8x32xf32>
    %53 = arith.addf %49, %52 : vector<8x32xf32>
    %54 = vector.extract_strided_slice %12 {offsets = [0, 32], sizes = [8, 32], strides = [1, 1]} : vector<48x64xf32> to vector<8x32xf32>
    %55 = arith.mulf %52, %54 : vector<8x32xf32>
    %56 = arith.addf %50, %55 : vector<8x32xf32>
    %57 = arith.subf %23, %48 : vector<8x32xf32>
    %58 = math.exp %57 : vector<8x32xf32>
    %59 = arith.addf %53, %58 : vector<8x32xf32>
    %60 = vector.extract_strided_slice %12 {offsets = [8, 32], sizes = [8, 32], strides = [1, 1]} : vector<48x64xf32> to vector<8x32xf32>
    %61 = arith.mulf %58, %60 : vector<8x32xf32>
    %62 = arith.addf %56, %61 : vector<8x32xf32>
    %63 = arith.subf %28, %48 : vector<8x32xf32>
    %64 = math.exp %63 : vector<8x32xf32>
    %65 = arith.addf %59, %64 : vector<8x32xf32>
    %66 = vector.extract_strided_slice %12 {offsets = [16, 32], sizes = [8, 32], strides = [1, 1]} : vector<48x64xf32> to vector<8x32xf32>
    %67 = arith.mulf %64, %66 : vector<8x32xf32>
    %68 = arith.addf %62, %67 : vector<8x32xf32>
    %69 = arith.subf %33, %48 : vector<8x32xf32>
    %70 = math.exp %69 : vector<8x32xf32>
    %71 = arith.addf %65, %70 : vector<8x32xf32>
    %72 = vector.extract_strided_slice %12 {offsets = [24, 32], sizes = [8, 32], strides = [1, 1]} : vector<48x64xf32> to vector<8x32xf32>
    %73 = arith.mulf %70, %72 : vector<8x32xf32>
    %74 = arith.addf %68, %73 : vector<8x32xf32>
    %75 = arith.subf %38, %48 : vector<8x32xf32>
    %76 = math.exp %75 : vector<8x32xf32>
    %77 = arith.addf %71, %76 : vector<8x32xf32>
    %78 = vector.extract_strided_slice %12 {offsets = [32, 32], sizes = [8, 32], strides = [1, 1]} : vector<48x64xf32> to vector<8x32xf32>
    %79 = arith.mulf %76, %78 : vector<8x32xf32>
    %80 = arith.addf %74, %79 : vector<8x32xf32>
    %81 = arith.subf %43, %48 : vector<8x32xf32>
    %82 = math.exp %81 : vector<8x32xf32>
    %83 = arith.addf %77, %82 : vector<8x32xf32>
    %84 = vector.extract_strided_slice %12 {offsets = [40, 32], sizes = [8, 32], strides = [1, 1]} : vector<48x64xf32> to vector<8x32xf32>
    %85 = arith.mulf %82, %84 : vector<8x32xf32>
    %86 = arith.addf %80, %85 : vector<8x32xf32>
    %87 = tpu.reciprocal %83 : vector<8x32xf32> -> vector<8x32xf32>
    %88 = arith.mulf %86, %87 : vector<8x32xf32>
    %c0_29 = arith.constant 0 : index
    %c0_30 = arith.constant 0 : index
    %89 = vector.load %arg8[%c0_29, %c0_30] : memref<32x64xf32, #tpu.memory_space<vmem>>, vector<32x64xf32>
    %cst_31 = arith.constant dense<0.000000e+00> : vector<8x64xf32>
    %90 = tpu.matmul %88, %89, %cst_31 {dimension_numbers = #tpu.dot_dimension_numbers<[1], [0], [0], [1], [0, 0, 1, 1], [], []>} : vector<8x32xf32>, vector<32x64xf32>, vector<8x64xf32> -> vector<8x64xf32>
    %c0_32 = arith.constant 0 : index
    %c0_33 = arith.constant 0 : index
    %91 = vector.load %arg9[%c0_32, %c0_33] : memref<1x64xf32, #tpu.memory_space<vmem>>, vector<1x64xf32>
    %92 = vector.broadcast %91 : vector<1x64xf32> to vector<8x64xf32>
    %93 = arith.addf %90, %92 : vector<8x64xf32>
    %94 = vector.extract_strided_slice %93 {offsets = [0, 0], sizes = [8, 32], strides = [1, 1]} : vector<8x64xf32> to vector<8x32xf32>
    %95 = vector.extract_strided_slice %93 {offsets = [0, 32], sizes = [8, 32], strides = [1, 1]} : vector<8x64xf32> to vector<8x32xf32>
    %96 = arith.negf %95 : vector<8x32xf32>
    %97 = math.exp %96 : vector<8x32xf32>
    %cst_34 = arith.constant 1.000000e+00 : f32
    %98 = vector.broadcast %cst_34 : f32 to vector<8x32xf32>
    %99 = arith.addf %98, %97 : vector<8x32xf32>
    %100 = arith.divf %98, %99 : vector<8x32xf32>
    %101 = arith.mulf %94, %100 : vector<8x32xf32>
    %102 = arith.addf %0, %101 : vector<8x32xf32>
    %cst_35 = arith.constant dense<0.000000e+00> : vector<8xf32>
    %103 = vector.multi_reduction <add>, %102, %cst_35 [1] : vector<8x32xf32> to vector<8xf32>
    %104 = vector.shape_cast %103 : vector<8xf32> to vector<8x1xf32>
    %cst_36 = arith.constant 3.200000e+01 : f32
    %105 = vector.broadcast %cst_36 : f32 to vector<8x1xf32>
    %106 = arith.divf %104, %105 : vector<8x1xf32>
    %107 = vector.broadcast %106 : vector<8x1xf32> to vector<8x32xf32>
    %108 = arith.subf %102, %107 : vector<8x32xf32>
    %109 = arith.mulf %108, %108 : vector<8x32xf32>
    %cst_37 = arith.constant dense<0.000000e+00> : vector<8xf32>
    %110 = vector.multi_reduction <add>, %109, %cst_37 [1] : vector<8x32xf32> to vector<8xf32>
    %111 = vector.shape_cast %110 : vector<8xf32> to vector<8x1xf32>
    %cst_38 = arith.constant 3.200000e+01 : f32
    %112 = vector.broadcast %cst_38 : f32 to vector<8x1xf32>
    %113 = arith.divf %111, %112 : vector<8x1xf32>
    %cst_39 = arith.constant 9.99999974E-6 : f32
    %114 = vector.broadcast %cst_39 : f32 to vector<8x1xf32>
    %115 = arith.addf %113, %114 : vector<8x1xf32>
    %116 = math.rsqrt %115 : vector<8x1xf32>
    %117 = vector.broadcast %116 : vector<8x1xf32> to vector<8x32xf32>
    %118 = arith.mulf %108, %117 : vector<8x32xf32>
    %c0_40 = arith.constant 0 : index
    %c0_41 = arith.constant 0 : index
    %119 = vector.load %arg10[%c0_40, %c0_41] : memref<1x32xf32, #tpu.memory_space<vmem>>, vector<1x32xf32>
    %120 = vector.broadcast %119 : vector<1x32xf32> to vector<8x32xf32>
    %121 = arith.mulf %118, %120 : vector<8x32xf32>
    %c0_42 = arith.constant 0 : index
    %c0_43 = arith.constant 0 : index
    %122 = vector.load %arg11[%c0_42, %c0_43] : memref<1x32xf32, #tpu.memory_space<vmem>>, vector<1x32xf32>
    %123 = vector.broadcast %122 : vector<1x32xf32> to vector<8x32xf32>
    %124 = arith.addf %121, %123 : vector<8x32xf32>
    %c0_44 = arith.constant 0 : index
    %c0_45 = arith.constant 0 : index
    %125 = vector.load %arg12[%c0_44, %c0_45] : memref<8x32xf32, #tpu.memory_space<vmem>>, vector<8x32xf32>
    tpu.vector_store %arg12[%c0_44, %c0_45], %124 {strides = array<i32>} : memref<8x32xf32, #tpu.memory_space<vmem>>, vector<8x32xf32>,
    return
  }
  func.func @transform_0(%arg0: i32) -> (i32, i32) {
    %c0_i32 = arith.constant 0 : i32
    %c0_i32_0 = arith.constant 0 : i32
    return %arg0, %c0_i32 : i32, i32
  }
  func.func @transform_1(%arg0: i32) -> (i32, i32, i32) {
    %c0_i32 = arith.constant 0 : i32
    %c0_i32_0 = arith.constant 0 : i32
    %c0_i32_1 = arith.constant 0 : i32
    return %c0_i32, %arg0, %c0_i32_0 : i32, i32, i32
  }
  func.func @transform_2(%arg0: i32) -> (i32, i32) {
    %c0_i32 = arith.constant 0 : i32
    %c0_i32_0 = arith.constant 0 : i32
    %c0_i32_1 = arith.constant 0 : i32
    return %c0_i32, %c0_i32_0 : i32, i32
  }
  func.func @transform_3(%arg0: i32) -> (i32, i32) {
    %c0_i32 = arith.constant 0 : i32
    %c0_i32_0 = arith.constant 0 : i32
    %c0_i32_1 = arith.constant 0 : i32
    return %c0_i32, %c0_i32_0 : i32, i32
  }
  func.func @transform_4(%arg0: i32) -> (i32, i32) {
    %c0_i32 = arith.constant 0 : i32
    %c0_i32_0 = arith.constant 0 : i32
    %c0_i32_1 = arith.constant 0 : i32
    return %c0_i32, %c0_i32_0 : i32, i32
  }
  func.func @transform_5(%arg0: i32) -> (i32, i32) {
    %c0_i32 = arith.constant 0 : i32
    %c0_i32_0 = arith.constant 0 : i32
    %c0_i32_1 = arith.constant 0 : i32
    return %c0_i32, %c0_i32_0 : i32, i32
  }
  func.func @transform_6(%arg0: i32) -> (i32, i32) {
    %c0_i32 = arith.constant 0 : i32
    %c0_i32_0 = arith.constant 0 : i32
    %c0_i32_1 = arith.constant 0 : i32
    return %c0_i32, %c0_i32_0 : i32, i32
  }
  func.func @transform_7(%arg0: i32) -> (i32, i32) {
    %c0_i32 = arith.constant 0 : i32
    %c0_i32_0 = arith.constant 0 : i32
    %c0_i32_1 = arith.constant 0 : i32
    return %c0_i32, %c0_i32_0 : i32, i32
  }
  func.func @transform_8(%arg0: i32) -> (i32, i32) {
    %c0_i32 = arith.constant 0 : i32
    %c0_i32_0 = arith.constant 0 : i32
    %c0_i32_1 = arith.constant 0 : i32
    return %c0_i32, %c0_i32_0 : i32, i32
  }
  func.func @transform_9(%arg0: i32) -> (i32, i32) {
    %c0_i32 = arith.constant 0 : i32
    %c0_i32_0 = arith.constant 0 : i32
    %c0_i32_1 = arith.constant 0 : i32
    return %c0_i32, %c0_i32_0 : i32, i32
  }
  func.func @transform_10(%arg0: i32) -> (i32, i32) {
    %c0_i32 = arith.constant 0 : i32
    %c0_i32_0 = arith.constant 0 : i32
    %c0_i32_1 = arith.constant 0 : i32
    return %c0_i32, %c0_i32_0 : i32, i32
  }
  func.func @transform_11(%arg0: i32) -> (i32, i32) {
    %c0_i32 = arith.constant 0 : i32
    %c0_i32_0 = arith.constant 0 : i32
    return %arg0, %c0_i32 : i32, i32
  }
}

</mosaic_0001>

<llo_original>
// kernel: _lambda_.2
$region0: #{_lambda_.2}
  #allocation0 [shape = 'u32[]', space=smem, size = 0x4, offset = 0x4, fixed_abs, tag = 'smem constant byte address 0x4 - core index']
  #allocation1 [shape = 'u32[144,128]{1,0:T(1,128)}', space=vmem, size = 0x12000, scoped, tag = 'internal scratch']
  #allocation2 [shape = 'f32[64,96]{1,0:T(8,128)}', space=vmem, size = 0x8000, scoped, tag = 'scratch operand']
  %s0 = inlined_call_operand.hbm [shape: f32[8,8,5], index: 0, kind: input, shape index: {}]
  %s1 = inlined_call_operand.hbm [shape: f32[5,16], index: 1, kind: input, shape index: {}]
  %s2 = inlined_call_operand.hbm [shape: f32[1,16], index: 2, kind: input, shape index: {}]
  %s3 = inlined_call_operand.hbm [shape: f32[16,96], index: 3, kind: input, shape index: {}]
  %s4 = inlined_call_operand.hbm [shape: f32[1,96], index: 4, kind: input, shape index: {}]
  %s5 = inlined_call_operand.hbm [shape: f32[32,96], index: 5, kind: input, shape index: {}]
  %s6 = inlined_call_operand.hbm [shape: f32[1,96], index: 6, kind: input, shape index: {}]
  %s7 = inlined_call_operand.hbm [shape: f32[8,8,32], index: 7, kind: output, shape index: {}]
  %s8 = sld [smem:[#allocation0]]
  $region66: #{_lambda_.2} parent=0
    _
  %s10 = ssub.s32 1, %s8
  %s11 = scalar_select 0, %s10, %s8
  $region1: #{_lambda_.2} parent=0
    #allocation3 [shape = 'u8[32768]{0}', space=vmem, size = 0x8000, scoped, tag = 'input window, operand 0, single buffered']
    #allocation4 [shape = 's32[1]{0}', space=sflag, size = 0x4, scoped, tag = 'scoped memory for _lambda_.2']
    #allocation5 [shape = 's32[1]{0}', space=sflag, size = 0x4, scoped, tag = 'scoped memory for _lambda_.2']
    #allocation6 [shape = 'u8[4096]{0}', space=vmem, size = 0x1000, scoped, tag = 'input window, operand 1, single buffered']
    #allocation7 [shape = 's32[1]{0}', space=sflag, size = 0x4, scoped, tag = 'scoped memory for _lambda_.2']
    #allocation8 [shape = 'u8[512]{0}', space=vmem, size = 0x400, scoped, tag = 'input window, operand 2, single buffered']
    #allocation9 [shape = 'u8[8192]{0}', space=vmem, size = 0x2000, scoped, tag = 'input window, operand 3, single buffered']
    #allocation10 [shape = 's32[1]{0}', space=sflag, size = 0x4, scoped, tag = 'scoped memory for _lambda_.2']
    #allocation11 [shape = 'u8[512]{0}', space=vmem, size = 0x400, scoped, tag = 'input window, operand 4, single buffered']
    #allocation12 [shape = 'u8[16384]{0}', space=vmem, size = 0x4000, scoped, tag = 'input window, operand 5, single buffered']
    #allocation13 [shape = 's32[1]{0}', space=sflag, size = 0x4, scoped, tag = 'scoped memory for _lambda_.2']
    #allocation14 [shape = 'u8[512]{0}', space=vmem, size = 0x400, scoped, tag = 'input window, operand 6, single buffered']
    #allocation15 [shape = 'u8[32768]{0}', space=vmem, size = 0x8000, scoped, tag = 'output window, operand 0, single buffered']
    %12 = vsyncpa [#allocation4], 0
    %13 = vsyncpa [#allocation7], 0
    %14 = vsyncpa [#allocation10], 0
    %15 = vsyncpa [#allocation13], 0
    %16 = vsyncpa [#allocation5], 0
    // Predicated region
    $region2: #{_lambda_.2} parent=1 // pred_check
      _
    $region3: #{_lambda_.2} parent=1 // pred_check_branch
      %18 = sbr.rel (0) target = $region5
    $region4: #{_lambda_.2} parent=1 // pred_region
      %s20 = ssub.s32 1024, 1024
      %21 = vsyncadd [#allocation4], %s20
      %s22 = sshll.u32 [#allocation3], 4
      %s23 = int_to_ptr.vmem [resolvable:$true] %s22
      %28 = dma.hbm_to_vmem [thread:$0]  %s0, 1024, %s23, [#allocation4], 128, 128, 8
    $region5: #{_lambda_.2} parent=1 // pred_fallthru
      _
    // Predicated region
    $region6: #{_lambda_.2} parent=1 // pred_check
      _
    $region7: #{_lambda_.2} parent=1 // pred_check_branch
      %30 = sbr.rel (0) target = $region9
    $region8: #{_lambda_.2} parent=1 // pred_region
      %s32 = ssub.s32 128, 128
      %33 = vsyncadd [#allocation7], %s32
      %s35 = sshll.u32 [#allocation6], 4
      %s36 = int_to_ptr.vmem [resolvable:$true] %s35
      %38 = dma.hbm_to_vmem [thread:$0]  %s1, 128, %s36, [#allocation7]
    $region9: #{_lambda_.2} parent=1 // pred_fallthru
      _
    // Predicated region
    $region10: #{_lambda_.2} parent=1 // pred_check
      _
    $region11: #{_lambda_.2} parent=1 // pred_check_branch
      %40 = sbr.rel (0) target = $region13
    $region12: #{_lambda_.2} parent=1 // pred_region
      %s42 = ssub.s32 16, 16
      %43 = vsyncadd [#allocation7], %s42
      %s45 = sshll.u32 [#allocation8], 4
      %s46 = int_to_ptr.vmem [resolvable:$true] %s45
      %48 = dma.hbm_to_vmem [thread:$0]  %s2, 16, %s46, [#allocation7]
    $region13: #{_lambda_.2} parent=1 // pred_fallthru
      _
    // Predicated region
    $region14: #{_lambda_.2} parent=1 // pred_check
      _
    $region15: #{_lambda_.2} parent=1 // pred_check_branch
      %50 = sbr.rel (0) target = $region17
    $region16: #{_lambda_.2} parent=1 // pred_region
      %s52 = ssub.s32 256, 256
      %53 = vsyncadd [#allocation10], %s52
      %s54 = sshll.u32 [#allocation9], 4
      %s55 = int_to_ptr.vmem [resolvable:$true] %s54
      %60 = dma.hbm_to_vmem [thread:$0]  %s3, 256, %s55, [#allocation10], 128, 128, 8
    $region17: #{_lambda_.2} parent=1 // pred_fallthru
      _
    // Predicated region
    $region18: #{_lambda_.2} parent=1 // pred_check
      _
    $region19: #{_lambda_.2} parent=1 // pred_check_branch
      %62 = sbr.rel (0) target = $region21
    $region20: #{_lambda_.2} parent=1 // pred_region
      %s64 = ssub.s32 16, 16
      %65 = vsyncadd [#allocation10], %s64
      %s67 = sshll.u32 [#allocation11], 4
      %s68 = int_to_ptr.vmem [resolvable:$true] %s67
      %70 = dma.hbm_to_vmem [thread:$0]  %s4, 16, %s68, [#allocation10]
    $region21: #{_lambda_.2} parent=1 // pred_fallthru
      _
    // Predicated region
    $region22: #{_lambda_.2} parent=1 // pred_check
      _
    $region23: #{_lambda_.2} parent=1 // pred_check_branch
      %72 = sbr.rel (0) target = $region25
    $region24: #{_lambda_.2} parent=1 // pred_region
      %s74 = ssub.s32 512, 512
      %75 = vsyncadd [#allocation13], %s74
      %s76 = sshll.u32 [#allocation12], 4
      %s77 = int_to_ptr.vmem [resolvable:$true] %s76
      %82 = dma.hbm_to_vmem [thread:$0]  %s5, 512, %s77, [#allocation13], 128, 128, 8
    $region25: #{_lambda_.2} parent=1 // pred_fallthru
      _
    // Predicated region
    $region26: #{_lambda_.2} parent=1 // pred_check
      _
    $region27: #{_lambda_.2} parent=1 // pred_check_branch
      %84 = sbr.rel (0) target = $region29
    $region28: #{_lambda_.2} parent=1 // pred_region
      %s86 = ssub.s32 16, 16
      %87 = vsyncadd [#allocation13], %s86
      %s89 = sshll.u32 [#allocation14], 4
      %s90 = int_to_ptr.vmem [resolvable:$true] %s89
      %92 = dma.hbm_to_vmem [thread:$0]  %s6, 16, %s90, [#allocation13]
    $region29: #{_lambda_.2} parent=1 // pred_fallthru
      _
    // Predicated region
    $region30: #{_lambda_.2} parent=1 // pred_check
      _
    $region31: #{_lambda_.2} parent=1 // pred_check_branch
      %94 = sbr.rel (0) target = $region33
    $region32: #{_lambda_.2} parent=1 // pred_region
      %95 = dma.done [#allocation4], 1024
    $region33: #{_lambda_.2} parent=1 // pred_fallthru
      _
    // Predicated region
    $region34: #{_lambda_.2} parent=1 // pred_check
      _
    $region35: #{_lambda_.2} parent=1 // pred_check_branch
      %97 = sbr.rel (0) target = $region37
    $region36: #{_lambda_.2} parent=1 // pred_region
      %98 = dma.done [#allocation7], 128
    $region37: #{_lambda_.2} parent=1 // pred_fallthru
      _
    // Predicated region
    $region38: #{_lambda_.2} parent=1 // pred_check
      _
    $region39: #{_lambda_.2} parent=1 // pred_check_branch
      %100 = sbr.rel (0) target = $region41
    $region40: #{_lambda_.2} parent=1 // pred_region
      %101 = dma.done [#allocation7], 16
    $region41: #{_lambda_.2} parent=1 // pred_fallthru
      _
    // Predicated region
    $region42: #{_lambda_.2} parent=1 // pred_check
      _
    $region43: #{_lambda_.2} parent=1 // pred_check_branch
      %103 = sbr.rel (0) target = $region45
    $region44: #{_lambda_.2} parent=1 // pred_region
      %104 = dma.done [#allocation10], 256
    $region45: #{_lambda_.2} parent=1 // pred_fallthru
      _
    // Predicated region
    $region46: #{_lambda_.2} parent=1 // pred_check
      _
    $region47: #{_lambda_.2} parent=1 // pred_check_branch
      %106 = sbr.rel (0) target = $region49
    $region48: #{_lambda_.2} parent=1 // pred_region
      %107 = dma.done [#allocation10], 16
    $region49: #{_lambda_.2} parent=1 // pred_fallthru
      _
    // Predicated region
    $region50: #{_lambda_.2} parent=1 // pred_check
      _
    $region51: #{_lambda_.2} parent=1 // pred_check_branch
      %109 = sbr.rel (0) target = $region53
    $region52: #{_lambda_.2} parent=1 // pred_region
      %110 = dma.done [#allocation13], 512
    $region53: #{_lambda_.2} parent=1 // pred_fallthru
      _
    // Predicated region
    $region54: #{_lambda_.2} parent=1 // pred_check
      _
    $region55: #{_lambda_.2} parent=1 // pred_check_branch
      %112 = sbr.rel (0) target = $region57
    $region56: #{_lambda_.2} parent=1 // pred_region
      %113 = dma.done [#allocation13], 16
    $region57: #{_lambda_.2} parent=1 // pred_fallthru
      _
    %v114 = vld [vmem:[#allocation3] sm:$0xff]
    %v115 = vld [vmem:[#allocation3 + $0x8] sm:$0xff]
    %v116 = vld [vmem:[#allocation3 + $0x10] sm:$0xff]
    %v117 = vld [vmem:[#allocation3 + $0x18] sm:$0xff]
    %v118 = vld [vmem:[#allocation3 + $0x20] sm:$0xff]
    %v119 = vld [vmem:[#allocation3 + $0x28] sm:$0xff]
    %v120 = vld [vmem:[#allocation3 + $0x30] sm:$0xff]
    %v121 = vld [vmem:[#allocation3 + $0x38] sm:$0xff]
    %v122 = vld [vmem:[#allocation6] sm:$0x1f]
    %v123 = vld [vmem:[#allocation8] sm:$0x1]
    %v125 = vlaneseq
    %v126 = vshrl.u32 %v125, 7
    %v127 = vsub.s32 0, %v126
    %v128 = vrot.slane %v123, %v127
    %vm130 = vcmask 39936
    %v132 = vsel %vm130, %v114, 0
    %v135 = vsel %vm130, %v115, 0
    %v138 = vsel %vm130, %v116, 0
    %v141 = vsel %vm130, %v117, 0
    %v144 = vsel %vm130, %v118, 0
    %v147 = vsel %vm130, %v119, 0
    %v150 = vsel %vm130, %v120, 0
    %v153 = vsel %vm130, %v121, 0
    %vm155 = vcmask 1044480
    %v157 = vsel %vm155, %v122, 0
    %159 = vmatprep.subr.mxu0 0.0
    %160 = vmatpush1.msra.mxu0 %v157
    %161 = vmatprep.subr.mxu0 0.0
    %162 = vmatpush1.msra.mxu0 0.0
    %163 = vmatprep.subr.mxu0 0.0
    %164 = vmatpush1.msra.mxu0 0.0
    %165 = vmatprep.subr.mxu0 0.0
    %166 = vmatpush1.msra.mxu0 0.0
    %167 = vmatprep.subr.mxu0 0.0
    %168 = vmatpush1.msra.mxu0 0.0
    %169 = vmatprep.subr.mxu0 0.0
    %170 = vmatpush1.msra.mxu0 0.0
    %171 = vmatprep.subr.mxu0 0.0
    %172 = vmatpush1.msra.mxu0 0.0
    %173 = vmatprep.subr.mxu0 0.0
    %174 = vmatpush1.msra.mxu0 0.0
    %175 = vmatprep.subr.mxu0 0.0
    %176 = vmatpush1.msra.mxu0 0.0
    %177 = vmatprep.subr.mxu0 0.0
    %178 = vmatpush1.msra.mxu0 0.0
    %179 = vmatprep.subr.mxu0 0.0
    %180 = vmatpush1.msra.mxu0 0.0
    %181 = vmatprep.subr.mxu0 0.0
    %182 = vmatpush1.msra.mxu0 0.0
    %183 = vmatprep.subr.mxu0 0.0
    %184 = vmatpush1.msra.mxu0 0.0
    %185 = vmatprep.subr.mxu0 0.0
    %186 = vmatpush1.msra.mxu0 0.0
    %187 = vmatprep.subr.mxu0 0.0
    %188 = vmatpush1.msra.mxu0 0.0
    %189 = vmatprep.subr.mxu0 0.0
    %190 = vmatpush1.msra.mxu0 0.0
    %191 = vmatprep.subr.mxu0 0.0
    %192 = vmatpush1.msra.mxu0 0.0
    %193 = vmatprep.subr.mxu0 0.0
    %194 = vmatpush1.msra.mxu0 0.0
    %195 = vmatprep.subr.mxu0 0.0
    %196 = vmatpush1.msra.mxu0 0.0
    %197 = vmatprep.subr.mxu0 0.0
    %198 = vmatpush1.msra.mxu0 0.0
    %199 = vmatprep.subr.mxu0 0.0
    %200 = vmatpush1.msra.mxu0 0.0
    %201 = vmatprep.subr.mxu0 0.0
    %202 = vmatpush1.msra.mxu0 0.0
    %203 = vmatprep.subr.mxu0 0.0
    %204 = vmatpush1.msra.mxu0 0.0
    %205 = vmatprep.subr.mxu0 0.0
    %206 = vmatpush1.msra.mxu0 0.0
    %207 = vmatprep.subr.mxu0 0.0
    %208 = vmatpush1.msra.mxu0 0.0
    %209 = vmatprep.subr.mxu0 0.0
    %210 = vmatpush1.msra.mxu0 0.0
    %211 = vmatprep.subr.mxu0 0.0
    %212 = vmatpush1.msra.mxu0 0.0
    %213 = vmatprep.subr.mxu0 0.0
    %214 = vmatpush1.msra.mxu0 0.0
    %215 = vmatprep.subr.mxu0 0.0
    %216 = vmatpush1.msra.mxu0 0.0
    %217 = vmatprep.subr.mxu0 0.0
    %218 = vmatpush1.msra.mxu0 0.0
    %219 = vmatprep.subr.mxu0 0.0
    %220 = vmatpush1.msra.mxu0 0.0
    %221 = vmatprep.subr.mxu0 0.0
    %222 = vmatpush1.msra.mxu0 0.0
    %223 = vmatprep.mubr.f32.mxu0 0.0
    %224 = vmatmul.mubr.f32.gmra.mrb[0].mxu0 %v132
    %v225 = vpop.f32.mrb[0].mxu0
    %v226 = vadd.f32 %v128, %v225
    %v227 = vpop.f32.mrb[0].mxu0
    %228 = vmatprep.mubr.f32.mxu0 0.0
    %229 = vmatmul.mubr.f32.gmra.mrb[0].mxu0 %v135
    %v230 = vpop.f32.mrb[0].mxu0
    %v231 = vadd.f32 %v128, %v230
    %v232 = vpop.f32.mrb[0].mxu0
    %233 = vmatprep.mubr.f32.mxu0 0.0
    %234 = vmatmul.mubr.f32.gmra.mrb[0].mxu0 %v138
    %v235 = vpop.f32.mrb[0].mxu0
    %v236 = vadd.f32 %v128, %v235
    %v237 = vpop.f32.mrb[0].mxu0
    %238 = vmatprep.mubr.f32.mxu0 0.0
    %239 = vmatmul.mubr.f32.gmra.mrb[0].mxu0 %v141
    %v240 = vpop.f32.mrb[0].mxu0
    %v241 = vadd.f32 %v128, %v240
    %v242 = vpop.f32.mrb[0].mxu0
    %243 = vmatprep.mubr.f32.mxu0 0.0
    %244 = vmatmul.mubr.f32.gmra.mrb[0].mxu0 %v144
    %v245 = vpop.f32.mrb[0].mxu0
    %v246 = vadd.f32 %v128, %v245
    %v247 = vpop.f32.mrb[0].mxu0
    %248 = vmatprep.mubr.f32.mxu0 0.0
    %249 = vmatmul.mubr.f32.gmra.mrb[0].mxu0 %v147
    %v250 = vpop.f32.mrb[0].mxu0
    %v251 = vadd.f32 %v128, %v250
    %v252 = vpop.f32.mrb[0].mxu0
    %253 = vmatprep.mubr.f32.mxu0 0.0
    %254 = vmatmul.mubr.f32.gmra.mrb[0].mxu0 %v150
    %v255 = vpop.f32.mrb[0].mxu0
    %v256 = vadd.f32 %v128, %v255
    %v257 = vpop.f32.mrb[0].mxu0
    %258 = vmatprep.mubr.f32.mxu0 0.0
    %259 = vmatmul.mubr.f32.gmra.mrb[0].mxu0 %v153
    %v260 = vpop.f32.mrb[0].mxu0
    %v261 = vadd.f32 %v128, %v260
    %v262 = vpop.f32.mrb[0].mxu0
    %263 = vdwg.mxu0
    %vm264 = vcmp.gt.f32.partialorder %v226, 0.0
    %vm265 = vcmp.gt.f32.partialorder %v231, 0.0
    %vm266 = vcmp.gt.f32.partialorder %v236, 0.0
    %vm267 = vcmp.gt.f32.partialorder %v241, 0.0
    %vm268 = vcmp.gt.f32.partialorder %v246, 0.0
    %vm269 = vcmp.gt.f32.partialorder %v251, 0.0
    %vm270 = vcmp.gt.f32.partialorder %v256, 0.0
    %vm271 = vcmp.gt.f32.partialorder %v261, 0.0
    %v272 = vmin.f32 %v226, 0.0
    %v273 = vmin.f32 %v231, 0.0
    %v274 = vmin.f32 %v236, 0.0
    %v275 = vmin.f32 %v241, 0.0
    %v276 = vmin.f32 %v246, 0.0
    %v277 = vmin.f32 %v251, 0.0
    %v278 = vmin.f32 %v256, 0.0
    %v279 = vmin.f32 %v261, 0.0
    %v280 = vmul.f32 %v272, 1.442695
    %v281 = vpow.pop %v280
    %v282 = vmul.f32 %v273, 1.442695
    %v283 = vpow.pop %v282
    %v284 = vmul.f32 %v274, 1.442695
    %v285 = vpow.pop %v284
    %v286 = vmul.f32 %v275, 1.442695
    %v287 = vpow.pop %v286
    %v288 = vmul.f32 %v276, 1.442695
    %v289 = vpow.pop %v288
    %v290 = vmul.f32 %v277, 1.442695
    %v291 = vpow.pop %v290
    %v292 = vmul.f32 %v278, 1.442695
    %v293 = vpow.pop %v292
    %v294 = vmul.f32 %v279, 1.442695
    %v295 = vpow.pop %v294
    %v296 = vsub.f32 %v281, 1.0
    %v297 = vsub.f32 %v283, 1.0
    %v298 = vsub.f32 %v285, 1.0
    %v299 = vsub.f32 %v287, 1.0
    %v300 = vsub.f32 %v289, 1.0
    %v301 = vsub.f32 %v291, 1.0
    %v302 = vsub.f32 %v293, 1.0
    %v303 = vsub.f32 %v295, 1.0
    %v304 = vsel %vm264, %v226, %v296
    %v305 = vsel %vm265, %v231, %v297
    %v306 = vsel %vm266, %v236, %v298
    %v307 = vsel %vm267, %v241, %v299
    %v308 = vsel %vm268, %v246, %v300
    %v309 = vsel %vm269, %v251, %v301
    %v310 = vsel %vm270, %v256, %v302
    %v311 = vsel %vm271, %v261, %v303
    %v312 = vld [vmem:[#allocation9] sm:$0xff]
    %v313 = vld [vmem:[#allocation9 + $0x8] sm:$0xff]
    %v314 = vld [vmem:[#allocation11] sm:$0x1]
    %v316 = vlaneseq
    %v317 = vshrl.u32 %v316, 7
    %v318 = vsub.s32 0, %v317
    %v319 = vrot.slane %v314, %v318
    %vm321 = vcmask 130048
    %v323 = vsel %vm321, %v304, 0
    %v326 = vsel %vm321, %v305, 0
    %v329 = vsel %vm321, %v306, 0
    %v332 = vsel %vm321, %v307, 0
    %v335 = vsel %vm321, %v308, 0
    %v338 = vsel %vm321, %v309, 0
    %v341 = vsel %vm321, %v310, 0
    %v344 = vsel %vm321, %v311, 0
    %346 = vmatprep.subr.mxu0 0.0
    %347 = vmatpush1.msra.mxu0 %v312
    %348 = vmatprep.subr.mxu0 0.0
    %349 = vmatpush1.msra.mxu0 %v313
    %350 = vmatprep.subr.mxu0 0.0
    %351 = vmatpush1.msra.mxu0 0.0
    %352 = vmatprep.subr.mxu0 0.0
    %353 = vmatpush1.msra.mxu0 0.0
    %354 = vmatprep.subr.mxu0 0.0
    %355 = vmatpush1.msra.mxu0 0.0
    %356 = vmatprep.subr.mxu0 0.0
    %357 = vmatpush1.msra.mxu0 0.0
    %358 = vmatprep.subr.mxu0 0.0
    %359 = vmatpush1.msra.mxu0 0.0
    %360 = vmatprep.subr.mxu0 0.0
    %361 = vmatpush1.msra.mxu0 0.0
    %362 = vmatprep.subr.mxu0 0.0
    %363 = vmatpush1.msra.mxu0 0.0
    %364 = vmatprep.subr.mxu0 0.0
    %365 = vmatpush1.msra.mxu0 0.0
    %366 = vmatprep.subr.mxu0 0.0
    %367 = vmatpush1.msra.mxu0 0.0
    %368 = vmatprep.subr.mxu0 0.0
    %369 = vmatpush1.msra.mxu0 0.0
    %370 = vmatprep.subr.mxu0 0.0
    %371 = vmatpush1.msra.mxu0 0.0
    %372 = vmatprep.subr.mxu0 0.0
    %373 = vmatpush1.msra.mxu0 0.0
    %374 = vmatprep.subr.mxu0 0.0
    %375 = vmatpush1.msra.mxu0 0.0
    %376 = vmatprep.subr.mxu0 0.0
    %377 = vmatpush1.msra.mxu0 0.0
    %378 = vmatprep.subr.mxu0 0.0
    %379 = vmatpush1.msra.mxu0 0.0
    %380 = vmatprep.subr.mxu0 0.0
    %381 = vmatpush1.msra.mxu0 0.0
    %382 = vmatprep.subr.mxu0 0.0
    %383 = vmatpush1.msra.mxu0 0.0
    %384 = vmatprep.subr.mxu0 0.0
    %385 = vmatpush1.msra.mxu0 0.0
    %386 = vmatprep.subr.mxu0 0.0
    %387 = vmatpush1.msra.mxu0 0.0
    %388 = vmatprep.subr.mxu0 0.0
    %389 = vmatpush1.msra.mxu0 0.0
    %390 = vmatprep.subr.mxu0 0.0
    %391 = vmatpush1.msra.mxu0 0.0
    %392 = vmatprep.subr.mxu0 0.0
    %393 = vmatpush1.msra.mxu0 0.0
    %394 = vmatprep.subr.mxu0 0.0
    %395 = vmatpush1.msra.mxu0 0.0
    %396 = vmatprep.subr.mxu0 0.0
    %397 = vmatpush1.msra.mxu0 0.0
    %398 = vmatprep.subr.mxu0 0.0
    %399 = vmatpush1.msra.mxu0 0.0
    %400 = vmatprep.subr.mxu0 0.0
    %401 = vmatpush1.msra.mxu0 0.0
    %402 = vmatprep.subr.mxu0 0.0
    %403 = vmatpush1.msra.mxu0 0.0
    %404 = vmatprep.subr.mxu0 0.0
    %405 = vmatpush1.msra.mxu0 0.0
    %406 = vmatprep.subr.mxu0 0.0
    %407 = vmatpush1.msra.mxu0 0.0
    %408 = vmatprep.subr.mxu0 0.0
    %409 = vmatpush1.msra.mxu0 0.0
    %410 = vmatprep.mubr.f32.mxu0 0.0
    %411 = vmatmul.mubr.f32.gmra.mrb[0].mxu0 %v323
    %v412 = vpop.f32.mrb[0].mxu0
    %v413 = vadd.f32 %v319, %v412
    %v414 = vpop.f32.mrb[0].mxu0
    %415 = vmatprep.mubr.f32.mxu0 0.0
    %416 = vmatmul.mubr.f32.gmra.mrb[0].mxu0 %v326
    %v417 = vpop.f32.mrb[0].mxu0
    %v418 = vadd.f32 %v319, %v417
    %v419 = vpop.f32.mrb[0].mxu0
    %420 = vmatprep.mubr.f32.mxu0 0.0
    %421 = vmatmul.mubr.f32.gmra.mrb[0].mxu0 %v329
    %v422 = vpop.f32.mrb[0].mxu0
    %v423 = vadd.f32 %v319, %v422
    %v424 = vpop.f32.mrb[0].mxu0
    %425 = vmatprep.mubr.f32.mxu0 0.0
    %426 = vmatmul.mubr.f32.gmra.mrb[0].mxu0 %v332
    %v427 = vpop.f32.mrb[0].mxu0
    %v428 = vadd.f32 %v319, %v427
    %v429 = vpop.f32.mrb[0].mxu0
    %430 = vmatprep.mubr.f32.mxu0 0.0
    %431 = vmatmul.mubr.f32.gmra.mrb[0].mxu0 %v335
    %v432 = vpop.f32.mrb[0].mxu0
    %v433 = vadd.f32 %v319, %v432
    %v434 = vpop.f32.mrb[0].mxu0
    %435 = vmatprep.mubr.f32.mxu0 0.0
    %436 = vmatmul.mubr.f32.gmra.mrb[0].mxu0 %v338
    %v437 = vpop.f32.mrb[0].mxu0
    %v438 = vadd.f32 %v319, %v437
    %v439 = vpop.f32.mrb[0].mxu0
    %440 = vmatprep.mubr.f32.mxu0 0.0
    %441 = vmatmul.mubr.f32.gmra.mrb[0].mxu0 %v341
    %v442 = vpop.f32.mrb[0].mxu0
    %v443 = vadd.f32 %v319, %v442
    %v444 = vpop.f32.mrb[0].mxu0
    %445 = vmatprep.mubr.f32.mxu0 0.0
    %446 = vmatmul.mubr.f32.gmra.mrb[0].mxu0 %v344
    %v447 = vpop.f32.mrb[0].mxu0
    %v448 = vadd.f32 %v319, %v447
    %v449 = vpop.f32.mrb[0].mxu0
    %450 = vdwg.mxu0
    %vm451 = vcmask 785408
    %452 = vst.msk [vmem:[#allocation2] sm:$0xff] %vm451, %v413
    %453 = vst.msk [vmem:[#allocation2 + $0x8] sm:$0xff] %vm451, %v418
    %454 = vst.msk [vmem:[#allocation2 + $0x10] sm:$0xff] %vm451, %v423
    %455 = vst.msk [vmem:[#allocation2 + $0x18] sm:$0xff] %vm451, %v428
    %456 = vst.msk [vmem:[#allocation2 + $0x20] sm:$0xff] %vm451, %v433
    %457 = vst.msk [vmem:[#allocation2 + $0x28] sm:$0xff] %vm451, %v438
    %458 = vst.msk [vmem:[#allocation2 + $0x30] sm:$0xff] %vm451, %v443
    %459 = vst.msk [vmem:[#allocation2 + $0x38] sm:$0xff] %vm451, %v448
    %v460 = vld [vmem:[#allocation12] sm:$0xff]
    %v461 = vld [vmem:[#allocation12 + $0x8] sm:$0xff]
    %v462 = vld [vmem:[#allocation12 + $0x10] sm:$0xff]
    %v463 = vld [vmem:[#allocation12 + $0x18] sm:$0xff]
    %v464 = vld [vmem:[#allocation14] sm:$0x1]
    %v465 = vld [vmem:[#allocation2] sm:$0xff]
    %v467 = vlaneseq
    %v468 = vshrl.u32 %v467, 7
    %v469 = vsub.s32 0, %v468
    %v470 = vrot.slane %v464, %v469
    %vm472 = vcmask 261120
    %v474 = vsel %vm472, 0.0, 0
    %476 = vmatprep.subr.mxu0 0.0
    %477 = vmatpush1.msra.mxu0 %v460
    %478 = vmatprep.subr.mxu0 0.0
    %479 = vmatpush1.msra.mxu0 %v461
    %480 = vmatprep.subr.mxu0 0.0
    %481 = vmatpush1.msra.mxu0 %v462
    %482 = vmatprep.subr.mxu0 0.0
    %483 = vmatpush1.msra.mxu0 %v463
    %484 = vmatprep.subr.mxu0 0.0
    %485 = vmatpush1.msra.mxu0 0.0
    %486 = vmatprep.subr.mxu0 0.0
    %487 = vmatpush1.msra.mxu0 0.0
    %488 = vmatprep.subr.mxu0 0.0
    %489 = vmatpush1.msra.mxu0 0.0
    %490 = vmatprep.subr.mxu0 0.0
    %491 = vmatpush1.msra.mxu0 0.0
    %492 = vmatprep.subr.mxu0 0.0
    %493 = vmatpush1.msra.mxu0 0.0
    %494 = vmatprep.subr.mxu0 0.0
    %495 = vmatpush1.msra.mxu0 0.0
    %496 = vmatprep.subr.mxu0 0.0
    %497 = vmatpush1.msra.mxu0 0.0
    %498 = vmatprep.subr.mxu0 0.0
    %499 = vmatpush1.msra.mxu0 0.0
    %500 = vmatprep.subr.mxu0 0.0
    %501 = vmatpush1.msra.mxu0 0.0
    %502 = vmatprep.subr.mxu0 0.0
    %503 = vmatpush1.msra.mxu0 0.0
    %504 = vmatprep.subr.mxu0 0.0
    %505 = vmatpush1.msra.mxu0 0.0
    %506 = vmatprep.subr.mxu0 0.0
    %507 = vmatpush1.msra.mxu0 0.0
    %508 = vmatprep.subr.mxu0 0.0
    %509 = vmatpush1.msra.mxu0 0.0
    %510 = vmatprep.subr.mxu0 0.0
    %511 = vmatpush1.msra.mxu0 0.0
    %512 = vmatprep.subr.mxu0 0.0
    %513 = vmatpush1.msra.mxu0 0.0
    %514 = vmatprep.subr.mxu0 0.0
    %515 = vmatpush1.msra.mxu0 0.0
    %516 = vmatprep.subr.mxu0 0.0
    %517 = vmatpush1.msra.mxu0 0.0
    %518 = vmatprep.subr.mxu0 0.0
    %519 = vmatpush1.msra.mxu0 0.0
    %520 = vmatprep.subr.mxu0 0.0
    %521 = vmatpush1.msra.mxu0 0.0
    %522 = vmatprep.subr.mxu0 0.0
    %523 = vmatpush1.msra.mxu0 0.0
    %524 = vmatprep.subr.mxu0 0.0
    %525 = vmatpush1.msra.mxu0 0.0
    %526 = vmatprep.subr.mxu0 0.0
    %527 = vmatpush1.msra.mxu0 0.0
    %528 = vmatprep.subr.mxu0 0.0
    %529 = vmatpush1.msra.mxu0 0.0
    %530 = vmatprep.subr.mxu0 0.0
    %531 = vmatpush1.msra.mxu0 0.0
    %532 = vmatprep.subr.mxu0 0.0
    %533 = vmatpush1.msra.mxu0 0.0
    %534 = vmatprep.subr.mxu0 0.0
    %535 = vmatpush1.msra.mxu0 0.0
    %536 = vmatprep.subr.mxu0 0.0
    %537 = vmatpush1.msra.mxu0 0.0
    %538 = vmatprep.subr.mxu0 0.0
    %539 = vmatpush1.msra.mxu0 0.0
    %540 = vmatprep.mubr.f32.mxu0 0.0
    %541 = vmatmul.mubr.f32.gmra.mrb[0].mxu0 %v474
    %v542 = vpop.f32.mrb[0].mxu0
    %v543 = vadd.f32 %v470, %v542
    %v544 = vpop.f32.mrb[0].mxu0
    %545 = vdwg.mxu0
    %v546 = vadd.f32 %v465, %v543
    %v547 = vxor.u32 %v546, 2147483648
    %v548 = vmul.f32 %v547, 1.442695
    %v549 = vpow.pop %v548
    %v550 = vadd.f32 %v549, 1.0
    %v551 = vrcp.pop %v550
    %v552 = vmul.f32 1.0, %v551
    %554 = vrot.lane.b32.xlu0 %v543, 64
    %v555 = vpop.permute.xlu0 %554
    %v557 = vmul.f32 %v552, %v555
    %559 = vrot.lane.b32.xlu0 %v557, 64
    %v560 = vpop.permute.xlu0 %559
    %v562 = vadd.f32 %v465, %v560
    %v563 = vtanh.pop %v562
    %v564 = vsub.f32 1.0, %v552
    %566 = vrot.lane.b32.xlu0 %v563, 96
    %v567 = vpop.permute.xlu0 %566
    %v569 = vmul.f32 %v564, %v567
    %v570 = vmul.f32 %v552, 0.0
    %v571 = vadd.f32 %v569, %v570
    %573 = vrot.lane.b32.xlu0 %v571, 96
    %v574 = vpop.permute.xlu0 %573
    %576 = vst.msk [vmem:[#allocation15] sm:$0xff] %vm472, %v574
    %s577 = scalar_lea.vmem [#allocation2], 8
    %v578 = vld [vmem:[%s577] sm:$0xff]
    %v579 = vsel %vm472, %v574, 0
    %581 = vmatprep.subr.mxu0 0.0
    %582 = vmatpush1.msra.mxu0 %v460
    %583 = vmatprep.subr.mxu0 0.0
    %584 = vmatpush1.msra.mxu0 %v461
    %585 = vmatprep.subr.mxu0 0.0
    %586 = vmatpush1.msra.mxu0 %v462
    %587 = vmatprep.subr.mxu0 0.0
    %588 = vmatpush1.msra.mxu0 %v463
    %589 = vmatprep.subr.mxu0 0.0
    %590 = vmatpush1.msra.mxu0 0.0
    %591 = vmatprep.subr.mxu0 0.0
    %592 = vmatpush1.msra.mxu0 0.0
    %593 = vmatprep.subr.mxu0 0.0
    %594 = vmatpush1.msra.mxu0 0.0
    %595 = vmatprep.subr.mxu0 0.0
    %596 = vmatpush1.msra.mxu0 0.0
    %597 = vmatprep.subr.mxu0 0.0
    %598 = vmatpush1.msra.mxu0 0.0
    %599 = vmatprep.subr.mxu0 0.0
    %600 = vmatpush1.msra.mxu0 0.0
    %601 = vmatprep.subr.mxu0 0.0
    %602 = vmatpush1.msra.mxu0 0.0
    %603 = vmatprep.subr.mxu0 0.0
    %604 = vmatpush1.msra.mxu0 0.0
    %605 = vmatprep.subr.mxu0 0.0
    %606 = vmatpush1.msra.mxu0 0.0
    %607 = vmatprep.subr.mxu0 0.0
    %608 = vmatpush1.msra.mxu0 0.0
    %609 = vmatprep.subr.mxu0 0.0
    %610 = vmatpush1.msra.mxu0 0.0
    %611 = vmatprep.subr.mxu0 0.0
    %612 = vmatpush1.msra.mxu0 0.0
    %613 = vmatprep.subr.mxu0 0.0
    %614 = vmatpush1.msra.mxu0 0.0
    %615 = vmatprep.subr.mxu0 0.0
    %616 = vmatpush1.msra.mxu0 0.0
    %617 = vmatprep.subr.mxu0 0.0
    %618 = vmatpush1.msra.mxu0 0.0
    %619 = vmatprep.subr.mxu0 0.0
    %620 = vmatpush1.msra.mxu0 0.0
    %621 = vmatprep.subr.mxu0 0.0
    %622 = vmatpush1.msra.mxu0 0.0
    %623 = vmatprep.subr.mxu0 0.0
    %624 = vmatpush1.msra.mxu0 0.0
    %625 = vmatprep.subr.mxu0 0.0
    %626 = vmatpush1.msra.mxu0 0.0
    %627 = vmatprep.subr.mxu0 0.0
    %628 = vmatpush1.msra.mxu0 0.0
    %629 = vmatprep.subr.mxu0 0.0
    %630 = vmatpush1.msra.mxu0 0.0
    %631 = vmatprep.subr.mxu0 0.0
    %632 = vmatpush1.msra.mxu0 0.0
    %633 = vmatprep.subr.mxu0 0.0
    %634 = vmatpush1.msra.mxu0 0.0
    %635 = vmatprep.subr.mxu0 0.0
    %636 = vmatpush1.msra.mxu0 0.0
    %637 = vmatprep.subr.mxu0 0.0
    %638 = vmatpush1.msra.mxu0 0.0
    %639 = vmatprep.subr.mxu0 0.0
    %640 = vmatpush1.msra.mxu0 0.0
    %641 = vmatprep.subr.mxu0 0.0
    %642 = vmatpush1.msra.mxu0 0.0
    %643 = vmatprep.subr.mxu0 0.0
    %644 = vmatpush1.msra.mxu0 0.0
    %645 = vmatprep.mubr.f32.mxu0 0.0
    %646 = vmatmul.mubr.f32.gmra.mrb[0].mxu0 %v579
    %v647 = vpop.f32.mrb[0].mxu0
    %v648 = vadd.f32 %v470, %v647
    %v649 = vpop.f32.mrb[0].mxu0
    %650 = vdwg.mxu0
    %v651 = vadd.f32 %v578, %v648
    %v652 = vxor.u32 %v651, 2147483648
    %v653 = vmul.f32 %v652, 1.442695
    %v654 = vpow.pop %v653
    %v655 = vadd.f32 %v654, 1.0
    %v656 = vrcp.pop %v655
    %v657 = vmul.f32 1.0, %v656
    %659 = vrot.lane.b32.xlu0 %v648, 64
    %v660 = vpop.permute.xlu0 %659
    %v662 = vmul.f32 %v657, %v660
    %664 = vrot.lane.b32.xlu0 %v662, 64
    %v665 = vpop.permute.xlu0 %664
    %v667 = vadd.f32 %v578, %v665
    %v668 = vtanh.pop %v667
    %v669 = vsub.f32 1.0, %v657
    %671 = vrot.lane.b32.xlu0 %v668, 96
    %v672 = vpop.permute.xlu0 %671
    %v674 = vmul.f32 %v669, %v672
    %v675 = vmul.f32 %v657, %v571
    %v676 = vadd.f32 %v674, %v675
    %678 = vrot.lane.b32.xlu0 %v676, 96
    %v679 = vpop.permute.xlu0 %678
    %s681 = scalar_lea.vmem [#allocation15], 8
    %682 = vst.msk [vmem:[%s681] sm:$0xff] %vm472, %v679
    %s683 = scalar_lea.vmem [#allocation2], 16
    %v684 = vld [vmem:[%s683] sm:$0xff]
    %v685 = vsel %vm472, %v679, 0
    %687 = vmatprep.subr.mxu0 0.0
    %688 = vmatpush1.msra.mxu0 %v460
    %689 = vmatprep.subr.mxu0 0.0
    %690 = vmatpush1.msra.mxu0 %v461
    %691 = vmatprep.subr.mxu0 0.0
    %692 = vmatpush1.msra.mxu0 %v462
    %693 = vmatprep.subr.mxu0 0.0
    %694 = vmatpush1.msra.mxu0 %v463
    %695 = vmatprep.subr.mxu0 0.0
    %696 = vmatpush1.msra.mxu0 0.0
    %697 = vmatprep.subr.mxu0 0.0
    %698 = vmatpush1.msra.mxu0 0.0
    %699 = vmatprep.subr.mxu0 0.0
    %700 = vmatpush1.msra.mxu0 0.0
    %701 = vmatprep.subr.mxu0 0.0
    %702 = vmatpush1.msra.mxu0 0.0
    %703 = vmatprep.subr.mxu0 0.0
    %704 = vmatpush1.msra.mxu0 0.0
    %705 = vmatprep.subr.mxu0 0.0
    %706 = vmatpush1.msra.mxu0 0.0
    %707 = vmatprep.subr.mxu0 0.0
    %708 = vmatpush1.msra.mxu0 0.0
    %709 = vmatprep.subr.mxu0 0.0
    %710 = vmatpush1.msra.mxu0 0.0
    %711 = vmatprep.subr.mxu0 0.0
    %712 = vmatpush1.msra.mxu0 0.0
    %713 = vmatprep.subr.mxu0 0.0
    %714 = vmatpush1.msra.mxu0 0.0
    %715 = vmatprep.subr.mxu0 0.0
    %716 = vmatpush1.msra.mxu0 0.0
    %717 = vmatprep.subr.mxu0 0.0
    %718 = vmatpush1.msra.mxu0 0.0
    %719 = vmatprep.subr.mxu0 0.0
    %720 = vmatpush1.msra.mxu0 0.0
    %721 = vmatprep.subr.mxu0 0.0
    %722 = vmatpush1.msra.mxu0 0.0
    %723 = vmatprep.subr.mxu0 0.0
    %724 = vmatpush1.msra.mxu0 0.0
    %725 = vmatprep.subr.mxu0 0.0
    %726 = vmatpush1.msra.mxu0 0.0
    %727 = vmatprep.subr.mxu0 0.0
    %728 = vmatpush1.msra.mxu0 0.0
    %729 = vmatprep.subr.mxu0 0.0
    %730 = vmatpush1.msra.mxu0 0.0
    %731 = vmatprep.subr.mxu0 0.0
    %732 = vmatpush1.msra.mxu0 0.0
    %733 = vmatprep.subr.mxu0 0.0
    %734 = vmatpush1.msra.mxu0 0.0
    %735 = vmatprep.subr.mxu0 0.0
    %736 = vmatpush1.msra.mxu0 0.0
    %737 = vmatprep.subr.mxu0 0.0
    %738 = vmatpush1.msra.mxu0 0.0
    %739 = vmatprep.subr.mxu0 0.0
    %740 = vmatpush1.msra.mxu0 0.0
    %741 = vmatprep.subr.mxu0 0.0
    %742 = vmatpush1.msra.mxu0 0.0
    %743 = vmatprep.subr.mxu0 0.0
    %744 = vmatpush1.msra.mxu0 0.0
    %745 = vmatprep.subr.mxu0 0.0
    %746 = vmatpush1.msra.mxu0 0.0
    %747 = vmatprep.subr.mxu0 0.0
    %748 = vmatpush1.msra.mxu0 0.0
    %749 = vmatprep.subr.mxu0 0.0
    %750 = vmatpush1.msra.mxu0 0.0
    %751 = vmatprep.mubr.f32.mxu0 0.0
    %752 = vmatmul.mubr.f32.gmra.mrb[0].mxu0 %v685
    %v753 = vpop.f32.mrb[0].mxu0
    %v754 = vadd.f32 %v470, %v753
    %v755 = vpop.f32.mrb[0].mxu0
    %756 = vdwg.mxu0
    %v757 = vadd.f32 %v684, %v754
    %v758 = vxor.u32 %v757, 2147483648
    %v759 = vmul.f32 %v758, 1.442695
    %v760 = vpow.pop %v759
    %v761 = vadd.f32 %v760, 1.0
    %v762 = vrcp.pop %v761
    %v763 = vmul.f32 1.0, %v762
    %765 = vrot.lane.b32.xlu0 %v754, 64
    %v766 = vpop.permute.xlu0 %765
    %v768 = vmul.f32 %v763, %v766
    %770 = vrot.lane.b32.xlu0 %v768, 64
    %v771 = vpop.permute.xlu0 %770
    %v773 = vadd.f32 %v684, %v771
    %v774 = vtanh.pop %v773
    %v775 = vsub.f32 1.0, %v763
    %777 = vrot.lane.b32.xlu0 %v774, 96
    %v778 = vpop.permute.xlu0 %777
    %v780 = vmul.f32 %v775, %v778
    %v781 = vmul.f32 %v763, %v676
    %v782 = vadd.f32 %v780, %v781
    %784 = vrot.lane.b32.xlu0 %v782, 96
    %v785 = vpop.permute.xlu0 %784
    %s787 = scalar_lea.vmem [#allocation15], 16
    %788 = vst.msk [vmem:[%s787] sm:$0xff] %vm472, %v785
    %s789 = scalar_lea.vmem [#allocation2], 24
    %v790 = vld [vmem:[%s789] sm:$0xff]
    %v791 = vsel %vm472, %v785, 0
    %793 = vmatprep.subr.mxu0 0.0
    %794 = vmatpush1.msra.mxu0 %v460
    %795 = vmatprep.subr.mxu0 0.0
    %796 = vmatpush1.msra.mxu0 %v461
    %797 = vmatprep.subr.mxu0 0.0
    %798 = vmatpush1.msra.mxu0 %v462
    %799 = vmatprep.subr.mxu0 0.0
    %800 = vmatpush1.msra.mxu0 %v463
    %801 = vmatprep.subr.mxu0 0.0
    %802 = vmatpush1.msra.mxu0 0.0
    %803 = vmatprep.subr.mxu0 0.0
    %804 = vmatpush1.msra.mxu0 0.0
    %805 = vmatprep.subr.mxu0 0.0
    %806 = vmatpush1.msra.mxu0 0.0
    %807 = vmatprep.subr.mxu0 0.0
    %808 = vmatpush1.msra.mxu0 0.0
    %809 = vmatprep.subr.mxu0 0.0
    %810 = vmatpush1.msra.mxu0 0.0
    %811 = vmatprep.subr.mxu0 0.0
    %812 = vmatpush1.msra.mxu0 0.0
    %813 = vmatprep.subr.mxu0 0.0
    %814 = vmatpush1.msra.mxu0 0.0
    %815 = vmatprep.subr.mxu0 0.0
    %816 = vmatpush1.msra.mxu0 0.0
    %817 = vmatprep.subr.mxu0 0.0
    %818 = vmatpush1.msra.mxu0 0.0
    %819 = vmatprep.subr.mxu0 0.0
    %820 = vmatpush1.msra.mxu0 0.0
    %821 = vmatprep.subr.mxu0 0.0
    %822 = vmatpush1.msra.mxu0 0.0
    %823 = vmatprep.subr.mxu0 0.0
    %824 = vmatpush1.msra.mxu0 0.0
    %825 = vmatprep.subr.mxu0 0.0
    %826 = vmatpush1.msra.mxu0 0.0
    %827 = vmatprep.subr.mxu0 0.0
    %828 = vmatpush1.msra.mxu0 0.0
    %829 = vmatprep.subr.mxu0 0.0
    %830 = vmatpush1.msra.mxu0 0.0
    %831 = vmatprep.subr.mxu0 0.0
    %832 = vmatpush1.msra.mxu0 0.0
    %833 = vmatprep.subr.mxu0 0.0
    %834 = vmatpush1.msra.mxu0 0.0
    %835 = vmatprep.subr.mxu0 0.0
    %836 = vmatpush1.msra.mxu0 0.0
    %837 = vmatprep.subr.mxu0 0.0
    %838 = vmatpush1.msra.mxu0 0.0
    %839 = vmatprep.subr.mxu0 0.0
    %840 = vmatpush1.msra.mxu0 0.0
    %841 = vmatprep.subr.mxu0 0.0
    %842 = vmatpush1.msra.mxu0 0.0
    %843 = vmatprep.subr.mxu0 0.0
    %844 = vmatpush1.msra.mxu0 0.0
    %845 = vmatprep.subr.mxu0 0.0
    %846 = vmatpush1.msra.mxu0 0.0
    %847 = vmatprep.subr.mxu0 0.0
    %848 = vmatpush1.msra.mxu0 0.0
    %849 = vmatprep.subr.mxu0 0.0
    %850 = vmatpush1.msra.mxu0 0.0
    %851 = vmatprep.subr.mxu0 0.0
    %852 = vmatpush1.msra.mxu0 0.0
    %853 = vmatprep.subr.mxu0 0.0
    %854 = vmatpush1.msra.mxu0 0.0
    %855 = vmatprep.subr.mxu0 0.0
    %856 = vmatpush1.msra.mxu0 0.0
    %857 = vmatprep.mubr.f32.mxu0 0.0
    %858 = vmatmul.mubr.f32.gmra.mrb[0].mxu0 %v791
    %v859 = vpop.f32.mrb[0].mxu0
    %v860 = vadd.f32 %v470, %v859
    %v861 = vpop.f32.mrb[0].mxu0
    %862 = vdwg.mxu0
    %v863 = vadd.f32 %v790, %v860
    %v864 = vxor.u32 %v863, 2147483648
    %v865 = vmul.f32 %v864, 1.442695
    %v866 = vpow.pop %v865
    %v867 = vadd.f32 %v866, 1.0
    %v868 = vrcp.pop %v867
    %v869 = vmul.f32 1.0, %v868
    %871 = vrot.lane.b32.xlu0 %v860, 64
    %v872 = vpop.permute.xlu0 %871
    %v874 = vmul.f32 %v869, %v872
    %876 = vrot.lane.b32.xlu0 %v874, 64
    %v877 = vpop.permute.xlu0 %876
    %v879 = vadd.f32 %v790, %v877
    %v880 = vtanh.pop %v879
    %v881 = vsub.f32 1.0, %v869
    %883 = vrot.lane.b32.xlu0 %v880, 96
    %v884 = vpop.permute.xlu0 %883
    %v886 = vmul.f32 %v881, %v884
    %v887 = vmul.f32 %v869, %v782
    %v888 = vadd.f32 %v886, %v887
    %890 = vrot.lane.b32.xlu0 %v888, 96
    %v891 = vpop.permute.xlu0 %890
    %s893 = scalar_lea.vmem [#allocation15], 24
    %894 = vst.msk [vmem:[%s893] sm:$0xff] %vm472, %v891
    %s895 = scalar_lea.vmem [#allocation2], 32
    %v896 = vld [vmem:[%s895] sm:$0xff]
    %v897 = vsel %vm472, %v891, 0
    %899 = vmatprep.subr.mxu0 0.0
    %900 = vmatpush1.msra.mxu0 %v460
    %901 = vmatprep.subr.mxu0 0.0
    %902 = vmatpush1.msra.mxu0 %v461
    %903 = vmatprep.subr.mxu0 0.0
    %904 = vmatpush1.msra.mxu0 %v462
    %905 = vmatprep.subr.mxu0 0.0
    %906 = vmatpush1.msra.mxu0 %v463
    %907 = vmatprep.subr.mxu0 0.0
    %908 = vmatpush1.msra.mxu0 0.0
    %909 = vmatprep.subr.mxu0 0.0
    %910 = vmatpush1.msra.mxu0 0.0
    %911 = vmatprep.subr.mxu0 0.0
    %912 = vmatpush1.msra.mxu0 0.0
    %913 = vmatprep.subr.mxu0 0.0
    %914 = vmatpush1.msra.mxu0 0.0
    %915 = vmatprep.subr.mxu0 0.0
    %916 = vmatpush1.msra.mxu0 0.0
    %917 = vmatprep.subr.mxu0 0.0
    %918 = vmatpush1.msra.mxu0 0.0
    %919 = vmatprep.subr.mxu0 0.0
    %920 = vmatpush1.msra.mxu0 0.0
    %921 = vmatprep.subr.mxu0 0.0
    %922 = vmatpush1.msra.mxu0 0.0
    %923 = vmatprep.subr.mxu0 0.0
    %924 = vmatpush1.msra.mxu0 0.0
    %925 = vmatprep.subr.mxu0 0.0
    %926 = vmatpush1.msra.mxu0 0.0
    %927 = vmatprep.subr.mxu0 0.0
    %928 = vmatpush1.msra.mxu0 0.0
    %929 = vmatprep.subr.mxu0 0.0
    %930 = vmatpush1.msra.mxu0 0.0
    %931 = vmatprep.subr.mxu0 0.0
    %932 = vmatpush1.msra.mxu0 0.0
    %933 = vmatprep.subr.mxu0 0.0
    %934 = vmatpush1.msra.mxu0 0.0
    %935 = vmatprep.subr.mxu0 0.0
    %936 = vmatpush1.msra.mxu0 0.0
    %937 = vmatprep.subr.mxu0 0.0
    %938 = vmatpush1.msra.mxu0 0.0
    %939 = vmatprep.subr.mxu0 0.0
    %940 = vmatpush1.msra.mxu0 0.0
    %941 = vmatprep.subr.mxu0 0.0
    %942 = vmatpush1.msra.mxu0 0.0
    %943 = vmatprep.subr.mxu0 0.0
    %944 = vmatpush1.msra.mxu0 0.0
    %945 = vmatprep.subr.mxu0 0.0
    %946 = vmatpush1.msra.mxu0 0.0
    %947 = vmatprep.subr.mxu0 0.0
    %948 = vmatpush1.msra.mxu0 0.0
    %949 = vmatprep.subr.mxu0 0.0
    %950 = vmatpush1.msra.mxu0 0.0
    %951 = vmatprep.subr.mxu0 0.0
    %952 = vmatpush1.msra.mxu0 0.0
    %953 = vmatprep.subr.mxu0 0.0
    %954 = vmatpush1.msra.mxu0 0.0
    %955 = vmatprep.subr.mxu0 0.0
    %956 = vmatpush1.msra.mxu0 0.0
    %957 = vmatprep.subr.mxu0 0.0
    %958 = vmatpush1.msra.mxu0 0.0
    %959 = vmatprep.subr.mxu0 0.0
    %960 = vmatpush1.msra.mxu0 0.0
    %961 = vmatprep.subr.mxu0 0.0
    %962 = vmatpush1.msra.mxu0 0.0
    %963 = vmatprep.mubr.f32.mxu0 0.0
    %964 = vmatmul.mubr.f32.gmra.mrb[0].mxu0 %v897
    %v965 = vpop.f32.mrb[0].mxu0
    %v966 = vadd.f32 %v470, %v965
    %v967 = vpop.f32.mrb[0].mxu0
    %968 = vdwg.mxu0
    %v969 = vadd.f32 %v896, %v966
    %v970 = vxor.u32 %v969, 2147483648
    %v971 = vmul.f32 %v970, 1.442695
    %v972 = vpow.pop %v971
    %v973 = vadd.f32 %v972, 1.0
    %v974 = vrcp.pop %v973
    %v975 = vmul.f32 1.0, %v974
    %977 = vrot.lane.b32.xlu0 %v966, 64
    %v978 = vpop.permute.xlu0 %977
    %v980 = vmul.f32 %v975, %v978
    %982 = vrot.lane.b32.xlu0 %v980, 64
    %v983 = vpop.permute.xlu0 %982
    %v985 = vadd.f32 %v896, %v983
    %v986 = vtanh.pop %v985
    %v987 = vsub.f32 1.0, %v975
    %989 = vrot.lane.b32.xlu0 %v986, 96
    %v990 = vpop.permute.xlu0 %989
    %v992 = vmul.f32 %v987, %v990
    %v993 = vmul.f32 %v975, %v888
    %v994 = vadd.f32 %v992, %v993
    %996 = vrot.lane.b32.xlu0 %v994, 96
    %v997 = vpop.permute.xlu0 %996
    %s999 = scalar_lea.vmem [#allocation15], 32
    %1000 = vst.msk [vmem:[%s999] sm:$0xff] %vm472, %v997
    %s1001 = scalar_lea.vmem [#allocation2], 40
    %v1002 = vld [vmem:[%s1001] sm:$0xff]
    %v1003 = vsel %vm472, %v997, 0
    %1005 = vmatprep.subr.mxu0 0.0
    %1006 = vmatpush1.msra.mxu0 %v460
    %1007 = vmatprep.subr.mxu0 0.0
    %1008 = vmatpush1.msra.mxu0 %v461
    %1009 = vmatprep.subr.mxu0 0.0
    %1010 = vmatpush1.msra.mxu0 %v462
    %1011 = vmatprep.subr.mxu0 0.0
    %1012 = vmatpush1.msra.mxu0 %v463
    %1013 = vmatprep.subr.mxu0 0.0
    %1014 = vmatpush1.msra.mxu0 0.0
    %1015 = vmatprep.subr.mxu0 0.0
    %1016 = vmatpush1.msra.mxu0 0.0
    %1017 = vmatprep.subr.mxu0 0.0
    %1018 = vmatpush1.msra.mxu0 0.0
    %1019 = vmatprep.subr.mxu0 0.0
    %1020 = vmatpush1.msra.mxu0 0.0
    %1021 = vmatprep.subr.mxu0 0.0
    %1022 = vmatpush1.msra.mxu0 0.0
    %1023 = vmatprep.subr.mxu0 0.0
    %1024 = vmatpush1.msra.mxu0 0.0
    %1025 = vmatprep.subr.mxu0 0.0
    %1026 = vmatpush1.msra.mxu0 0.0
    %1027 = vmatprep.subr.mxu0 0.0
    %1028 = vmatpush1.msra.mxu0 0.0
    %1029 = vmatprep.subr.mxu0 0.0
    %1030 = vmatpush1.msra.mxu0 0.0
    %1031 = vmatprep.subr.mxu0 0.0
    %1032 = vmatpush1.msra.mxu0 0.0
    %1033 = vmatprep.subr.mxu0 0.0
    %1034 = vmatpush1.msra.mxu0 0.0
    %1035 = vmatprep.subr.mxu0 0.0
    %1036 = vmatpush1.msra.mxu0 0.0
    %1037 = vmatprep.subr.mxu0 0.0
    %1038 = vmatpush1.msra.mxu0 0.0
    %1039 = vmatprep.subr.mxu0 0.0
    %1040 = vmatpush1.msra.mxu0 0.0
    %1041 = vmatprep.subr.mxu0 0.0
    %1042 = vmatpush1.msra.mxu0 0.0
    %1043 = vmatprep.subr.mxu0 0.0
    %1044 = vmatpush1.msra.mxu0 0.0
    %1045 = vmatprep.subr.mxu0 0.0
    %1046 = vmatpush1.msra.mxu0 0.0
    %1047 = vmatprep.subr.mxu0 0.0
    %1048 = vmatpush1.msra.mxu0 0.0
    %1049 = vmatprep.subr.mxu0 0.0
    %1050 = vmatpush1.msra.mxu0 0.0
    %1051 = vmatprep.subr.mxu0 0.0
    %1052 = vmatpush1.msra.mxu0 0.0
    %1053 = vmatprep.subr.mxu0 0.0
    %1054 = vmatpush1.msra.mxu0 0.0
    %1055 = vmatprep.subr.mxu0 0.0
    %1056 = vmatpush1.msra.mxu0 0.0
    %1057 = vmatprep.subr.mxu0 0.0
    %1058 = vmatpush1.msra.mxu0 0.0
    %1059 = vmatprep.subr.mxu0 0.0
    %1060 = vmatpush1.msra.mxu0 0.0
    %1061 = vmatprep.subr.mxu0 0.0
    %1062 = vmatpush1.msra.mxu0 0.0
    %1063 = vmatprep.subr.mxu0 0.0
    %1064 = vmatpush1.msra.mxu0 0.0
    %1065 = vmatprep.subr.mxu0 0.0
    %1066 = vmatpush1.msra.mxu0 0.0
    %1067 = vmatprep.subr.mxu0 0.0
    %1068 = vmatpush1.msra.mxu0 0.0
    %1069 = vmatprep.mubr.f32.mxu0 0.0
    %1070 = vmatmul.mubr.f32.gmra.mrb[0].mxu0 %v1003
    %v1071 = vpop.f32.mrb[0].mxu0
    %v1072 = vadd.f32 %v470, %v1071
    %v1073 = vpop.f32.mrb[0].mxu0
    %1074 = vdwg.mxu0
    %v1075 = vadd.f32 %v1002, %v1072
    %v1076 = vxor.u32 %v1075, 2147483648
    %v1077 = vmul.f32 %v1076, 1.442695
    %v1078 = vpow.pop %v1077
    %v1079 = vadd.f32 %v1078, 1.0
    %v1080 = vrcp.pop %v1079
    %v1081 = vmul.f32 1.0, %v1080
    %1083 = vrot.lane.b32.xlu0 %v1072, 64
    %v1084 = vpop.permute.xlu0 %1083
    %v1086 = vmul.f32 %v1081, %v1084
    %1088 = vrot.lane.b32.xlu0 %v1086, 64
    %v1089 = vpop.permute.xlu0 %1088
    %v1091 = vadd.f32 %v1002, %v1089
    %v1092 = vtanh.pop %v1091
    %v1093 = vsub.f32 1.0, %v1081
    %1095 = vrot.lane.b32.xlu0 %v1092, 96
    %v1096 = vpop.permute.xlu0 %1095
    %v1098 = vmul.f32 %v1093, %v1096
    %v1099 = vmul.f32 %v1081, %v994
    %v1100 = vadd.f32 %v1098, %v1099
    %1102 = vrot.lane.b32.xlu0 %v1100, 96
    %v1103 = vpop.permute.xlu0 %1102
    %s1105 = scalar_lea.vmem [#allocation15], 40
    %1106 = vst.msk [vmem:[%s1105] sm:$0xff] %vm472, %v1103
    %s1107 = scalar_lea.vmem [#allocation2], 48
    %v1108 = vld [vmem:[%s1107] sm:$0xff]
    %v1109 = vsel %vm472, %v1103, 0
    %1111 = vmatprep.subr.mxu0 0.0
    %1112 = vmatpush1.msra.mxu0 %v460
    %1113 = vmatprep.subr.mxu0 0.0
    %1114 = vmatpush1.msra.mxu0 %v461
    %1115 = vmatprep.subr.mxu0 0.0
    %1116 = vmatpush1.msra.mxu0 %v462
    %1117 = vmatprep.subr.mxu0 0.0
    %1118 = vmatpush1.msra.mxu0 %v463
    %1119 = vmatprep.subr.mxu0 0.0
    %1120 = vmatpush1.msra.mxu0 0.0
    %1121 = vmatprep.subr.mxu0 0.0
    %1122 = vmatpush1.msra.mxu0 0.0
    %1123 = vmatprep.subr.mxu0 0.0
    %1124 = vmatpush1.msra.mxu0 0.0
    %1125 = vmatprep.subr.mxu0 0.0
    %1126 = vmatpush1.msra.mxu0 0.0
    %1127 = vmatprep.subr.mxu0 0.0
    %1128 = vmatpush1.msra.mxu0 0.0
    %1129 = vmatprep.subr.mxu0 0.0
    %1130 = vmatpush1.msra.mxu0 0.0
    %1131 = vmatprep.subr.mxu0 0.0
    %1132 = vmatpush1.msra.mxu0 0.0
    %1133 = vmatprep.subr.mxu0 0.0
    %1134 = vmatpush1.msra.mxu0 0.0
    %1135 = vmatprep.subr.mxu0 0.0
    %1136 = vmatpush1.msra.mxu0 0.0
    %1137 = vmatprep.subr.mxu0 0.0
    %1138 = vmatpush1.msra.mxu0 0.0
    %1139 = vmatprep.subr.mxu0 0.0
    %1140 = vmatpush1.msra.mxu0 0.0
    %1141 = vmatprep.subr.mxu0 0.0
    %1142 = vmatpush1.msra.mxu0 0.0
    %1143 = vmatprep.subr.mxu0 0.0
    %1144 = vmatpush1.msra.mxu0 0.0
    %1145 = vmatprep.subr.mxu0 0.0
    %1146 = vmatpush1.msra.mxu0 0.0
    %1147 = vmatprep.subr.mxu0 0.0
    %1148 = vmatpush1.msra.mxu0 0.0
    %1149 = vmatprep.subr.mxu0 0.0
    %1150 = vmatpush1.msra.mxu0 0.0
    %1151 = vmatprep.subr.mxu0 0.0
    %1152 = vmatpush1.msra.mxu0 0.0
    %1153 = vmatprep.subr.mxu0 0.0
    %1154 = vmatpush1.msra.mxu0 0.0
    %1155 = vmatprep.subr.mxu0 0.0
    %1156 = vmatpush1.msra.mxu0 0.0
    %1157 = vmatprep.subr.mxu0 0.0
    %1158 = vmatpush1.msra.mxu0 0.0
    %1159 = vmatprep.subr.mxu0 0.0
    %1160 = vmatpush1.msra.mxu0 0.0
    %1161 = vmatprep.subr.mxu0 0.0
    %1162 = vmatpush1.msra.mxu0 0.0
    %1163 = vmatprep.subr.mxu0 0.0
    %1164 = vmatpush1.msra.mxu0 0.0
    %1165 = vmatprep.subr.mxu0 0.0
    %1166 = vmatpush1.msra.mxu0 0.0
    %1167 = vmatprep.subr.mxu0 0.0
    %1168 = vmatpush1.msra.mxu0 0.0
    %1169 = vmatprep.subr.mxu0 0.0
    %1170 = vmatpush1.msra.mxu0 0.0
    %1171 = vmatprep.subr.mxu0 0.0
    %1172 = vmatpush1.msra.mxu0 0.0
    %1173 = vmatprep.subr.mxu0 0.0
    %1174 = vmatpush1.msra.mxu0 0.0
    %1175 = vmatprep.mubr.f32.mxu0 0.0
    %1176 = vmatmul.mubr.f32.gmra.mrb[0].mxu0 %v1109
    %v1177 = vpop.f32.mrb[0].mxu0
    %v1178 = vadd.f32 %v470, %v1177
    %v1179 = vpop.f32.mrb[0].mxu0
    %1180 = vdwg.mxu0
    %v1181 = vadd.f32 %v1108, %v1178
    %v1182 = vxor.u32 %v1181, 2147483648
    %v1183 = vmul.f32 %v1182, 1.442695
    %v1184 = vpow.pop %v1183
    %v1185 = vadd.f32 %v1184, 1.0
    %v1186 = vrcp.pop %v1185
    %v1187 = vmul.f32 1.0, %v1186
    %1189 = vrot.lane.b32.xlu0 %v1178, 64
    %v1190 = vpop.permute.xlu0 %1189
    %v1192 = vmul.f32 %v1187, %v1190
    %1194 = vrot.lane.b32.xlu0 %v1192, 64
    %v1195 = vpop.permute.xlu0 %1194
    %v1197 = vadd.f32 %v1108, %v1195
    %v1198 = vtanh.pop %v1197
    %v1199 = vsub.f32 1.0, %v1187
    %1201 = vrot.lane.b32.xlu0 %v1198, 96
    %v1202 = vpop.permute.xlu0 %1201
    %v1204 = vmul.f32 %v1199, %v1202
    %v1205 = vmul.f32 %v1187, %v1100
    %v1206 = vadd.f32 %v1204, %v1205
    %1208 = vrot.lane.b32.xlu0 %v1206, 96
    %v1209 = vpop.permute.xlu0 %1208
    %s1211 = scalar_lea.vmem [#allocation15], 48
    %1212 = vst.msk [vmem:[%s1211] sm:$0xff] %vm472, %v1209
    %s1213 = scalar_lea.vmem [#allocation2], 56
    %v1214 = vld [vmem:[%s1213] sm:$0xff]
    %v1215 = vsel %vm472, %v1209, 0
    %1217 = vmatprep.subr.mxu0 0.0
    %1218 = vmatpush1.msra.mxu0 %v460
    %1219 = vmatprep.subr.mxu0 0.0
    %1220 = vmatpush1.msra.mxu0 %v461
    %1221 = vmatprep.subr.mxu0 0.0
    %1222 = vmatpush1.msra.mxu0 %v462
    %1223 = vmatprep.subr.mxu0 0.0
    %1224 = vmatpush1.msra.mxu0 %v463
    %1225 = vmatprep.subr.mxu0 0.0
    %1226 = vmatpush1.msra.mxu0 0.0
    %1227 = vmatprep.subr.mxu0 0.0
    %1228 = vmatpush1.msra.mxu0 0.0
    %1229 = vmatprep.subr.mxu0 0.0
    %1230 = vmatpush1.msra.mxu0 0.0
    %1231 = vmatprep.subr.mxu0 0.0
    %1232 = vmatpush1.msra.mxu0 0.0
    %1233 = vmatprep.subr.mxu0 0.0
    %1234 = vmatpush1.msra.mxu0 0.0
    %1235 = vmatprep.subr.mxu0 0.0
    %1236 = vmatpush1.msra.mxu0 0.0
    %1237 = vmatprep.subr.mxu0 0.0
    %1238 = vmatpush1.msra.mxu0 0.0
    %1239 = vmatprep.subr.mxu0 0.0
    %1240 = vmatpush1.msra.mxu0 0.0
    %1241 = vmatprep.subr.mxu0 0.0
    %1242 = vmatpush1.msra.mxu0 0.0
    %1243 = vmatprep.subr.mxu0 0.0
    %1244 = vmatpush1.msra.mxu0 0.0
    %1245 = vmatprep.subr.mxu0 0.0
    %1246 = vmatpush1.msra.mxu0 0.0
    %1247 = vmatprep.subr.mxu0 0.0
    %1248 = vmatpush1.msra.mxu0 0.0
    %1249 = vmatprep.subr.mxu0 0.0
    %1250 = vmatpush1.msra.mxu0 0.0
    %1251 = vmatprep.subr.mxu0 0.0
    %1252 = vmatpush1.msra.mxu0 0.0
    %1253 = vmatprep.subr.mxu0 0.0
    %1254 = vmatpush1.msra.mxu0 0.0
    %1255 = vmatprep.subr.mxu0 0.0
    %1256 = vmatpush1.msra.mxu0 0.0
    %1257 = vmatprep.subr.mxu0 0.0
    %1258 = vmatpush1.msra.mxu0 0.0
    %1259 = vmatprep.subr.mxu0 0.0
    %1260 = vmatpush1.msra.mxu0 0.0
    %1261 = vmatprep.subr.mxu0 0.0
    %1262 = vmatpush1.msra.mxu0 0.0
    %1263 = vmatprep.subr.mxu0 0.0
    %1264 = vmatpush1.msra.mxu0 0.0
    %1265 = vmatprep.subr.mxu0 0.0
    %1266 = vmatpush1.msra.mxu0 0.0
    %1267 = vmatprep.subr.mxu0 0.0
    %1268 = vmatpush1.msra.mxu0 0.0
    %1269 = vmatprep.subr.mxu0 0.0
    %1270 = vmatpush1.msra.mxu0 0.0
    %1271 = vmatprep.subr.mxu0 0.0
    %1272 = vmatpush1.msra.mxu0 0.0
    %1273 = vmatprep.subr.mxu0 0.0
    %1274 = vmatpush1.msra.mxu0 0.0
    %1275 = vmatprep.subr.mxu0 0.0
    %1276 = vmatpush1.msra.mxu0 0.0
    %1277 = vmatprep.subr.mxu0 0.0
    %1278 = vmatpush1.msra.mxu0 0.0
    %1279 = vmatprep.subr.mxu0 0.0
    %1280 = vmatpush1.msra.mxu0 0.0
    %1281 = vmatprep.mubr.f32.mxu0 0.0
    %1282 = vmatmul.mubr.f32.gmra.mrb[0].mxu0 %v1215
    %v1283 = vpop.f32.mrb[0].mxu0
    %v1284 = vadd.f32 %v470, %v1283
    %v1285 = vpop.f32.mrb[0].mxu0
    %1286 = vdwg.mxu0
    %v1287 = vadd.f32 %v1214, %v1284
    %v1288 = vxor.u32 %v1287, 2147483648
    %v1289 = vmul.f32 %v1288, 1.442695
    %v1290 = vpow.pop %v1289
    %v1291 = vadd.f32 %v1290, 1.0
    %v1292 = vrcp.pop %v1291
    %v1293 = vmul.f32 1.0, %v1292
    %1295 = vrot.lane.b32.xlu0 %v1284, 64
    %v1296 = vpop.permute.xlu0 %1295
    %v1298 = vmul.f32 %v1293, %v1296
    %1300 = vrot.lane.b32.xlu0 %v1298, 64
    %v1301 = vpop.permute.xlu0 %1300
    %v1303 = vadd.f32 %v1214, %v1301
    %v1304 = vtanh.pop %v1303
    %v1305 = vsub.f32 1.0, %v1293
    %1307 = vrot.lane.b32.xlu0 %v1304, 96
    %v1308 = vpop.permute.xlu0 %1307
    %v1310 = vmul.f32 %v1305, %v1308
    %v1311 = vmul.f32 %v1293, %v1206
    %v1312 = vadd.f32 %v1310, %v1311
    %1314 = vrot.lane.b32.xlu0 %v1312, 96
    %v1315 = vpop.permute.xlu0 %1314
    %s1317 = scalar_lea.vmem [#allocation15], 56
    %1318 = vst.msk [vmem:[%s1317] sm:$0xff] %vm472, %v1315
    // Predicated region
    $region58: #{_lambda_.2} parent=1 // pred_check
      _
    $region59: #{_lambda_.2} parent=1 // pred_check_branch
      %1320 = sbr.rel (0) target = $region61
    $region60: #{_lambda_.2} parent=1 // pred_region
      %s1322 = ssub.s32 1024, 1024
      %1323 = vsyncadd [#allocation5], %s1322
      %s1324 = sshll.u32 [#allocation15], 4
      %s1325 = int_to_ptr.vmem [resolvable:$true] %s1324
      %1330 = dma.vmem_to_hbm [thread:$0]  %s1325, 1024, %s7, [#allocation5], 128, 128, 8
    $region61: #{_lambda_.2} parent=1 // pred_fallthru
      _
    // Predicated region
    $region62: #{_lambda_.2} parent=1 // pred_check
      _
    $region63: #{_lambda_.2} parent=1 // pred_check_branch
      %1332 = sbr.rel (0) target = $region65
    $region64: #{_lambda_.2} parent=1 // pred_region
      %1333 = dma.done [#allocation5], 1024
    $region65: #{_lambda_.2} parent=1 // pred_fallthru
      _
    %1334 = vsyncpa [#allocation4], 1
    %1335 = vsyncpa [#allocation7], 1
    %1336 = vsyncpa [#allocation10], 1
    %1337 = vsyncpa [#allocation13], 1
    %1338 = vsyncpa [#allocation5], 1

// kernel: _lambda_.3
$region0: #{_lambda_.3}
  #allocation0 [shape = 'u32[]', space=smem, size = 0x4, offset = 0x4, fixed_abs, tag = 'smem constant byte address 0x4 - core index']
  #allocation1 [shape = 'u32[144,128]{1,0:T(1,128)}', space=vmem, size = 0x12000, scoped, tag = 'internal scratch']
  %s0 = inlined_call_operand.hbm [shape: f32[16,32], index: 0, kind: input, shape index: {}]
  %s1 = inlined_call_operand.hbm [shape: f32[6,16,32], index: 1, kind: input, shape index: {}]
  %s2 = inlined_call_operand.hbm [shape: f32[32,32], index: 2, kind: input, shape index: {}]
  %s3 = inlined_call_operand.hbm [shape: f32[1,32], index: 3, kind: input, shape index: {}]
  %s4 = inlined_call_operand.hbm [shape: f32[32,64], index: 4, kind: input, shape index: {}]
  %s5 = inlined_call_operand.hbm [shape: f32[1,64], index: 5, kind: input, shape index: {}]
  %s6 = inlined_call_operand.hbm [shape: f32[32,32], index: 6, kind: input, shape index: {}]
  %s7 = inlined_call_operand.hbm [shape: f32[32,64], index: 7, kind: input, shape index: {}]
  %s8 = inlined_call_operand.hbm [shape: f32[1,64], index: 8, kind: input, shape index: {}]
  %s9 = inlined_call_operand.hbm [shape: f32[1,32], index: 9, kind: input, shape index: {}]
  %s10 = inlined_call_operand.hbm [shape: f32[1,32], index: 10, kind: input, shape index: {}]
  %s11 = inlined_call_operand.hbm [shape: f32[16,32], index: 11, kind: output, shape index: {}]
  %s12 = sld [smem:[#allocation0]]
  $region121: #{_lambda_.3} parent=0
    _
  %s14 = ssub.s32 1, %s12
  %s15 = scalar_select 0, %s14, %s12
  $region1: #{_lambda_.3} parent=0
    #allocation2 [shape = 'u8[8192]{0}', space=vmem, size = 0x2000, scoped, tag = 'input window, operand 0']
    #allocation3 [shape = 's32[2]{0}', space=sflag, size = 0x8, scoped, tag = 'scoped memory for _lambda_.3']
    #allocation4 [shape = 's32[2]{0}', space=sflag, size = 0x8, scoped, tag = 'scoped memory for _lambda_.3']
    #allocation5 [shape = 'u8[49152]{0}', space=vmem, size = 0xc000, scoped, tag = 'input window, operand 1']
    #allocation6 [shape = 's32[2]{0}', space=sflag, size = 0x8, scoped, tag = 'scoped memory for _lambda_.3']
    #allocation7 [shape = 'u8[16384]{0}', space=vmem, size = 0x4000, scoped, tag = 'input window, operand 2, single buffered']
    #allocation8 [shape = 'u8[512]{0}', space=vmem, size = 0x400, scoped, tag = 'input window, operand 3, single buffered']
    #allocation9 [shape = 's32[1]{0}', space=sflag, size = 0x4, scoped, tag = 'scoped memory for _lambda_.3']
    #allocation10 [shape = 'u8[16384]{0}', space=vmem, size = 0x4000, scoped, tag = 'input window, operand 4, single buffered']
    #allocation11 [shape = 'u8[512]{0}', space=vmem, size = 0x400, scoped, tag = 'input window, operand 5, single buffered']
    #allocation12 [shape = 's32[1]{0}', space=sflag, size = 0x4, scoped, tag = 'scoped memory for _lambda_.3']
    #allocation13 [shape = 'u8[16384]{0}', space=vmem, size = 0x4000, scoped, tag = 'input window, operand 6, single buffered']
    #allocation14 [shape = 'u8[16384]{0}', space=vmem, size = 0x4000, scoped, tag = 'input window, operand 7, single buffered']
    #allocation15 [shape = 's32[1]{0}', space=sflag, size = 0x4, scoped, tag = 'scoped memory for _lambda_.3']
    #allocation16 [shape = 'u8[512]{0}', space=vmem, size = 0x400, scoped, tag = 'input window, operand 8, single buffered']
    #allocation17 [shape = 'u8[512]{0}', space=vmem, size = 0x400, scoped, tag = 'input window, operand 9, single buffered']
    #allocation18 [shape = 's32[1]{0}', space=sflag, size = 0x4, scoped, tag = 'scoped memory for _lambda_.3']
    #allocation19 [shape = 'u8[512]{0}', space=vmem, size = 0x400, scoped, tag = 'input window, operand 10, single buffered']
    #allocation20 [shape = 'u8[8192]{0}', space=vmem, size = 0x2000, scoped, tag = 'output window, operand 0']
    %16 = vsyncpa [#allocation3], 0
    %s17 = scalar_lea.sflag [#allocation3], 1
    %18 = vsyncpa %s17, 0
    %19 = vsyncpa [#allocation6], 0
    %s20 = scalar_lea.sflag [#allocation6], 1
    %21 = vsyncpa %s20, 0
    %22 = vsyncpa [#allocation9], 0
    %23 = vsyncpa [#allocation12], 0
    %24 = vsyncpa [#allocation15], 0
    %25 = vsyncpa [#allocation18], 0
    %26 = vsyncpa [#allocation4], 0
    %s27 = scalar_lea.sflag [#allocation4], 1
    %28 = vsyncpa %s27, 0
    loop: start=0, step=1, limit=4
    $region2: #{_lambda_.3} parent=1 // loop_pre_header
      _
    $region3: #{_lambda_.3} parent=1 // loop_header
      %s30 = sphi 0, %s34
      %p31 = scmp.ge.s32.totalorder %s30, 4
      %s40 = sphi 0, %s42
      %s43 = sphi 0, %s40
      %s44 = sphi 0, %s43
      %s60 = sphi 0, %s44
      %s66 = sphi 0, %s68
      %s69 = sphi 0, %s66
      %s70 = sphi 0, %s69
      %s86 = sphi 0, %s70
      %s90 = sphi 0, %s90
      %s92 = sphi 0, %s90
      %s93 = sphi 0, %s92
      %s107 = sphi 0, %s93
      %s111 = sphi 0, %s111
      %s113 = sphi 0, %s111
      %s114 = sphi 0, %s113
      %s128 = sphi 0, %s114
      %s132 = sphi 0, %s132
      %s134 = sphi 0, %s132
      %s135 = sphi 0, %s134
      %s149 = sphi 0, %s135
      %s153 = sphi 0, %s153
      %s155 = sphi 0, %s153
      %s156 = sphi 0, %s155
      %s170 = sphi 0, %s156
      %s174 = sphi 0, %s174
      %s176 = sphi 0, %s174
      %s177 = sphi 0, %s176
      %s191 = sphi 0, %s177
      %s195 = sphi 0, %s195
      %s197 = sphi 0, %s195
      %s198 = sphi 0, %s197
      %s212 = sphi 0, %s198
      %s216 = sphi 0, %s216
      %s218 = sphi 0, %s216
      %s219 = sphi 0, %s218
      %s233 = sphi 0, %s219
      %s237 = sphi 0, %s237
      %s239 = sphi 0, %s237
      %s240 = sphi 0, %s239
      %s254 = sphi 0, %s240
      %s258 = sphi 0, %s258
      %s260 = sphi 0, %s258
      %s261 = sphi 0, %s260
      %s275 = sphi 0, %s261
      %s281 = sphi 0, %s283
      %s284 = sphi 0, %s281
      %s285 = sphi 0, %s284
      %s301 = sphi 0, %s285
    $region4: #{_lambda_.3} parent=1 // loop_header_branch
      %33 = sbr.rel (%p31) target = $region8
    $region5: #{_lambda_.3} parent=1 // loop_body
      %s35 = ssub.s32 %s30, 1
      %s36 = ssub.s32 %s30, 2
      %s37 = sadd.s32 %s30, 1
      %s38 = ssub.s32 %s30, %s37
      %p39 = scmp.eq.s32.totalorder %s38, 0
      %s41 = sadd.s32 %s40, 1
      %s42 = scalar_select %p39, %s40, %s41
      %p45 = pneg %p39
      %p46 = scmp.eq.s32.totalorder %s30, 1
      %p47 = por %p45, %p46
      %p48 = scmp.ne.s32.totalorder %s40, %s43
      %p49 = scmp.eq.s32.totalorder %s30, 0
      %p50 = por %p48, %p49
      %p51 = scmp.ne.s32.totalorder %s40, %s43
      %p52 = scmp.eq.s32.totalorder %s35, 1
      %p53 = por %p51, %p52
      %p54 = scmp.ne.s32.totalorder %s43, %s44
      %p55 = scmp.eq.s32.totalorder %s35, 0
      %p56 = por %p54, %p55
      %p57 = scmp.ne.s32.totalorder %s43, %s44
      %p58 = scmp.eq.s32.totalorder %s36, 1
      %p59 = por %p57, %p58
      %p61 = scmp.ne.s32.totalorder %s44, %s60
      %p62 = scmp.eq.s32.totalorder %s36, 0
      %p63 = por %p61, %p62
      %s64 = ssub.s32 %s30, %s37
      %p65 = scmp.eq.s32.totalorder %s64, 0
      %s67 = sadd.s32 %s66, 1
      %s68 = scalar_select %p65, %s66, %s67
      %p71 = pneg %p65
      %p72 = scmp.eq.s32.totalorder %s30, 1
      %p73 = por %p71, %p72
      %p74 = scmp.ne.s32.totalorder %s66, %s69
      %p75 = scmp.eq.s32.totalorder %s30, 0
      %p76 = por %p74, %p75
      %p77 = scmp.ne.s32.totalorder %s66, %s69
      %p78 = scmp.eq.s32.totalorder %s35, 1
      %p79 = por %p77, %p78
      %p80 = scmp.ne.s32.totalorder %s69, %s70
      %p81 = scmp.eq.s32.totalorder %s35, 0
      %p82 = por %p80, %p81
      %p83 = scmp.ne.s32.totalorder %s69, %s70
      %p84 = scmp.eq.s32.totalorder %s36, 1
      %p85 = por %p83, %p84
      %p87 = scmp.ne.s32.totalorder %s70, %s86
      %p88 = scmp.eq.s32.totalorder %s36, 0
      %p89 = por %p87, %p88
      %s91 = sadd.s32 %s90, 1
      %p94 = scmp.eq.s32.totalorder %s30, 1
      %p95 = scmp.ne.s32.totalorder %s90, %s92
      %p96 = scmp.eq.s32.totalorder %s30, 0
      %p97 = por %p95, %p96
      %p98 = scmp.ne.s32.totalorder %s90, %s92
      %p99 = scmp.eq.s32.totalorder %s35, 1
      %p100 = por %p98, %p99
      %p101 = scmp.ne.s32.totalorder %s92, %s93
      %p102 = scmp.eq.s32.totalorder %s35, 0
      %p103 = por %p101, %p102
      %p104 = scmp.ne.s32.totalorder %s92, %s93
      %p105 = scmp.eq.s32.totalorder %s36, 1
      %p106 = por %p104, %p105
      %p108 = scmp.ne.s32.totalorder %s93, %s107
      %p109 = scmp.eq.s32.totalorder %s36, 0
      %p110 = por %p108, %p109
      %s112 = sadd.s32 %s111, 1
      %p115 = scmp.eq.s32.totalorder %s30, 1
      %p116 = scmp.ne.s32.totalorder %s111, %s113
      %p117 = scmp.eq.s32.totalorder %s30, 0
      %p118 = por %p116, %p117
      %p119 = scmp.ne.s32.totalorder %s111, %s113
      %p120 = scmp.eq.s32.totalorder %s35, 1
      %p121 = por %p119, %p120
      %p122 = scmp.ne.s32.totalorder %s113, %s114
      %p123 = scmp.eq.s32.totalorder %s35, 0
      %p124 = por %p122, %p123
      %p125 = scmp.ne.s32.totalorder %s113, %s114
      %p126 = scmp.eq.s32.totalorder %s36, 1
      %p127 = por %p125, %p126
      %p129 = scmp.ne.s32.totalorder %s114, %s128
      %p130 = scmp.eq.s32.totalorder %s36, 0
      %p131 = por %p129, %p130
      %s133 = sadd.s32 %s132, 1
      %p136 = scmp.eq.s32.totalorder %s30, 1
      %p137 = scmp.ne.s32.totalorder %s132, %s134
      %p138 = scmp.eq.s32.totalorder %s30, 0
      %p139 = por %p137, %p138
      %p140 = scmp.ne.s32.totalorder %s132, %s134
      %p141 = scmp.eq.s32.totalorder %s35, 1
      %p142 = por %p140, %p141
      %p143 = scmp.ne.s32.totalorder %s134, %s135
      %p144 = scmp.eq.s32.totalorder %s35, 0
      %p145 = por %p143, %p144
      %p146 = scmp.ne.s32.totalorder %s134, %s135
      %p147 = scmp.eq.s32.totalorder %s36, 1
      %p148 = por %p146, %p147
      %p150 = scmp.ne.s32.totalorder %s135, %s149
      %p151 = scmp.eq.s32.totalorder %s36, 0
      %p152 = por %p150, %p151
      %s154 = sadd.s32 %s153, 1
      %p157 = scmp.eq.s32.totalorder %s30, 1
      %p158 = scmp.ne.s32.totalorder %s153, %s155
      %p159 = scmp.eq.s32.totalorder %s30, 0
      %p160 = por %p158, %p159
      %p161 = scmp.ne.s32.totalorder %s153, %s155
      %p162 = scmp.eq.s32.totalorder %s35, 1
      %p163 = por %p161, %p162
      %p164 = scmp.ne.s32.totalorder %s155, %s156
      %p165 = scmp.eq.s32.totalorder %s35, 0
      %p166 = por %p164, %p165
      %p167 = scmp.ne.s32.totalorder %s155, %s156
      %p168 = scmp.eq.s32.totalorder %s36, 1
      %p169 = por %p167, %p168
      %p171 = scmp.ne.s32.totalorder %s156, %s170
      %p172 = scmp.eq.s32.totalorder %s36, 0
      %p173 = por %p171, %p172
      %s175 = sadd.s32 %s174, 1
      %p178 = scmp.eq.s32.totalorder %s30, 1
      %p179 = scmp.ne.s32.totalorder %s174, %s176
      %p180 = scmp.eq.s32.totalorder %s30, 0
      %p181 = por %p179, %p180
      %p182 = scmp.ne.s32.totalorder %s174, %s176
      %p183 = scmp.eq.s32.totalorder %s35, 1
      %p184 = por %p182, %p183
      %p185 = scmp.ne.s32.totalorder %s176, %s177
      %p186 = scmp.eq.s32.totalorder %s35, 0
      %p187 = por %p185, %p186
      %p188 = scmp.ne.s32.totalorder %s176, %s177
      %p189 = scmp.eq.s32.totalorder %s36, 1
      %p190 = por %p188, %p189
      %p192 = scmp.ne.s32.totalorder %s177, %s191
      %p193 = scmp.eq.s32.totalorder %s36, 0
      %p194 = por %p192, %p193
      %s196 = sadd.s32 %s195, 1
      %p199 = scmp.eq.s32.totalorder %s30, 1
      %p200 = scmp.ne.s32.totalorder %s195, %s197
      %p201 = scmp.eq.s32.totalorder %s30, 0
      %p202 = por %p200, %p201
      %p203 = scmp.ne.s32.totalorder %s195, %s197
      %p204 = scmp.eq.s32.totalorder %s35, 1
      %p205 = por %p203, %p204
      %p206 = scmp.ne.s32.totalorder %s197, %s198
      %p207 = scmp.eq.s32.totalorder %s35, 0
      %p208 = por %p206, %p207
      %p209 = scmp.ne.s32.totalorder %s197, %s198
      %p210 = scmp.eq.s32.totalorder %s36, 1
      %p211 = por %p209, %p210
      %p213 = scmp.ne.s32.totalorder %s198, %s212
      %p214 = scmp.eq.s32.totalorder %s36, 0
      %p215 = por %p213, %p214
      %s217 = sadd.s32 %s216, 1
      %p220 = scmp.eq.s32.totalorder %s30, 1
      %p221 = scmp.ne.s32.totalorder %s216, %s218
      %p222 = scmp.eq.s32.totalorder %s30, 0
      %p223 = por %p221, %p222
      %p224 = scmp.ne.s32.totalorder %s216, %s218
      %p225 = scmp.eq.s32.totalorder %s35, 1
      %p226 = por %p224, %p225
      %p227 = scmp.ne.s32.totalorder %s218, %s219
      %p228 = scmp.eq.s32.totalorder %s35, 0
      %p229 = por %p227, %p228
      %p230 = scmp.ne.s32.totalorder %s218, %s219
      %p231 = scmp.eq.s32.totalorder %s36, 1
      %p232 = por %p230, %p231
      %p234 = scmp.ne.s32.totalorder %s219, %s233
      %p235 = scmp.eq.s32.totalorder %s36, 0
      %p236 = por %p234, %p235
      %s238 = sadd.s32 %s237, 1
      %p241 = scmp.eq.s32.totalorder %s30, 1
      %p242 = scmp.ne.s32.totalorder %s237, %s239
      %p243 = scmp.eq.s32.totalorder %s30, 0
      %p244 = por %p242, %p243
      %p245 = scmp.ne.s32.totalorder %s237, %s239
      %p246 = scmp.eq.s32.totalorder %s35, 1
      %p247 = por %p245, %p246
      %p248 = scmp.ne.s32.totalorder %s239, %s240
      %p249 = scmp.eq.s32.totalorder %s35, 0
      %p250 = por %p248, %p249
      %p251 = scmp.ne.s32.totalorder %s239, %s240
      %p252 = scmp.eq.s32.totalorder %s36, 1
      %p253 = por %p251, %p252
      %p255 = scmp.ne.s32.totalorder %s240, %s254
      %p256 = scmp.eq.s32.totalorder %s36, 0
      %p257 = por %p255, %p256
      %s259 = sadd.s32 %s258, 1
      %p262 = scmp.eq.s32.totalorder %s30, 1
      %p263 = scmp.ne.s32.totalorder %s258, %s260
      %p264 = scmp.eq.s32.totalorder %s30, 0
      %p265 = por %p263, %p264
      %p266 = scmp.ne.s32.totalorder %s258, %s260
      %p267 = scmp.eq.s32.totalorder %s35, 1
      %p268 = por %p266, %p267
      %p269 = scmp.ne.s32.totalorder %s260, %s261
      %p270 = scmp.eq.s32.totalorder %s35, 0
      %p271 = por %p269, %p270
      %p272 = scmp.ne.s32.totalorder %s260, %s261
      %p273 = scmp.eq.s32.totalorder %s36, 1
      %p274 = por %p272, %p273
      %p276 = scmp.ne.s32.totalorder %s261, %s275
      %p277 = scmp.eq.s32.totalorder %s36, 0
      %p278 = por %p276, %p277
      %s279 = ssub.s32 %s30, %s37
      %p280 = scmp.eq.s32.totalorder %s279, 0
      %s282 = sadd.s32 %s281, 1
      %s283 = scalar_select %p280, %s281, %s282
      %p286 = pneg %p280
      %p287 = scmp.eq.s32.totalorder %s30, 1
      %p288 = por %p286, %p287
      %p289 = scmp.ne.s32.totalorder %s281, %s284
      %p290 = scmp.eq.s32.totalorder %s30, 0
      %p291 = por %p289, %p290
      %p292 = scmp.ne.s32.totalorder %s281, %s284
      %p293 = scmp.eq.s32.totalorder %s35, 1
      %p294 = por %p292, %p293
      %p295 = scmp.ne.s32.totalorder %s284, %s285
      %p296 = scmp.eq.s32.totalorder %s35, 0
      %p297 = por %p295, %p296
      %p298 = scmp.ne.s32.totalorder %s284, %s285
      %p299 = scmp.eq.s32.totalorder %s36, 1
      %p300 = por %p298, %p299
      %p302 = scmp.ne.s32.totalorder %s285, %s301
      %p303 = scmp.eq.s32.totalorder %s36, 0
      %p304 = por %p302, %p303
      %p305 = scmp.le.s32.totalorder 1, %s30
      %p306 = scmp.lt.s32.totalorder %s30, 3
      %p307 = pnand %p305, %p306
      %p308 = pneg %p307
      // Predicated region
      $region9: #{_lambda_.3} parent=5 // pred_check
        _
      $region10: #{_lambda_.3} parent=5 // pred_check_branch
        %310 = sbr.rel (%p307) target = $region12
      $region11: #{_lambda_.3} parent=5 // pred_region
        %s311 = ssub.s32 %s30, 1
        // Predicated region
        $region13: #{_lambda_.3} parent=11 // pred_check
          %p312 = pneg %p103
        $region14: #{_lambda_.3} parent=11 // pred_check_branch
          %314 = sbr.rel (%p312) target = $region16
        $region15: #{_lambda_.3} parent=11 // pred_region
          %s316 = ssub.s32 512, 512
          %317 = vsyncadd [#allocation6], %s316
          %s318 = sshll.u32 [#allocation7], 4
          %s319 = int_to_ptr.vmem [resolvable:$true] %s318
          %324 = dma.hbm_to_vmem [thread:$0]  %s2, 512, %s319, [#allocation6], 128, 128, 8
        $region16: #{_lambda_.3} parent=11 // pred_fallthru
          _
        // Predicated region
        $region17: #{_lambda_.3} parent=11 // pred_check
          %p325 = pneg %p124
        $region18: #{_lambda_.3} parent=11 // pred_check_branch
          %327 = sbr.rel (%p325) target = $region20
        $region19: #{_lambda_.3} parent=11 // pred_region
          %s329 = ssub.s32 16, 16
          %330 = vsyncadd [#allocation9], %s329
          %s332 = sshll.u32 [#allocation8], 4
          %s333 = int_to_ptr.vmem [resolvable:$true] %s332
          %335 = dma.hbm_to_vmem [thread:$0]  %s3, 16, %s333, [#allocation9]
        $region20: #{_lambda_.3} parent=11 // pred_fallthru
          _
        // Predicated region
        $region21: #{_lambda_.3} parent=11 // pred_check
          %p336 = pneg %p145
        $region22: #{_lambda_.3} parent=11 // pred_check_branch
          %338 = sbr.rel (%p336) target = $region24
        $region23: #{_lambda_.3} parent=11 // pred_region
          %s340 = ssub.s32 512, 512
          %341 = vsyncadd [#allocation9], %s340
          %s342 = sshll.u32 [#allocation10], 4
          %s343 = int_to_ptr.vmem [resolvable:$true] %s342
          %348 = dma.hbm_to_vmem [thread:$0]  %s4, 512, %s343, [#allocation9], 128, 128, 8
        $region24: #{_lambda_.3} parent=11 // pred_fallthru
          _
        // Predicated region
        $region25: #{_lambda_.3} parent=11 // pred_check
          %p349 = pneg %p166
        $region26: #{_lambda_.3} parent=11 // pred_check_branch
          %351 = sbr.rel (%p349) target = $region28
        $region27: #{_lambda_.3} parent=11 // pred_region
          %s353 = ssub.s32 16, 16
          %354 = vsyncadd [#allocation12], %s353
          %s356 = sshll.u32 [#allocation11], 4
          %s357 = int_to_ptr.vmem [resolvable:$true] %s356
          %359 = dma.hbm_to_vmem [thread:$0]  %s5, 16, %s357, [#allocation12]
        $region28: #{_lambda_.3} parent=11 // pred_fallthru
          _
        // Predicated region
        $region29: #{_lambda_.3} parent=11 // pred_check
          %p360 = pneg %p187
        $region30: #{_lambda_.3} parent=11 // pred_check_branch
          %362 = sbr.rel (%p360) target = $region32
        $region31: #{_lambda_.3} parent=11 // pred_region
          %s364 = ssub.s32 512, 512
          %365 = vsyncadd [#allocation12], %s364
          %s366 = sshll.u32 [#allocation13], 4
          %s367 = int_to_ptr.vmem [resolvable:$true] %s366
          %372 = dma.hbm_to_vmem [thread:$0]  %s6, 512, %s367, [#allocation12], 128, 128, 8
        $region32: #{_lambda_.3} parent=11 // pred_fallthru
          _
        // Predicated region
        $region33: #{_lambda_.3} parent=11 // pred_check
          %p373 = pneg %p208
        $region34: #{_lambda_.3} parent=11 // pred_check_branch
          %375 = sbr.rel (%p373) target = $region36
        $region35: #{_lambda_.3} parent=11 // pred_region
          %s377 = ssub.s32 512, 512
          %378 = vsyncadd [#allocation15], %s377
          %s379 = sshll.u32 [#allocation14], 4
          %s380 = int_to_ptr.vmem [resolvable:$true] %s379
          %385 = dma.hbm_to_vmem [thread:$0]  %s7, 512, %s380, [#allocation15], 128, 128, 8
        $region36: #{_lambda_.3} parent=11 // pred_fallthru
          _
        // Predicated region
        $region37: #{_lambda_.3} parent=11 // pred_check
          %p386 = pneg %p229
        $region38: #{_lambda_.3} parent=11 // pred_check_branch
          %388 = sbr.rel (%p386) target = $region40
        $region39: #{_lambda_.3} parent=11 // pred_region
          %s390 = ssub.s32 16, 16
          %391 = vsyncadd [#allocation15], %s390
          %s393 = sshll.u32 [#allocation16], 4
          %s394 = int_to_ptr.vmem [resolvable:$true] %s393
          %396 = dma.hbm_to_vmem [thread:$0]  %s8, 16, %s394, [#allocation15]
        $region40: #{_lambda_.3} parent=11 // pred_fallthru
          _
        // Predicated region
        $region41: #{_lambda_.3} parent=11 // pred_check
          %p397 = pneg %p250
        $region42: #{_lambda_.3} parent=11 // pred_check_branch
          %399 = sbr.rel (%p397) target = $region44
        $region43: #{_lambda_.3} parent=11 // pred_region
          %s401 = ssub.s32 16, 16
          %402 = vsyncadd [#allocation18], %s401
          %s404 = sshll.u32 [#allocation17], 4
          %s405 = int_to_ptr.vmem [resolvable:$true] %s404
          %407 = dma.hbm_to_vmem [thread:$0]  %s9, 16, %s405, [#allocation18]
        $region44: #{_lambda_.3} parent=11 // pred_fallthru
          _
        // Predicated region
        $region45: #{_lambda_.3} parent=11 // pred_check
          %p408 = pneg %p271
        $region46: #{_lambda_.3} parent=11 // pred_check_branch
          %410 = sbr.rel (%p408) target = $region48
        $region47: #{_lambda_.3} parent=11 // pred_region
          %s412 = ssub.s32 16, 16
          %413 = vsyncadd [#allocation18], %s412
          %s415 = sshll.u32 [#allocation19], 4
          %s416 = int_to_ptr.vmem [resolvable:$true] %s415
          %418 = dma.hbm_to_vmem [thread:$0]  %s10, 16, %s416, [#allocation18]
        $region48: #{_lambda_.3} parent=11 // pred_fallthru
          _
      $region12: #{_lambda_.3} parent=5 // pred_fallthru
        _
      %p419 = scmp.lt.s32.totalorder %s30, 2
      // Predicated region
      $region49: #{_lambda_.3} parent=5 // pred_check
        %p420 = pneg %p419
      $region50: #{_lambda_.3} parent=5 // pred_check_branch
        %422 = sbr.rel (%p420) target = $region52
      $region51: #{_lambda_.3} parent=5 // pred_region
        // Predicated region
        $region53: #{_lambda_.3} parent=51 // pred_check
          %p423 = pneg %p50
        $region54: #{_lambda_.3} parent=51 // pred_check_branch
          %425 = sbr.rel (%p423) target = $region56
        $region55: #{_lambda_.3} parent=51 // pred_region
          %s426 = sand.u32 %s40, 1
          %s427 = scalar_lea.sflag [#allocation3], %s426
          %s428 = sand.u32 %s40, 1
          %s429 = smul.addr %s428, 8
          %s430 = scalar_lea.vmem [#allocation2], %s429
          %s432 = ssub.s32 128, 128
          %433 = vsyncadd %s427, %s432
          %s434 = smul.addr %s30, 128
          %s435 = scalar_lea.hbm %s0, %s434
          %s437 = sshll.u32 %s430, 4
          %s438 = int_to_ptr.vmem [resolvable:$true] %s437
          %440 = dma.hbm_to_vmem [thread:$0]  %s435, 128, %s438, %s427
        $region56: #{_lambda_.3} parent=51 // pred_fallthru
          _
        // Predicated region
        $region57: #{_lambda_.3} parent=51 // pred_check
          %p441 = pneg %p76
        $region58: #{_lambda_.3} parent=51 // pred_check_branch
          %443 = sbr.rel (%p441) target = $region60
        $region59: #{_lambda_.3} parent=51 // pred_region
          %s444 = sand.u32 %s30, 1
          %s445 = scalar_lea.sflag [#allocation6], %s444
          %s446 = sand.u32 %s66, 1
          %s447 = smul.addr %s446, 48
          %s448 = scalar_lea.vmem [#allocation5], %s447
          %s450 = ssub.s32 768, 768
          %451 = vsyncadd %s445, %s450
          %s452 = smul.addr %s30, 128
          %s453 = scalar_lea.hbm %s1, %s452
          %s454 = sshll.u32 %s448, 4
          %s455 = int_to_ptr.vmem [resolvable:$true] %s454
          %460 = dma.hbm_to_vmem [thread:$0]  %s453, 768, %s455, %s445, 256, 128, 8
        $region60: #{_lambda_.3} parent=51 // pred_fallthru
          _
      $region52: #{_lambda_.3} parent=5 // pred_fallthru
        _
      %p461 = scmp.le.s32.totalorder 1, %s30
      %p462 = scmp.lt.s32.totalorder %s30, 3
      %p463 = pnand %p461, %p462
      %p464 = pneg %p463
      // Predicated region
      $region61: #{_lambda_.3} parent=5 // pred_check
        _
      $region62: #{_lambda_.3} parent=5 // pred_check_branch
        %466 = sbr.rel (%p463) target = $region64
      $region63: #{_lambda_.3} parent=5 // pred_region
        %s467 = ssub.s32 %s30, 1
        %s468 = sand.u32 %s43, 1
        %s469 = scalar_lea.sflag [#allocation3], %s468
        %s470 = sand.u32 %s43, 1
        %s471 = smul.addr %s470, 8
        %s472 = scalar_lea.vmem [#allocation2], %s471
        // Predicated region
        $region65: #{_lambda_.3} parent=63 // pred_check
          %p473 = pneg %p56
        $region66: #{_lambda_.3} parent=63 // pred_check_branch
          %475 = sbr.rel (%p473) target = $region68
        $region67: #{_lambda_.3} parent=63 // pred_region
          %476 = dma.done %s469, 128
        $region68: #{_lambda_.3} parent=63 // pred_fallthru
          _
        %s477 = sand.u32 %s35, 1
        %s478 = scalar_lea.sflag [#allocation6], %s477
        %s479 = sand.u32 %s69, 1
        %s480 = smul.addr %s479, 48
        %s481 = scalar_lea.vmem [#allocation5], %s480
        // Predicated region
        $region69: #{_lambda_.3} parent=63 // pred_check
          %p482 = pneg %p82
        $region70: #{_lambda_.3} parent=63 // pred_check_branch
          %484 = sbr.rel (%p482) target = $region72
        $region71: #{_lambda_.3} parent=63 // pred_region
          %485 = dma.done %s478, 768
        $region72: #{_lambda_.3} parent=63 // pred_fallthru
          _
        // Predicated region
        $region73: #{_lambda_.3} parent=63 // pred_check
          %p486 = pneg %p103
        $region74: #{_lambda_.3} parent=63 // pred_check_branch
          %488 = sbr.rel (%p486) target = $region76
        $region75: #{_lambda_.3} parent=63 // pred_region
          %489 = dma.done [#allocation6], 512
        $region76: #{_lambda_.3} parent=63 // pred_fallthru
          _
        // Predicated region
        $region77: #{_lambda_.3} parent=63 // pred_check
          %p490 = pneg %p124
        $region78: #{_lambda_.3} parent=63 // pred_check_branch
          %492 = sbr.rel (%p490) target = $region80
        $region79: #{_lambda_.3} parent=63 // pred_region
          %493 = dma.done [#allocation9], 16
        $region80: #{_lambda_.3} parent=63 // pred_fallthru
          _
        // Predicated region
        $region81: #{_lambda_.3} parent=63 // pred_check
          %p494 = pneg %p145
        $region82: #{_lambda_.3} parent=63 // pred_check_branch
          %496 = sbr.rel (%p494) target = $region84
        $region83: #{_lambda_.3} parent=63 // pred_region
          %497 = dma.done [#allocation9], 512
        $region84: #{_lambda_.3} parent=63 // pred_fallthru
          _
        // Predicated region
        $region85: #{_lambda_.3} parent=63 // pred_check
          %p498 = pneg %p166
        $region86: #{_lambda_.3} parent=63 // pred_check_branch
          %500 = sbr.rel (%p498) target = $region88
        $region87: #{_lambda_.3} parent=63 // pred_region
          %501 = dma.done [#allocation12], 16
        $region88: #{_lambda_.3} parent=63 // pred_fallthru
          _
        // Predicated region
        $region89: #{_lambda_.3} parent=63 // pred_check
          %p502 = pneg %p187
        $region90: #{_lambda_.3} parent=63 // pred_check_branch
          %504 = sbr.rel (%p502) target = $region92
        $region91: #{_lambda_.3} parent=63 // pred_region
          %505 = dma.done [#allocation12], 512
        $region92: #{_lambda_.3} parent=63 // pred_fallthru
          _
        // Predicated region
        $region93: #{_lambda_.3} parent=63 // pred_check
          %p506 = pneg %p208
        $region94: #{_lambda_.3} parent=63 // pred_check_branch
          %508 = sbr.rel (%p506) target = $region96
        $region95: #{_lambda_.3} parent=63 // pred_region
          %509 = dma.done [#allocation15], 512
        $region96: #{_lambda_.3} parent=63 // pred_fallthru
          _
        // Predicated region
        $region97: #{_lambda_.3} parent=63 // pred_check
          %p510 = pneg %p229
        $region98: #{_lambda_.3} parent=63 // pred_check_branch
          %512 = sbr.rel (%p510) target = $region100
        $region99: #{_lambda_.3} parent=63 // pred_region
          %513 = dma.done [#allocation15], 16
        $region100: #{_lambda_.3} parent=63 // pred_fallthru
          _
        // Predicated region
        $region101: #{_lambda_.3} parent=63 // pred_check
          %p514 = pneg %p250
        $region102: #{_lambda_.3} parent=63 // pred_check_branch
          %516 = sbr.rel (%p514) target = $region104
        $region103: #{_lambda_.3} parent=63 // pred_region
          %517 = dma.done [#allocation18], 16
        $region104: #{_lambda_.3} parent=63 // pred_fallthru
          _
        // Predicated region
        $region105: #{_lambda_.3} parent=63 // pred_check
          %p518 = pneg %p271
        $region106: #{_lambda_.3} parent=63 // pred_check_branch
          %520 = sbr.rel (%p518) target = $region108
        $region107: #{_lambda_.3} parent=63 // pred_region
          %521 = dma.done [#allocation18], 16
        $region108: #{_lambda_.3} parent=63 // pred_fallthru
          _
        %s522 = sand.u32 %s43, 1
        %s523 = scalar_lea.sflag [#allocation3], %s522
        %s524 = sand.u32 %s43, 1
        %s525 = smul.addr %s524, 8
        %s526 = scalar_lea.vmem [#allocation2], %s525
        %p527 = pneg %p56
        %p528 = pneg %p53
        %s529 = sand.u32 %s35, 1
        %s530 = scalar_lea.sflag [#allocation6], %s529
        %s531 = sand.u32 %s69, 1
        %s532 = smul.addr %s531, 48
        %s533 = scalar_lea.vmem [#allocation5], %s532
        %p534 = pneg %p82
        %p535 = pneg %p79
        %p536 = pneg %p103
        %p537 = pneg %p100
        %p538 = pneg %p124
        %p539 = pneg %p121
        %p540 = pneg %p145
        %p541 = pneg %p142
        %p542 = pneg %p166
        %p543 = pneg %p163
        %p544 = pneg %p187
        %p545 = pneg %p184
        %p546 = pneg %p208
        %p547 = pneg %p205
        %p548 = pneg %p229
        %p549 = pneg %p226
        %p550 = pneg %p250
        %p551 = pneg %p247
        %p552 = pneg %p271
        %p553 = pneg %p268
        %p554 = pneg %p297
        %p555 = pneg %p294
        %s556 = sand.u32 %s284, 1
        %s557 = scalar_lea.sflag [#allocation4], %s556
        %s558 = sand.u32 %s284, 1
        %s559 = smul.addr %s558, 8
        %s560 = scalar_lea.vmem [#allocation20], %s559
        %v561 = vld [vmem:[%s472] sm:$0xff]
        %v562 = vld [vmem:[#allocation7] sm:$0xff]
        %v563 = vld [vmem:[#allocation7 + $0x8] sm:$0xff]
        %v564 = vld [vmem:[#allocation7 + $0x10] sm:$0xff]
        %v565 = vld [vmem:[#allocation7 + $0x18] sm:$0xff]
        %v566 = vld [vmem:[#allocation8] sm:$0x1]
        %v568 = vlaneseq
        %v569 = vshrl.u32 %v568, 7
        %v570 = vsub.s32 0, %v569
        %v571 = vrot.slane %v566, %v570
        %vm573 = vcmask 261120
        %v575 = vsel %vm573, %v561, 0
        %577 = vmatprep.subr.mxu0 0.0
        %578 = vmatpush1.msra.mxu0 %v562
        %579 = vmatprep.subr.mxu0 0.0
        %580 = vmatpush1.msra.mxu0 %v563
        %581 = vmatprep.subr.mxu0 0.0
        %582 = vmatpush1.msra.mxu0 %v564
        %583 = vmatprep.subr.mxu0 0.0
        %584 = vmatpush1.msra.mxu0 %v565
        %585 = vmatprep.subr.mxu0 0.0
        %586 = vmatpush1.msra.mxu0 0.0
        %587 = vmatprep.subr.mxu0 0.0
        %588 = vmatpush1.msra.mxu0 0.0
        %589 = vmatprep.subr.mxu0 0.0
        %590 = vmatpush1.msra.mxu0 0.0
        %591 = vmatprep.subr.mxu0 0.0
        %592 = vmatpush1.msra.mxu0 0.0
        %593 = vmatprep.subr.mxu0 0.0
        %594 = vmatpush1.msra.mxu0 0.0
        %595 = vmatprep.subr.mxu0 0.0
        %596 = vmatpush1.msra.mxu0 0.0
        %597 = vmatprep.subr.mxu0 0.0
        %598 = vmatpush1.msra.mxu0 0.0
        %599 = vmatprep.subr.mxu0 0.0
        %600 = vmatpush1.msra.mxu0 0.0
        %601 = vmatprep.subr.mxu0 0.0
        %602 = vmatpush1.msra.mxu0 0.0
        %603 = vmatprep.subr.mxu0 0.0
        %604 = vmatpush1.msra.mxu0 0.0
        %605 = vmatprep.subr.mxu0 0.0
        %606 = vmatpush1.msra.mxu0 0.0
        %607 = vmatprep.subr.mxu0 0.0
        %608 = vmatpush1.msra.mxu0 0.0
        %609 = vmatprep.subr.mxu0 0.0
        %610 = vmatpush1.msra.mxu0 0.0
        %611 = vmatprep.subr.mxu0 0.0
        %612 = vmatpush1.msra.mxu0 0.0
        %613 = vmatprep.subr.mxu0 0.0
        %614 = vmatpush1.msra.mxu0 0.0
        %615 = vmatprep.subr.mxu0 0.0
        %616 = vmatpush1.msra.mxu0 0.0
        %617 = vmatprep.subr.mxu0 0.0
        %618 = vmatpush1.msra.mxu0 0.0
        %619 = vmatprep.subr.mxu0 0.0
        %620 = vmatpush1.msra.mxu0 0.0
        %621 = vmatprep.subr.mxu0 0.0
        %622 = vmatpush1.msra.mxu0 0.0
        %623 = vmatprep.subr.mxu0 0.0
        %624 = vmatpush1.msra.mxu0 0.0
        %625 = vmatprep.subr.mxu0 0.0
        %626 = vmatpush1.msra.mxu0 0.0
        %627 = vmatprep.subr.mxu0 0.0
        %628 = vmatpush1.msra.mxu0 0.0
        %629 = vmatprep.subr.mxu0 0.0
        %630 = vmatpush1.msra.mxu0 0.0
        %631 = vmatprep.subr.mxu0 0.0
        %632 = vmatpush1.msra.mxu0 0.0
        %633 = vmatprep.subr.mxu0 0.0
        %634 = vmatpush1.msra.mxu0 0.0
        %635 = vmatprep.subr.mxu0 0.0
        %636 = vmatpush1.msra.mxu0 0.0
        %637 = vmatprep.subr.mxu0 0.0
        %638 = vmatpush1.msra.mxu0 0.0
        %639 = vmatprep.subr.mxu0 0.0
        %640 = vmatpush1.msra.mxu0 0.0
        %641 = vmatprep.mubr.f32.mxu0 0.0
        %642 = vmatmul.mubr.f32.gmra.mrb[0].mxu0 %v575
        %v643 = vpop.f32.mrb[0].mxu0
        %v644 = vadd.f32 %v571, %v643
        %v645 = vpop.f32.mrb[0].mxu0
        %646 = vdwg.mxu0
        %v647 = vld [vmem:[%s481] sm:$0xff]
        %v648 = vld [vmem:[%s481 + $0x8] sm:$0xff]
        %v649 = vld [vmem:[%s481 + $0x10] sm:$0xff]
        %v650 = vld [vmem:[%s481 + $0x18] sm:$0xff]
        %v651 = vld [vmem:[%s481 + $0x20] sm:$0xff]
        %v652 = vld [vmem:[%s481 + $0x28] sm:$0xff]
        %v653 = vld [vmem:[#allocation10] sm:$0xff]
        %v654 = vld [vmem:[#allocation10 + $0x8] sm:$0xff]
        %v655 = vld [vmem:[#allocation10 + $0x10] sm:$0xff]
        %v656 = vld [vmem:[#allocation10 + $0x18] sm:$0xff]
        %v657 = vld [vmem:[#allocation11] sm:$0x1]
        %v659 = vlaneseq
        %v660 = vshrl.u32 %v659, 7
        %v661 = vsub.s32 0, %v660
        %v662 = vrot.slane %v657, %v661
        %v665 = vsel %vm573, %v647, 0
        %v668 = vsel %vm573, %v648, 0
        %v671 = vsel %vm573, %v649, 0
        %v674 = vsel %vm573, %v650, 0
        %v677 = vsel %vm573, %v651, 0
        %v680 = vsel %vm573, %v652, 0
        %682 = vmatprep.subr.mxu0 0.0
        %683 = vmatpush1.msra.mxu0 %v653
        %684 = vmatprep.subr.mxu0 0.0
        %685 = vmatpush1.msra.mxu0 %v654
        %686 = vmatprep.subr.mxu0 0.0
        %687 = vmatpush1.msra.mxu0 %v655
        %688 = vmatprep.subr.mxu0 0.0
        %689 = vmatpush1.msra.mxu0 %v656
        %690 = vmatprep.subr.mxu0 0.0
        %691 = vmatpush1.msra.mxu0 0.0
        %692 = vmatprep.subr.mxu0 0.0
        %693 = vmatpush1.msra.mxu0 0.0
        %694 = vmatprep.subr.mxu0 0.0
        %695 = vmatpush1.msra.mxu0 0.0
        %696 = vmatprep.subr.mxu0 0.0
        %697 = vmatpush1.msra.mxu0 0.0
        %698 = vmatprep.subr.mxu0 0.0
        %699 = vmatpush1.msra.mxu0 0.0
        %700 = vmatprep.subr.mxu0 0.0
        %701 = vmatpush1.msra.mxu0 0.0
        %702 = vmatprep.subr.mxu0 0.0
        %703 = vmatpush1.msra.mxu0 0.0
        %704 = vmatprep.subr.mxu0 0.0
        %705 = vmatpush1.msra.mxu0 0.0
        %706 = vmatprep.subr.mxu0 0.0
        %707 = vmatpush1.msra.mxu0 0.0
        %708 = vmatprep.subr.mxu0 0.0
        %709 = vmatpush1.msra.mxu0 0.0
        %710 = vmatprep.subr.mxu0 0.0
        %711 = vmatpush1.msra.mxu0 0.0
        %712 = vmatprep.subr.mxu0 0.0
        %713 = vmatpush1.msra.mxu0 0.0
        %714 = vmatprep.subr.mxu0 0.0
        %715 = vmatpush1.msra.mxu0 0.0
        %716 = vmatprep.subr.mxu0 0.0
        %717 = vmatpush1.msra.mxu0 0.0
        %718 = vmatprep.subr.mxu0 0.0
        %719 = vmatpush1.msra.mxu0 0.0
        %720 = vmatprep.subr.mxu0 0.0
        %721 = vmatpush1.msra.mxu0 0.0
        %722 = vmatprep.subr.mxu0 0.0
        %723 = vmatpush1.msra.mxu0 0.0
        %724 = vmatprep.subr.mxu0 0.0
        %725 = vmatpush1.msra.mxu0 0.0
        %726 = vmatprep.subr.mxu0 0.0
        %727 = vmatpush1.msra.mxu0 0.0
        %728 = vmatprep.subr.mxu0 0.0
        %729 = vmatpush1.msra.mxu0 0.0
        %730 = vmatprep.subr.mxu0 0.0
        %731 = vmatpush1.msra.mxu0 0.0
        %732 = vmatprep.subr.mxu0 0.0
        %733 = vmatpush1.msra.mxu0 0.0
        %734 = vmatprep.subr.mxu0 0.0
        %735 = vmatpush1.msra.mxu0 0.0
        %736 = vmatprep.subr.mxu0 0.0
        %737 = vmatpush1.msra.mxu0 0.0
        %738 = vmatprep.subr.mxu0 0.0
        %739 = vmatpush1.msra.mxu0 0.0
        %740 = vmatprep.subr.mxu0 0.0
        %741 = vmatpush1.msra.mxu0 0.0
        %742 = vmatprep.subr.mxu0 0.0
        %743 = vmatpush1.msra.mxu0 0.0
        %744 = vmatprep.subr.mxu0 0.0
        %745 = vmatpush1.msra.mxu0 0.0
        %746 = vmatprep.mubr.f32.mxu0 0.0
        %747 = vmatmul.mubr.f32.gmra.mrb[0].mxu0 %v665
        %v748 = vpop.f32.mrb[0].mxu0
        %v749 = vadd.f32 %v662, %v748
        %v750 = vpop.f32.mrb[0].mxu0
        %751 = vmatprep.mubr.f32.mxu0 0.0
        %752 = vmatmul.mubr.f32.gmra.mrb[0].mxu0 %v668
        %v753 = vpop.f32.mrb[0].mxu0
        %v754 = vadd.f32 %v662, %v753
        %v755 = vpop.f32.mrb[0].mxu0
        %756 = vmatprep.mubr.f32.mxu0 0.0
        %757 = vmatmul.mubr.f32.gmra.mrb[0].mxu0 %v671
        %v758 = vpop.f32.mrb[0].mxu0
        %v759 = vadd.f32 %v662, %v758
        %v760 = vpop.f32.mrb[0].mxu0
        %761 = vmatprep.mubr.f32.mxu0 0.0
        %762 = vmatmul.mubr.f32.gmra.mrb[0].mxu0 %v674
        %v763 = vpop.f32.mrb[0].mxu0
        %v764 = vadd.f32 %v662, %v763
        %v765 = vpop.f32.mrb[0].mxu0
        %766 = vmatprep.mubr.f32.mxu0 0.0
        %767 = vmatmul.mubr.f32.gmra.mrb[0].mxu0 %v677
        %v768 = vpop.f32.mrb[0].mxu0
        %v769 = vadd.f32 %v662, %v768
        %v770 = vpop.f32.mrb[0].mxu0
        %771 = vmatprep.mubr.f32.mxu0 0.0
        %772 = vmatmul.mubr.f32.gmra.mrb[0].mxu0 %v680
        %v773 = vpop.f32.mrb[0].mxu0
        %v774 = vadd.f32 %v662, %v773
        %v775 = vpop.f32.mrb[0].mxu0
        %776 = vdwg.mxu0
        %v777 = vld [vmem:[#allocation13] sm:$0xff]
        %v778 = vld [vmem:[#allocation13 + $0x8] sm:$0xff]
        %v779 = vld [vmem:[#allocation13 + $0x10] sm:$0xff]
        %v780 = vld [vmem:[#allocation13 + $0x18] sm:$0xff]
        %v781 = vmul.f32 %v644, %v749
        %v783 = vsel %vm573, %v781, 0
        %785 = vmatprep.subr.mxu0 0.0
        %786 = vmatpush1.msra.mxu0 %v777
        %787 = vmatprep.subr.mxu0 0.0
        %788 = vmatpush1.msra.mxu0 %v778
        %789 = vmatprep.subr.mxu0 0.0
        %790 = vmatpush1.msra.mxu0 %v779
        %791 = vmatprep.subr.mxu0 0.0
        %792 = vmatpush1.msra.mxu0 %v780
        %793 = vmatprep.subr.mxu0 0.0
        %794 = vmatpush1.msra.mxu0 0.0
        %795 = vmatprep.subr.mxu0 0.0
        %796 = vmatpush1.msra.mxu0 0.0
        %797 = vmatprep.subr.mxu0 0.0
        %798 = vmatpush1.msra.mxu0 0.0
        %799 = vmatprep.subr.mxu0 0.0
        %800 = vmatpush1.msra.mxu0 0.0
        %801 = vmatprep.subr.mxu0 0.0
        %802 = vmatpush1.msra.mxu0 0.0
        %803 = vmatprep.subr.mxu0 0.0
        %804 = vmatpush1.msra.mxu0 0.0
        %805 = vmatprep.subr.mxu0 0.0
        %806 = vmatpush1.msra.mxu0 0.0
        %807 = vmatprep.subr.mxu0 0.0
        %808 = vmatpush1.msra.mxu0 0.0
        %809 = vmatprep.subr.mxu0 0.0
        %810 = vmatpush1.msra.mxu0 0.0
        %811 = vmatprep.subr.mxu0 0.0
        %812 = vmatpush1.msra.mxu0 0.0
        %813 = vmatprep.subr.mxu0 0.0
        %814 = vmatpush1.msra.mxu0 0.0
        %815 = vmatprep.subr.mxu0 0.0
        %816 = vmatpush1.msra.mxu0 0.0
        %817 = vmatprep.subr.mxu0 0.0
        %818 = vmatpush1.msra.mxu0 0.0
        %819 = vmatprep.subr.mxu0 0.0
        %820 = vmatpush1.msra.mxu0 0.0
        %821 = vmatprep.subr.mxu0 0.0
        %822 = vmatpush1.msra.mxu0 0.0
        %823 = vmatprep.subr.mxu0 0.0
        %824 = vmatpush1.msra.mxu0 0.0
        %825 = vmatprep.subr.mxu0 0.0
        %826 = vmatpush1.msra.mxu0 0.0
        %827 = vmatprep.subr.mxu0 0.0
        %828 = vmatpush1.msra.mxu0 0.0
        %829 = vmatprep.subr.mxu0 0.0
        %830 = vmatpush1.msra.mxu0 0.0
        %831 = vmatprep.subr.mxu0 0.0
        %832 = vmatpush1.msra.mxu0 0.0
        %833 = vmatprep.subr.mxu0 0.0
        %834 = vmatpush1.msra.mxu0 0.0
        %835 = vmatprep.subr.mxu0 0.0
        %836 = vmatpush1.msra.mxu0 0.0
        %837 = vmatprep.subr.mxu0 0.0
        %838 = vmatpush1.msra.mxu0 0.0
        %839 = vmatprep.subr.mxu0 0.0
        %840 = vmatpush1.msra.mxu0 0.0
        %841 = vmatprep.subr.mxu0 0.0
        %842 = vmatpush1.msra.mxu0 0.0
        %843 = vmatprep.subr.mxu0 0.0
        %844 = vmatpush1.msra.mxu0 0.0
        %845 = vmatprep.subr.mxu0 0.0
        %846 = vmatpush1.msra.mxu0 0.0
        %847 = vmatprep.subr.mxu0 0.0
        %848 = vmatpush1.msra.mxu0 0.0
        %849 = vmatprep.mubr.f32.mxu0 0.0
        %850 = vmatmul.mubr.f32.gmra.mrb[0].mxu0 %v783
        %v851 = vpop.f32.mrb[0].mxu0
        %v852 = vadd.f32 0.0, %v851
        %v853 = vpop.f32.mrb[0].mxu0
        %854 = vdwg.mxu0
        %v855 = vmul.f32 %v852, 0.17677669
        %v856 = vmul.f32 %v644, %v754
        %v858 = vsel %vm573, %v856, 0
        %860 = vmatprep.subr.mxu0 0.0
        %861 = vmatpush1.msra.mxu0 %v777
        %862 = vmatprep.subr.mxu0 0.0
        %863 = vmatpush1.msra.mxu0 %v778
        %864 = vmatprep.subr.mxu0 0.0
        %865 = vmatpush1.msra.mxu0 %v779
        %866 = vmatprep.subr.mxu0 0.0
        %867 = vmatpush1.msra.mxu0 %v780
        %868 = vmatprep.subr.mxu0 0.0
        %869 = vmatpush1.msra.mxu0 0.0
        %870 = vmatprep.subr.mxu0 0.0
        %871 = vmatpush1.msra.mxu0 0.0
        %872 = vmatprep.subr.mxu0 0.0
        %873 = vmatpush1.msra.mxu0 0.0
        %874 = vmatprep.subr.mxu0 0.0
        %875 = vmatpush1.msra.mxu0 0.0
        %876 = vmatprep.subr.mxu0 0.0
        %877 = vmatpush1.msra.mxu0 0.0
        %878 = vmatprep.subr.mxu0 0.0
        %879 = vmatpush1.msra.mxu0 0.0
        %880 = vmatprep.subr.mxu0 0.0
        %881 = vmatpush1.msra.mxu0 0.0
        %882 = vmatprep.subr.mxu0 0.0
        %883 = vmatpush1.msra.mxu0 0.0
        %884 = vmatprep.subr.mxu0 0.0
        %885 = vmatpush1.msra.mxu0 0.0
        %886 = vmatprep.subr.mxu0 0.0
        %887 = vmatpush1.msra.mxu0 0.0
        %888 = vmatprep.subr.mxu0 0.0
        %889 = vmatpush1.msra.mxu0 0.0
        %890 = vmatprep.subr.mxu0 0.0
        %891 = vmatpush1.msra.mxu0 0.0
        %892 = vmatprep.subr.mxu0 0.0
        %893 = vmatpush1.msra.mxu0 0.0
        %894 = vmatprep.subr.mxu0 0.0
        %895 = vmatpush1.msra.mxu0 0.0
        %896 = vmatprep.subr.mxu0 0.0
        %897 = vmatpush1.msra.mxu0 0.0
        %898 = vmatprep.subr.mxu0 0.0
        %899 = vmatpush1.msra.mxu0 0.0
        %900 = vmatprep.subr.mxu0 0.0
        %901 = vmatpush1.msra.mxu0 0.0
        %902 = vmatprep.subr.mxu0 0.0
        %903 = vmatpush1.msra.mxu0 0.0
        %904 = vmatprep.subr.mxu0 0.0
        %905 = vmatpush1.msra.mxu0 0.0
        %906 = vmatprep.subr.mxu0 0.0
        %907 = vmatpush1.msra.mxu0 0.0
        %908 = vmatprep.subr.mxu0 0.0
        %909 = vmatpush1.msra.mxu0 0.0
        %910 = vmatprep.subr.mxu0 0.0
        %911 = vmatpush1.msra.mxu0 0.0
        %912 = vmatprep.subr.mxu0 0.0
        %913 = vmatpush1.msra.mxu0 0.0
        %914 = vmatprep.subr.mxu0 0.0
        %915 = vmatpush1.msra.mxu0 0.0
        %916 = vmatprep.subr.mxu0 0.0
        %917 = vmatpush1.msra.mxu0 0.0
        %918 = vmatprep.subr.mxu0 0.0
        %919 = vmatpush1.msra.mxu0 0.0
        %920 = vmatprep.subr.mxu0 0.0
        %921 = vmatpush1.msra.mxu0 0.0
        %922 = vmatprep.subr.mxu0 0.0
        %923 = vmatpush1.msra.mxu0 0.0
        %924 = vmatprep.mubr.f32.mxu0 0.0
        %925 = vmatmul.mubr.f32.gmra.mrb[0].mxu0 %v858
        %v926 = vpop.f32.mrb[0].mxu0
        %v927 = vadd.f32 0.0, %v926
        %v928 = vpop.f32.mrb[0].mxu0
        %929 = vdwg.mxu0
        %v930 = vmul.f32 %v927, 0.17677669
        %v931 = vmul.f32 %v644, %v759
        %v933 = vsel %vm573, %v931, 0
        %935 = vmatprep.subr.mxu0 0.0
        %936 = vmatpush1.msra.mxu0 %v777
        %937 = vmatprep.subr.mxu0 0.0
        %938 = vmatpush1.msra.mxu0 %v778
        %939 = vmatprep.subr.mxu0 0.0
        %940 = vmatpush1.msra.mxu0 %v779
        %941 = vmatprep.subr.mxu0 0.0
        %942 = vmatpush1.msra.mxu0 %v780
        %943 = vmatprep.subr.mxu0 0.0
        %944 = vmatpush1.msra.mxu0 0.0
        %945 = vmatprep.subr.mxu0 0.0
        %946 = vmatpush1.msra.mxu0 0.0
        %947 = vmatprep.subr.mxu0 0.0
        %948 = vmatpush1.msra.mxu0 0.0
        %949 = vmatprep.subr.mxu0 0.0
        %950 = vmatpush1.msra.mxu0 0.0
        %951 = vmatprep.subr.mxu0 0.0
        %952 = vmatpush1.msra.mxu0 0.0
        %953 = vmatprep.subr.mxu0 0.0
        %954 = vmatpush1.msra.mxu0 0.0
        %955 = vmatprep.subr.mxu0 0.0
        %956 = vmatpush1.msra.mxu0 0.0
        %957 = vmatprep.subr.mxu0 0.0
        %958 = vmatpush1.msra.mxu0 0.0
        %959 = vmatprep.subr.mxu0 0.0
        %960 = vmatpush1.msra.mxu0 0.0
        %961 = vmatprep.subr.mxu0 0.0
        %962 = vmatpush1.msra.mxu0 0.0
        %963 = vmatprep.subr.mxu0 0.0
        %964 = vmatpush1.msra.mxu0 0.0
        %965 = vmatprep.subr.mxu0 0.0
        %966 = vmatpush1.msra.mxu0 0.0
        %967 = vmatprep.subr.mxu0 0.0
        %968 = vmatpush1.msra.mxu0 0.0
        %969 = vmatprep.subr.mxu0 0.0
        %970 = vmatpush1.msra.mxu0 0.0
        %971 = vmatprep.subr.mxu0 0.0
        %972 = vmatpush1.msra.mxu0 0.0
        %973 = vmatprep.subr.mxu0 0.0
        %974 = vmatpush1.msra.mxu0 0.0
        %975 = vmatprep.subr.mxu0 0.0
        %976 = vmatpush1.msra.mxu0 0.0
        %977 = vmatprep.subr.mxu0 0.0
        %978 = vmatpush1.msra.mxu0 0.0
        %979 = vmatprep.subr.mxu0 0.0
        %980 = vmatpush1.msra.mxu0 0.0
        %981 = vmatprep.subr.mxu0 0.0
        %982 = vmatpush1.msra.mxu0 0.0
        %983 = vmatprep.subr.mxu0 0.0
        %984 = vmatpush1.msra.mxu0 0.0
        %985 = vmatprep.subr.mxu0 0.0
        %986 = vmatpush1.msra.mxu0 0.0
        %987 = vmatprep.subr.mxu0 0.0
        %988 = vmatpush1.msra.mxu0 0.0
        %989 = vmatprep.subr.mxu0 0.0
        %990 = vmatpush1.msra.mxu0 0.0
        %991 = vmatprep.subr.mxu0 0.0
        %992 = vmatpush1.msra.mxu0 0.0
        %993 = vmatprep.subr.mxu0 0.0
        %994 = vmatpush1.msra.mxu0 0.0
        %995 = vmatprep.subr.mxu0 0.0
        %996 = vmatpush1.msra.mxu0 0.0
        %997 = vmatprep.subr.mxu0 0.0
        %998 = vmatpush1.msra.mxu0 0.0
        %999 = vmatprep.mubr.f32.mxu0 0.0
        %1000 = vmatmul.mubr.f32.gmra.mrb[0].mxu0 %v933
        %v1001 = vpop.f32.mrb[0].mxu0
        %v1002 = vadd.f32 0.0, %v1001
        %v1003 = vpop.f32.mrb[0].mxu0
        %1004 = vdwg.mxu0
        %v1005 = vmul.f32 %v1002, 0.17677669
        %v1006 = vmul.f32 %v644, %v764
        %v1008 = vsel %vm573, %v1006, 0
        %1010 = vmatprep.subr.mxu0 0.0
        %1011 = vmatpush1.msra.mxu0 %v777
        %1012 = vmatprep.subr.mxu0 0.0
        %1013 = vmatpush1.msra.mxu0 %v778
        %1014 = vmatprep.subr.mxu0 0.0
        %1015 = vmatpush1.msra.mxu0 %v779
        %1016 = vmatprep.subr.mxu0 0.0
        %1017 = vmatpush1.msra.mxu0 %v780
        %1018 = vmatprep.subr.mxu0 0.0
        %1019 = vmatpush1.msra.mxu0 0.0
        %1020 = vmatprep.subr.mxu0 0.0
        %1021 = vmatpush1.msra.mxu0 0.0
        %1022 = vmatprep.subr.mxu0 0.0
        %1023 = vmatpush1.msra.mxu0 0.0
        %1024 = vmatprep.subr.mxu0 0.0
        %1025 = vmatpush1.msra.mxu0 0.0
        %1026 = vmatprep.subr.mxu0 0.0
        %1027 = vmatpush1.msra.mxu0 0.0
        %1028 = vmatprep.subr.mxu0 0.0
        %1029 = vmatpush1.msra.mxu0 0.0
        %1030 = vmatprep.subr.mxu0 0.0
        %1031 = vmatpush1.msra.mxu0 0.0
        %1032 = vmatprep.subr.mxu0 0.0
        %1033 = vmatpush1.msra.mxu0 0.0
        %1034 = vmatprep.subr.mxu0 0.0
        %1035 = vmatpush1.msra.mxu0 0.0
        %1036 = vmatprep.subr.mxu0 0.0
        %1037 = vmatpush1.msra.mxu0 0.0
        %1038 = vmatprep.subr.mxu0 0.0
        %1039 = vmatpush1.msra.mxu0 0.0
        %1040 = vmatprep.subr.mxu0 0.0
        %1041 = vmatpush1.msra.mxu0 0.0
        %1042 = vmatprep.subr.mxu0 0.0
        %1043 = vmatpush1.msra.mxu0 0.0
        %1044 = vmatprep.subr.mxu0 0.0
        %1045 = vmatpush1.msra.mxu0 0.0
        %1046 = vmatprep.subr.mxu0 0.0
        %1047 = vmatpush1.msra.mxu0 0.0
        %1048 = vmatprep.subr.mxu0 0.0
        %1049 = vmatpush1.msra.mxu0 0.0
        %1050 = vmatprep.subr.mxu0 0.0
        %1051 = vmatpush1.msra.mxu0 0.0
        %1052 = vmatprep.subr.mxu0 0.0
        %1053 = vmatpush1.msra.mxu0 0.0
        %1054 = vmatprep.subr.mxu0 0.0
        %1055 = vmatpush1.msra.mxu0 0.0
        %1056 = vmatprep.subr.mxu0 0.0
        %1057 = vmatpush1.msra.mxu0 0.0
        %1058 = vmatprep.subr.mxu0 0.0
        %1059 = vmatpush1.msra.mxu0 0.0
        %1060 = vmatprep.subr.mxu0 0.0
        %1061 = vmatpush1.msra.mxu0 0.0
        %1062 = vmatprep.subr.mxu0 0.0
        %1063 = vmatpush1.msra.mxu0 0.0
        %1064 = vmatprep.subr.mxu0 0.0
        %1065 = vmatpush1.msra.mxu0 0.0
        %1066 = vmatprep.subr.mxu0 0.0
        %1067 = vmatpush1.msra.mxu0 0.0
        %1068 = vmatprep.subr.mxu0 0.0
        %1069 = vmatpush1.msra.mxu0 0.0
        %1070 = vmatprep.subr.mxu0 0.0
        %1071 = vmatpush1.msra.mxu0 0.0
        %1072 = vmatprep.subr.mxu0 0.0
        %1073 = vmatpush1.msra.mxu0 0.0
        %1074 = vmatprep.mubr.f32.mxu0 0.0
        %1075 = vmatmul.mubr.f32.gmra.mrb[0].mxu0 %v1008
        %v1076 = vpop.f32.mrb[0].mxu0
        %v1077 = vadd.f32 0.0, %v1076
        %v1078 = vpop.f32.mrb[0].mxu0
        %1079 = vdwg.mxu0
        %v1080 = vmul.f32 %v1077, 0.17677669
        %v1081 = vmul.f32 %v644, %v769
        %v1083 = vsel %vm573, %v1081, 0
        %1085 = vmatprep.subr.mxu0 0.0
        %1086 = vmatpush1.msra.mxu0 %v777
        %1087 = vmatprep.subr.mxu0 0.0
        %1088 = vmatpush1.msra.mxu0 %v778
        %1089 = vmatprep.subr.mxu0 0.0
        %1090 = vmatpush1.msra.mxu0 %v779
        %1091 = vmatprep.subr.mxu0 0.0
        %1092 = vmatpush1.msra.mxu0 %v780
        %1093 = vmatprep.subr.mxu0 0.0
        %1094 = vmatpush1.msra.mxu0 0.0
        %1095 = vmatprep.subr.mxu0 0.0
        %1096 = vmatpush1.msra.mxu0 0.0
        %1097 = vmatprep.subr.mxu0 0.0
        %1098 = vmatpush1.msra.mxu0 0.0
        %1099 = vmatprep.subr.mxu0 0.0
        %1100 = vmatpush1.msra.mxu0 0.0
        %1101 = vmatprep.subr.mxu0 0.0
        %1102 = vmatpush1.msra.mxu0 0.0
        %1103 = vmatprep.subr.mxu0 0.0
        %1104 = vmatpush1.msra.mxu0 0.0
        %1105 = vmatprep.subr.mxu0 0.0
        %1106 = vmatpush1.msra.mxu0 0.0
        %1107 = vmatprep.subr.mxu0 0.0
        %1108 = vmatpush1.msra.mxu0 0.0
        %1109 = vmatprep.subr.mxu0 0.0
        %1110 = vmatpush1.msra.mxu0 0.0
        %1111 = vmatprep.subr.mxu0 0.0
        %1112 = vmatpush1.msra.mxu0 0.0
        %1113 = vmatprep.subr.mxu0 0.0
        %1114 = vmatpush1.msra.mxu0 0.0
        %1115 = vmatprep.subr.mxu0 0.0
        %1116 = vmatpush1.msra.mxu0 0.0
        %1117 = vmatprep.subr.mxu0 0.0
        %1118 = vmatpush1.msra.mxu0 0.0
        %1119 = vmatprep.subr.mxu0 0.0
        %1120 = vmatpush1.msra.mxu0 0.0
        %1121 = vmatprep.subr.mxu0 0.0
        %1122 = vmatpush1.msra.mxu0 0.0
        %1123 = vmatprep.subr.mxu0 0.0
        %1124 = vmatpush1.msra.mxu0 0.0
        %1125 = vmatprep.subr.mxu0 0.0
        %1126 = vmatpush1.msra.mxu0 0.0
        %1127 = vmatprep.subr.mxu0 0.0
        %1128 = vmatpush1.msra.mxu0 0.0
        %1129 = vmatprep.subr.mxu0 0.0
        %1130 = vmatpush1.msra.mxu0 0.0
        %1131 = vmatprep.subr.mxu0 0.0
        %1132 = vmatpush1.msra.mxu0 0.0
        %1133 = vmatprep.subr.mxu0 0.0
        %1134 = vmatpush1.msra.mxu0 0.0
        %1135 = vmatprep.subr.mxu0 0.0
        %1136 = vmatpush1.msra.mxu0 0.0
        %1137 = vmatprep.subr.mxu0 0.0
        %1138 = vmatpush1.msra.mxu0 0.0
        %1139 = vmatprep.subr.mxu0 0.0
        %1140 = vmatpush1.msra.mxu0 0.0
        %1141 = vmatprep.subr.mxu0 0.0
        %1142 = vmatpush1.msra.mxu0 0.0
        %1143 = vmatprep.subr.mxu0 0.0
        %1144 = vmatpush1.msra.mxu0 0.0
        %1145 = vmatprep.subr.mxu0 0.0
        %1146 = vmatpush1.msra.mxu0 0.0
        %1147 = vmatprep.subr.mxu0 0.0
        %1148 = vmatpush1.msra.mxu0 0.0
        %1149 = vmatprep.mubr.f32.mxu0 0.0
        %1150 = vmatmul.mubr.f32.gmra.mrb[0].mxu0 %v1083
        %v1151 = vpop.f32.mrb[0].mxu0
        %v1152 = vadd.f32 0.0, %v1151
        %v1153 = vpop.f32.mrb[0].mxu0
        %1154 = vdwg.mxu0
        %v1155 = vmul.f32 %v1152, 0.17677669
        %v1156 = vmul.f32 %v644, %v774
        %v1158 = vsel %vm573, %v1156, 0
        %1160 = vmatprep.subr.mxu0 0.0
        %1161 = vmatpush1.msra.mxu0 %v777
        %1162 = vmatprep.subr.mxu0 0.0
        %1163 = vmatpush1.msra.mxu0 %v778
        %1164 = vmatprep.subr.mxu0 0.0
        %1165 = vmatpush1.msra.mxu0 %v779
        %1166 = vmatprep.subr.mxu0 0.0
        %1167 = vmatpush1.msra.mxu0 %v780
        %1168 = vmatprep.subr.mxu0 0.0
        %1169 = vmatpush1.msra.mxu0 0.0
        %1170 = vmatprep.subr.mxu0 0.0
        %1171 = vmatpush1.msra.mxu0 0.0
        %1172 = vmatprep.subr.mxu0 0.0
        %1173 = vmatpush1.msra.mxu0 0.0
        %1174 = vmatprep.subr.mxu0 0.0
        %1175 = vmatpush1.msra.mxu0 0.0
        %1176 = vmatprep.subr.mxu0 0.0
        %1177 = vmatpush1.msra.mxu0 0.0
        %1178 = vmatprep.subr.mxu0 0.0
        %1179 = vmatpush1.msra.mxu0 0.0
        %1180 = vmatprep.subr.mxu0 0.0
        %1181 = vmatpush1.msra.mxu0 0.0
        %1182 = vmatprep.subr.mxu0 0.0
        %1183 = vmatpush1.msra.mxu0 0.0
        %1184 = vmatprep.subr.mxu0 0.0
        %1185 = vmatpush1.msra.mxu0 0.0
        %1186 = vmatprep.subr.mxu0 0.0
        %1187 = vmatpush1.msra.mxu0 0.0
        %1188 = vmatprep.subr.mxu0 0.0
        %1189 = vmatpush1.msra.mxu0 0.0
        %1190 = vmatprep.subr.mxu0 0.0
        %1191 = vmatpush1.msra.mxu0 0.0
        %1192 = vmatprep.subr.mxu0 0.0
        %1193 = vmatpush1.msra.mxu0 0.0
        %1194 = vmatprep.subr.mxu0 0.0
        %1195 = vmatpush1.msra.mxu0 0.0
        %1196 = vmatprep.subr.mxu0 0.0
        %1197 = vmatpush1.msra.mxu0 0.0
        %1198 = vmatprep.subr.mxu0 0.0
        %1199 = vmatpush1.msra.mxu0 0.0
        %1200 = vmatprep.subr.mxu0 0.0
        %1201 = vmatpush1.msra.mxu0 0.0
        %1202 = vmatprep.subr.mxu0 0.0
        %1203 = vmatpush1.msra.mxu0 0.0
        %1204 = vmatprep.subr.mxu0 0.0
        %1205 = vmatpush1.msra.mxu0 0.0
        %1206 = vmatprep.subr.mxu0 0.0
        %1207 = vmatpush1.msra.mxu0 0.0
        %1208 = vmatprep.subr.mxu0 0.0
        %1209 = vmatpush1.msra.mxu0 0.0
        %1210 = vmatprep.subr.mxu0 0.0
        %1211 = vmatpush1.msra.mxu0 0.0
        %1212 = vmatprep.subr.mxu0 0.0
        %1213 = vmatpush1.msra.mxu0 0.0
        %1214 = vmatprep.subr.mxu0 0.0
        %1215 = vmatpush1.msra.mxu0 0.0
        %1216 = vmatprep.subr.mxu0 0.0
        %1217 = vmatpush1.msra.mxu0 0.0
        %1218 = vmatprep.subr.mxu0 0.0
        %1219 = vmatpush1.msra.mxu0 0.0
        %1220 = vmatprep.subr.mxu0 0.0
        %1221 = vmatpush1.msra.mxu0 0.0
        %1222 = vmatprep.subr.mxu0 0.0
        %1223 = vmatpush1.msra.mxu0 0.0
        %1224 = vmatprep.mubr.f32.mxu0 0.0
        %1225 = vmatmul.mubr.f32.gmra.mrb[0].mxu0 %v1158
        %v1226 = vpop.f32.mrb[0].mxu0
        %v1227 = vadd.f32 0.0, %v1226
        %v1228 = vpop.f32.mrb[0].mxu0
        %1229 = vdwg.mxu0
        %v1230 = vmul.f32 %v1227, 0.17677669
        %v1231 = vmax.f32 %v855, %v930
        %v1232 = vmax.f32 %v1231, %v1005
        %v1233 = vmax.f32 %v1232, %v1080
        %v1234 = vmax.f32 %v1233, %v1155
        %v1235 = vmax.f32 %v1234, %v1230
        %v1236 = vsub.f32 %v855, %v1235
        %v1237 = vmul.f32 %v1236, 1.442695
        %v1238 = vpow.pop %v1237
        %v1239 = vadd.f32 %v1238, 0.0
        %1241 = vrot.lane.b32.xlu0 %v749, 96
        %v1242 = vpop.permute.xlu0 %1241
        %v1244 = vmul.f32 %v1238, %v1242
        %v1245 = vadd.f32 %v1244, 0.0
        %v1246 = vsub.f32 %v930, %v1235
        %v1247 = vmul.f32 %v1246, 1.442695
        %v1248 = vpow.pop %v1247
        %v1249 = vadd.f32 %v1239, %v1248
        %1251 = vrot.lane.b32.xlu0 %v754, 96
        %v1252 = vpop.permute.xlu0 %1251
        %v1254 = vmul.f32 %v1248, %v1252
        %v1255 = vadd.f32 %v1245, %v1254
        %v1256 = vsub.f32 %v1005, %v1235
        %v1257 = vmul.f32 %v1256, 1.442695
        %v1258 = vpow.pop %v1257
        %v1259 = vadd.f32 %v1249, %v1258
        %1261 = vrot.lane.b32.xlu0 %v759, 96
        %v1262 = vpop.permute.xlu0 %1261
        %v1264 = vmul.f32 %v1258, %v1262
        %v1265 = vadd.f32 %v1255, %v1264
        %v1266 = vsub.f32 %v1080, %v1235
        %v1267 = vmul.f32 %v1266, 1.442695
        %v1268 = vpow.pop %v1267
        %v1269 = vadd.f32 %v1259, %v1268
        %1271 = vrot.lane.b32.xlu0 %v764, 96
        %v1272 = vpop.permute.xlu0 %1271
        %v1274 = vmul.f32 %v1268, %v1272
        %v1275 = vadd.f32 %v1265, %v1274
        %v1276 = vsub.f32 %v1155, %v1235
        %v1277 = vmul.f32 %v1276, 1.442695
        %v1278 = vpow.pop %v1277
        %v1279 = vadd.f32 %v1269, %v1278
        %1281 = vrot.lane.b32.xlu0 %v769, 96
        %v1282 = vpop.permute.xlu0 %1281
        %v1284 = vmul.f32 %v1278, %v1282
        %v1285 = vadd.f32 %v1275, %v1284
        %v1286 = vsub.f32 %v1230, %v1235
        %v1287 = vmul.f32 %v1286, 1.442695
        %v1288 = vpow.pop %v1287
        %v1289 = vadd.f32 %v1279, %v1288
        %1291 = vrot.lane.b32.xlu0 %v774, 96
        %v1292 = vpop.permute.xlu0 %1291
        %v1294 = vmul.f32 %v1288, %v1292
        %v1295 = vadd.f32 %v1285, %v1294
        %v1296 = vrcp.pop %v1289
        %v1297 = vmul.f32 %v1295, %v1296
        %v1298 = vld [vmem:[#allocation14] sm:$0xff]
        %v1299 = vld [vmem:[#allocation14 + $0x8] sm:$0xff]
        %v1300 = vld [vmem:[#allocation14 + $0x10] sm:$0xff]
        %v1301 = vld [vmem:[#allocation14 + $0x18] sm:$0xff]
        %v1302 = vld [vmem:[#allocation16] sm:$0x1]
        %v1304 = vlaneseq
        %v1305 = vshrl.u32 %v1304, 7
        %v1306 = vsub.s32 0, %v1305
        %v1307 = vrot.slane %v1302, %v1306
        %v1310 = vsel %vm573, %v1297, 0
        %1312 = vmatprep.subr.mxu0 0.0
        %1313 = vmatpush1.msra.mxu0 %v1298
        %1314 = vmatprep.subr.mxu0 0.0
        %1315 = vmatpush1.msra.mxu0 %v1299
        %1316 = vmatprep.subr.mxu0 0.0
        %1317 = vmatpush1.msra.mxu0 %v1300
        %1318 = vmatprep.subr.mxu0 0.0
        %1319 = vmatpush1.msra.mxu0 %v1301
        %1320 = vmatprep.subr.mxu0 0.0
        %1321 = vmatpush1.msra.mxu0 0.0
        %1322 = vmatprep.subr.mxu0 0.0
        %1323 = vmatpush1.msra.mxu0 0.0
        %1324 = vmatprep.subr.mxu0 0.0
        %1325 = vmatpush1.msra.mxu0 0.0
        %1326 = vmatprep.subr.mxu0 0.0
        %1327 = vmatpush1.msra.mxu0 0.0
        %1328 = vmatprep.subr.mxu0 0.0
        %1329 = vmatpush1.msra.mxu0 0.0
        %1330 = vmatprep.subr.mxu0 0.0
        %1331 = vmatpush1.msra.mxu0 0.0
        %1332 = vmatprep.subr.mxu0 0.0
        %1333 = vmatpush1.msra.mxu0 0.0
        %1334 = vmatprep.subr.mxu0 0.0
        %1335 = vmatpush1.msra.mxu0 0.0
        %1336 = vmatprep.subr.mxu0 0.0
        %1337 = vmatpush1.msra.mxu0 0.0
        %1338 = vmatprep.subr.mxu0 0.0
        %1339 = vmatpush1.msra.mxu0 0.0
        %1340 = vmatprep.subr.mxu0 0.0
        %1341 = vmatpush1.msra.mxu0 0.0
        %1342 = vmatprep.subr.mxu0 0.0
        %1343 = vmatpush1.msra.mxu0 0.0
        %1344 = vmatprep.subr.mxu0 0.0
        %1345 = vmatpush1.msra.mxu0 0.0
        %1346 = vmatprep.subr.mxu0 0.0
        %1347 = vmatpush1.msra.mxu0 0.0
        %1348 = vmatprep.subr.mxu0 0.0
        %1349 = vmatpush1.msra.mxu0 0.0
        %1350 = vmatprep.subr.mxu0 0.0
        %1351 = vmatpush1.msra.mxu0 0.0
        %1352 = vmatprep.subr.mxu0 0.0
        %1353 = vmatpush1.msra.mxu0 0.0
        %1354 = vmatprep.subr.mxu0 0.0
        %1355 = vmatpush1.msra.mxu0 0.0
        %1356 = vmatprep.subr.mxu0 0.0
        %1357 = vmatpush1.msra.mxu0 0.0
        %1358 = vmatprep.subr.mxu0 0.0
        %1359 = vmatpush1.msra.mxu0 0.0
        %1360 = vmatprep.subr.mxu0 0.0
        %1361 = vmatpush1.msra.mxu0 0.0
        %1362 = vmatprep.subr.mxu0 0.0
        %1363 = vmatpush1.msra.mxu0 0.0
        %1364 = vmatprep.subr.mxu0 0.0
        %1365 = vmatpush1.msra.mxu0 0.0
        %1366 = vmatprep.subr.mxu0 0.0
        %1367 = vmatpush1.msra.mxu0 0.0
        %1368 = vmatprep.subr.mxu0 0.0
        %1369 = vmatpush1.msra.mxu0 0.0
        %1370 = vmatprep.subr.mxu0 0.0
        %1371 = vmatpush1.msra.mxu0 0.0
        %1372 = vmatprep.subr.mxu0 0.0
        %1373 = vmatpush1.msra.mxu0 0.0
        %1374 = vmatprep.subr.mxu0 0.0
        %1375 = vmatpush1.msra.mxu0 0.0
        %1376 = vmatprep.mubr.f32.mxu0 0.0
        %1377 = vmatmul.mubr.f32.gmra.mrb[0].mxu0 %v1310
        %v1378 = vpop.f32.mrb[0].mxu0
        %v1379 = vadd.f32 %v1307, %v1378
        %v1380 = vpop.f32.mrb[0].mxu0
        %1381 = vdwg.mxu0
        %v1382 = vxor.u32 %v1379, 2147483648
        %v1383 = vmul.f32 %v1382, 1.442695
        %v1384 = vpow.pop %v1383
        %v1385 = vadd.f32 %v1384, 1.0
        %v1386 = vrcp.pop %v1385
        %v1387 = vmul.f32 1.0, %v1386
        %1389 = vrot.lane.b32.xlu0 %v1387, 96
        %v1390 = vpop.permute.xlu0 %1389
        %v1392 = vmul.f32 %v1379, %v1390
        %v1393 = vadd.f32 %v561, %v1392
        %v1394 = vsel %vm573, %v1393, 0.0
        %1395 = vadd.xlane.f32.xlu0 %v1394
        %v1396 = vpop.xlane.xlu0 %1395
        %v1397 = vrcp.pop 32.0
        %v1398 = vmul.f32 %v1396, %v1397
        %v1399 = vsub.f32 %v1393, %v1398
        %v1400 = vmul.f32 %v1399, %v1399
        %v1401 = vsel %vm573, %v1400, 0.0
        %1402 = vadd.xlane.f32.xlu0 %v1401
        %v1403 = vpop.xlane.xlu0 %1402
        %v1404 = vmul.f32 %v1403, %v1397
        %v1405 = vadd.f32 %v1404, 1e-05
        %v1406 = vrsqrt.pop %v1405
        %v1407 = vmul.f32 %v1399, %v1406
        %v1408 = vld [vmem:[#allocation17] sm:$0x1]
        %v1410 = vlaneseq
        %v1411 = vshrl.u32 %v1410, 7
        %v1412 = vsub.s32 0, %v1411
        %v1413 = vrot.slane %v1408, %v1412
        %v1415 = vmul.f32 %v1407, %v1413
        %v1416 = vld [vmem:[#allocation19] sm:$0x1]
        %v1418 = vlaneseq
        %v1419 = vshrl.u32 %v1418, 7
        %v1420 = vsub.s32 0, %v1419
        %v1421 = vrot.slane %v1416, %v1420
        %v1423 = vadd.f32 %v1415, %v1421
        %1424 = vst.msk [vmem:[%s560] sm:$0xff] %vm573, %v1423
        %s1425 = sand.u32 %s284, 1
        %s1426 = scalar_lea.sflag [#allocation4], %s1425
        %s1427 = sand.u32 %s284, 1
        %s1428 = smul.addr %s1427, 8
        %s1429 = scalar_lea.vmem [#allocation20], %s1428
        // Predicated region
        $region109: #{_lambda_.3} parent=63 // pred_check
          %p1430 = pneg %p294
        $region110: #{_lambda_.3} parent=63 // pred_check_branch
          %1432 = sbr.rel (%p1430) target = $region112
        $region111: #{_lambda_.3} parent=63 // pred_region
          %s1434 = ssub.s32 128, 128
          %1435 = vsyncadd %s1426, %s1434
          %s1436 = smul.addr %s35, 128
          %s1437 = scalar_lea.hbm %s11, %s1436
          %s1439 = sshll.u32 %s1429, 4
          %s1440 = int_to_ptr.vmem [resolvable:$true] %s1439
          %1442 = dma.vmem_to_hbm [thread:$0]  %s1440, 128, %s1437, %s1426
        $region112: #{_lambda_.3} parent=63 // pred_fallthru
          _
      $region64: #{_lambda_.3} parent=5 // pred_fallthru
        _
      %p1443 = scmp.le.s32.totalorder 2, %s30
      // Predicated region
      $region113: #{_lambda_.3} parent=5 // pred_check
        %p1444 = pneg %p1443
      $region114: #{_lambda_.3} parent=5 // pred_check_branch
        %1446 = sbr.rel (%p1444) target = $region116
      $region115: #{_lambda_.3} parent=5 // pred_region
        %s1447 = ssub.s32 %s30, 2
        // Predicated region
        $region117: #{_lambda_.3} parent=115 // pred_check
          %p1448 = pneg %p300
        $region118: #{_lambda_.3} parent=115 // pred_check_branch
          %1450 = sbr.rel (%p1448) target = $region120
        $region119: #{_lambda_.3} parent=115 // pred_region
          %s1451 = sand.u32 %s285, 1
          %s1452 = scalar_lea.sflag [#allocation4], %s1451
          %s1453 = sand.u32 %s285, 1
          %s1454 = smul.addr %s1453, 8
          %s1455 = scalar_lea.vmem [#allocation20], %s1454
          %1456 = dma.done %s1452, 128
        $region120: #{_lambda_.3} parent=115 // pred_fallthru
          _
      $region116: #{_lambda_.3} parent=5 // pred_fallthru
        _
    $region6: #{_lambda_.3} parent=1 // loop_footer
      %s34 = sadd.s32 1, %s30
    $region7: #{_lambda_.3} parent=1 // loop_footer_branch
      %29 = sbr.rel target = $region3
    $region8: #{_lambda_.3} parent=1 // loop_exit
      _
    %1457 = vsyncpa [#allocation3], 1
    %s1458 = scalar_lea.sflag [#allocation3], 1
    %1459 = vsyncpa %s1458, 1
    %1460 = vsyncpa [#allocation6], 1
    %s1461 = scalar_lea.sflag [#allocation6], 1
    %1462 = vsyncpa %s1461, 1
    %1463 = vsyncpa [#allocation9], 1
    %1464 = vsyncpa [#allocation12], 1
    %1465 = vsyncpa [#allocation15], 1
    %1466 = vsyncpa [#allocation18], 1
    %1467 = vsyncpa [#allocation4], 1
    %s1468 = scalar_lea.sflag [#allocation4], 1
    %1469 = vsyncpa %s1468, 1

</llo_original>
